<compile_context>
chip_gen: v7x
topology: tpu7x:2x2x1
jax: 0.10.0
libtpu: 0.0.40
codegen_flags: <defaults>
</compile_context>

<pallas_src>
import functools

import jax
import jax.numpy as jnp
from jax import lax
from jax.experimental import pallas as pl
from jax.experimental.pallas import tpu as pltpu


def _round_up(a, m):
    return ((a + m - 1) // m) * m


def _dense_block_kernel(x_ref, scales_ref, shifts_ref, wstack_ref, b_ref,
                        mask_ref, alphas_ref, o_ref, feat_ref, *,
                        C, Cout, P, W, HW, L, Nb):
    # x_ref      : (Nb, C, HW)        Nb images, channels on sublanes
    # scales_ref : (L, Cmaxp, 1)      folded BN scale per stage (0-padded)
    # shifts_ref : (L, Cmaxp, 1)      folded BN shift per stage (0-padded)
    # wstack_ref : (L, 9*P, Cmaxp)    9 conv taps stacked on rows, 8-row aligned
    # b_ref      : (L, P, 1)          conv bias (trailing BN folded in)
    # mask_ref   : (9, P, width)      per-tap boundary masks (f32 0/1)
    # alphas_ref : (L+1,) in SMEM     PReLU slopes (index L = trailing PReLU)
    # o_ref      : (Nb, Cout, HW)
    # feat_ref   : (Cmaxp, width)     VMEM feature stack, width = Nb*HW
    Cmaxp, width = feat_ref.shape
    cdt = wstack_ref.dtype                       # bf16 weights => bf16 MXU inputs

    taps = [(oh, ow) for oh in (-1, 0, 1) for ow in (-1, 0, 1)]
    center = 4                                   # (oh=0, ow=0)

    # (Re)build the feature stack for this step: one full aligned zero store
    # (padding rows must be finite — they are read, scaled by 0, before later
    # stages overwrite them), then drop each image in at lane offset img*HW.
    feat_ref[...] = jnp.zeros((Cmaxp, width), feat_ref.dtype)
    for img in range(Nb):
        feat_ref[0:C, img * HW:(img + 1) * HW] = x_ref[img]

    for i in range(L):                           # static unroll over stages
        # BatchNorm (eval, folded) + PReLU.  Dropout2d: identity in eval.
        y = feat_ref[...] * scales_ref[i] + shifts_ref[i]        # (Cmaxp, width)
        y = jnp.where(y > 0, y, alphas_ref[i] * y)
        if cdt != jnp.float32:
            y = y.astype(cdt)                    # bf16 MXU inputs, f32 accumulate

        # All 9 taps of the 3x3 conv in ONE MXU matmul:
        #   (9*P, Cmaxp) @ (Cmaxp, width) -> (9*P, width), lane-dense N.
        p = jnp.dot(wstack_ref[i], y, preferred_element_type=jnp.float32)

        # Combine shifted per-tap partials.  Start from the centre tap (no
        # roll, no mask) plus bias; every slice offset t*P is sublane-aligned.
        acc = p[center * P:(center + 1) * P, :] + b_ref[i]        # (P, width)
        for t, (oh, ow) in enumerate(taps):
            if t == center:
                continue
            d = oh * W + ow                                       # source offset
            pt = pltpu.roll(p[t * P:(t + 1) * P, :], (-d) % width, 1)
            # Mask kills both out-of-image taps (SAME zero padding) and the
            # roll's cross-image / global wraparound lanes.
            acc = acc + pt * mask_ref[t]

        if i + 1 < L:
            # Dense connectivity: append this stage's features (aligned write;
            # padded rows of acc are exactly zero by construction).
            feat_ref[(i + 1) * P:(i + 2) * P, :] = acc
        else:
            # ConvModuleEnd: trailing BatchNorm folded into w/b on the host;
            # only the trailing PReLU remains in-kernel.
            out = jnp.where(acc > 0, acc, alphas_ref[L] * acc).astype(o_ref.dtype)
            for img in range(Nb):
                o_ref[img] = out[0:Cout, img * HW:(img + 1) * HW]


def _make_tap_masks(H, W, Nb, P):
    """f32 (9, P, Nb*HW) validity masks for the 9 taps, per-image periodic."""
    HW = H * W
    width = Nb * HW
    pos = jnp.arange(width, dtype=jnp.int32) % HW     # per-image flat index
    wcol = pos % W
    rows = []
    for oh in (-1, 0, 1):
        for ow in (-1, 0, 1):
            m = jnp.ones((width,), jnp.bool_)
            if oh == -1:
                m = jnp.logical_and(m, pos >= W)
            elif oh == 1:
                m = jnp.logical_and(m, pos < HW - W)
            if ow == -1:
                m = jnp.logical_and(m, wcol >= 1)
            elif ow == 1:
                m = jnp.logical_and(m, wcol <= W - 2)
            rows.append(m)
    masks = jnp.stack(rows, axis=0).astype(jnp.float32)           # (9, width)
    return jnp.broadcast_to(masks[:, None, :], (9, P, width))


def _default_num_steps(N):
    """1 grid step (whole batch) on v5e/v6e; 2 steps on v7x (2 TensorCores)."""
    try:
        kind = jax.devices()[0].device_kind.lower()
    except Exception:
        kind = ""
    if ("v7" in kind or "7x" in kind) and N >= 2 and N % 2 == 0:
        return 2
    return 1


def dense_block_pallas(x_nchw, packed, *, num_steps=None):
    """Runs the whole DenseBlock in a single pallas_call.  x: (N, C, H, W)."""
    N, C, H, W = x_nchw.shape
    HW = H * W
    meta = packed["meta"]
    P, Cout, L = meta["P"], meta["Cout"], meta["L"]
    Cmaxp = L * P
    assert meta["C"] == C

    if num_steps is None:
        num_steps = _default_num_steps(N)
    assert N % num_steps == 0
    Nb = N // num_steps
    width = Nb * HW

    # NCHW is already channels-on-sublanes / spatial-minor: the flatten is a
    # free reshape (no transpose) and keeps HW on the lane axis.
    x_flat = x_nchw.reshape(N, C, HW)
    masks = _make_tap_masks(H, W, Nb, P)          # (9, P, width) f32, DMA'd once

    kernel = functools.partial(_dense_block_kernel, C=C, Cout=Cout, P=P,
                               W=W, HW=HW, L=L, Nb=Nb)

    # TODO(synk): for very large H*W add an H-tiling grid axis with a 1-row
    #             halo; size blocks against v7x's 32 MiB scoped / 64 MiB
    #             physical VMEM (half of v5e/v6e).  Unnecessary at this size.
    out_flat = pl.pallas_call(
        kernel,
        out_shape=jax.ShapeDtypeStruct((N, Cout, HW), jnp.float32),
        grid_spec=pltpu.PrefetchScalarGridSpec(
            num_scalar_prefetch=0,
            grid=(num_steps,),                    # Nb images per step
            in_specs=[
                pl.BlockSpec((Nb, C, HW), lambda n: (n, 0, 0)),
                pl.BlockSpec((L, Cmaxp, 1), lambda n: (0, 0, 0)),
                pl.BlockSpec((L, Cmaxp, 1), lambda n: (0, 0, 0)),
                pl.BlockSpec((L, 9 * P, Cmaxp), lambda n: (0, 0, 0)),
                pl.BlockSpec((L, P, 1), lambda n: (0, 0, 0)),
                pl.BlockSpec((9, P, width), lambda n: (0, 0, 0)),
                pl.BlockSpec(memory_space=pltpu.MemorySpace.SMEM),
            ],
            out_specs=pl.BlockSpec((Nb, Cout, HW), lambda n: (n, 0, 0)),
            scratch_shapes=[pltpu.VMEM((Cmaxp, width), jnp.float32)],
        ),
        compiler_params=pltpu.CompilerParams(
            dimension_semantics=("parallel",)),
    )(x_flat, packed["scales"], packed["shifts"], packed["wstack"],
      packed["bias"], masks, packed["alphas"])
    return out_flat.reshape(N, Cout, H, W)


def make_dense_block_params(key, channels_in, channels_out, length=5):
    """Deterministic synthetic eval-mode parameters in PyTorch-native shapes."""
    eps = 1e-5
    stages = []
    for i in range(length):
        cin = channels_in * (i + 1)
        end = (i + 1 == length)
        key, *ks = jax.random.split(key, 12)
        gamma = jax.random.uniform(ks[0], (cin,), minval=0.5, maxval=1.5)
        beta = 0.1 * jax.random.normal(ks[1], (cin,))
        rmean = 0.1 * jax.random.normal(ks[2], (cin,))
        rvar = jax.random.uniform(ks[3], (cin,), minval=0.5, maxval=1.5)
        bn_scale = gamma / jnp.sqrt(rvar + eps)
        bn_shift = beta - rmean * bn_scale
        alpha = 0.25 * jax.random.uniform(ks[4], (), minval=0.5, maxval=1.5)

        w = jax.random.normal(ks[5], (channels_out, cin, 3, 3)) / (9 * cin) ** 0.5
        b = 0.05 * jax.random.normal(ks[6], (channels_out,))

        stage = dict(bn_scale=bn_scale.astype(jnp.float32),
                     bn_shift=bn_shift.astype(jnp.float32),
                     alpha=alpha.astype(jnp.float32),
                     w=w.astype(jnp.float32), b=b.astype(jnp.float32),
                     end=end)
        if end:  # ConvModuleEnd: trailing BatchNorm + PReLU
            gamma2 = jax.random.uniform(ks[7], (channels_out,), minval=0.5, maxval=1.5)
            beta2 = 0.1 * jax.random.normal(ks[8], (channels_out,))
            rmean2 = 0.1 * jax.random.normal(ks[9], (channels_out,))
            rvar2 = jax.random.uniform(ks[10], (channels_out,), minval=0.5, maxval=1.5)
            bn2_scale = gamma2 / jnp.sqrt(rvar2 + eps)
            bn2_shift = beta2 - rmean2 * bn2_scale
            key, ka = jax.random.split(key)
            alpha2 = 0.25 * jax.random.uniform(ka, (), minval=0.5, maxval=1.5)
            stage.update(bn2_scale=bn2_scale.astype(jnp.float32),
                         bn2_shift=bn2_shift.astype(jnp.float32),
                         alpha2=alpha2.astype(jnp.float32))
        stages.append(stage)
    return stages


def pack_dense_block_params(stages, channels_in, channels_out, length,
                            weight_dtype=jnp.float32):
    """Pad / fold per-stage parameters into the sublane-aligned arrays the
    kernel reads.  Per-stage channel stride and per-tap row stride are padded
    to P = round_up(max(C, Cout), 8)."""
    C, Cout, L = channels_in, channels_out, length
    P = _round_up(max(C, Cout), 8)
    Cmaxp = L * P
    slot_sizes = [C] + [Cout] * (L - 1)            # channels held in each slot

    scales = jnp.zeros((L, Cmaxp, 1), jnp.float32)
    shifts = jnp.zeros((L, Cmaxp, 1), jnp.float32)
    wstack = jnp.zeros((L, 9 * P, Cmaxp), jnp.float32)
    bias = jnp.zeros((L, P, 1), jnp.float32)
    alphas = jnp.zeros((L + 1,), jnp.float32)

    for i, st in enumerate(stages):
        w, b = st["w"], st["b"]                    # OIHW weights, (Cout,) bias
        if st["end"]:
            # Fold the trailing BatchNorm (conv -> BN -> PReLU) into the conv.
            w = w * st["bn2_scale"][:, None, None, None]
            b = b * st["bn2_scale"] + st["bn2_shift"]
            alphas = alphas.at[L].set(st["alpha2"])
        alphas = alphas.at[i].set(st["alpha"])

        src = 0
        for s in range(i + 1):                     # scatter concat-order -> slots
            cs = slot_sizes[s]
            dst = s * P
            scales = scales.at[i, dst:dst + cs, 0].set(st["bn_scale"][src:src + cs])
            shifts = shifts.at[i, dst:dst + cs, 0].set(st["bn_shift"][src:src + cs])
            t = 0
            for oh in (-1, 0, 1):
                for ow in (-1, 0, 1):
                    wstack = wstack.at[i, t * P:t * P + Cout, dst:dst + cs].set(
                        w[:, src:src + cs, oh + 1, ow + 1])
                    t += 1
            src += cs
        bias = bias.at[i, :Cout, 0].set(b)

    return dict(scales=scales, shifts=shifts,
                wstack=wstack.astype(weight_dtype),   # bf16 here => bf16 MXU path
                bias=bias, alphas=alphas,
                meta=dict(P=P, C=C, Cout=Cout, L=L))


def dense_block_reference(x_nchw, stages):
    """Plain-JAX (lax.conv) reference with identical eval-mode semantics."""
    feats = [x_nchw]
    out = None
    for p in stages:
        cur = jnp.concatenate(feats, axis=1)
        y = (cur * p["bn_scale"][None, :, None, None]
             + p["bn_shift"][None, :, None, None])
        y = jnp.where(y > 0, y, p["alpha"] * y)
        out = lax.conv_general_dilated(
            y, p["w"], window_strides=(1, 1), padding=((1, 1), (1, 1)),
            dimension_numbers=("NCHW", "OIHW", "NCHW"),
            precision=lax.Precision.HIGHEST)
        out = out + p["b"][None, :, None, None]
        if p["end"]:
            out = (out * p["bn2_scale"][None, :, None, None]
                   + p["bn2_shift"][None, :, None, None])
            out = jnp.where(out > 0, out, p["alpha2"] * out)
        feats.append(out)
    return out


if __name__ == "__main__":
    N, C, H, W = 2, 4, 16, 16          # PyTorch NCHW input shape
    L = 5
    key = jax.random.PRNGKey(0)
    kx, kp = jax.random.split(key)

    x = jax.random.normal(kx, (N, C, H, W), jnp.float32)
    stages = make_dense_block_params(kp, channels_in=C, channels_out=C, length=L)
    ref = dense_block_reference(x, stages)

    # Full-precision path (validation-strength tolerance).
    packed_f32 = pack_dense_block_params(stages, C, C, L, weight_dtype=jnp.float32)
    out = jax.block_until_ready(dense_block_pallas(x, packed_f32))
    assert out.shape == (N, C, H, W), out.shape
    max_err = float(jnp.max(jnp.abs(out - ref)))
    assert jnp.allclose(out, ref, atol=2e-4, rtol=2e-4), max_err

    # bf16 weights / MXU inputs (recommended default on v6e/v7x), f32 accumulate.
    packed_bf16 = pack_dense_block_params(stages, C, C, L, weight_dtype=jnp.bfloat16)
    out_bf = jax.block_until_ready(dense_block_pallas(x, packed_bf16))
    rel_bf = float(jnp.max(jnp.abs(out_bf - ref))) / max(float(jnp.max(jnp.abs(ref))), 1e-6)
    assert rel_bf < 5e-2, rel_bf

    print("KERNEL_OK")
</pallas_src>

<mosaic_0001>
module attributes {stable_mosaic.version = 11 : i64} {
  func.func @_dense_block_kernel(%arg0: i32, %arg1: memref<2x4x256xf32, #tpu.memory_space<vmem>>, %arg2: memref<5x40x1xf32, #tpu.memory_space<vmem>>, %arg3: memref<5x40x1xf32, #tpu.memory_space<vmem>>, %arg4: memref<5x72x40xf32, #tpu.memory_space<vmem>>, %arg5: memref<5x8x1xf32, #tpu.memory_space<vmem>>, %arg6: memref<9x8x512xf32, #tpu.memory_space<vmem>>, %arg7: memref<6xf32, #tpu.memory_space<smem>>, %arg8: memref<2x4x256xf32, #tpu.memory_space<vmem>>, %arg9: memref<40x512xf32, #tpu.memory_space<vmem>>) attributes {dimension_semantics = [#tpu.dimension_semantics<parallel>], iteration_bounds = array<i64: 1>, scalar_prefetch = 0 : i64, scratch_operands = 1 : i64, tpu.core_type = #tpu.core_type<tc>, window_params = [{transform_indices = @transform_0, window_bounds = array<i64: 2, 4, 256>}, {pipeline_mode = #tpu.pipeline_mode<synchronous>, transform_indices = @transform_1, window_bounds = array<i64: 5, 40, 1>}, {pipeline_mode = #tpu.pipeline_mode<synchronous>, transform_indices = @transform_2, window_bounds = array<i64: 5, 40, 1>}, {pipeline_mode = #tpu.pipeline_mode<synchronous>, transform_indices = @transform_3, window_bounds = array<i64: 5, 72, 40>}, {pipeline_mode = #tpu.pipeline_mode<synchronous>, transform_indices = @transform_4, window_bounds = array<i64: 5, 8, 1>}, {pipeline_mode = #tpu.pipeline_mode<synchronous>, transform_indices = @transform_5, window_bounds = array<i64: 9, 8, 512>}, {transform_indices = @transform_6, window_bounds = array<i64: 6>}, {transform_indices = @transform_7, window_bounds = array<i64: 2, 4, 256>}]} {
    %cst = arith.constant 0.000000e+00 : f32
    %0 = vector.broadcast %cst : f32 to vector<40x512xf32>
    %c0 = arith.constant 0 : index
    %c0_0 = arith.constant 0 : index
    %1 = vector.load %arg9[%c0, %c0_0] : memref<40x512xf32, #tpu.memory_space<vmem>>, vector<40x512xf32>
    tpu.vector_store %arg9[%c0, %c0_0], %0 {strides = array<i32>} : memref<40x512xf32, #tpu.memory_space<vmem>>, vector<40x512xf32>,
    %c0_1 = arith.constant 0 : index
    %c0_2 = arith.constant 0 : index
    %c0_3 = arith.constant 0 : index
    %2 = vector.load %arg1[%c0_1, %c0_2, %c0_3] : memref<2x4x256xf32, #tpu.memory_space<vmem>>, vector<1x4x256xf32>
    %3 = vector.shape_cast %2 : vector<1x4x256xf32> to vector<4x256xf32>
    %c0_4 = arith.constant 0 : index
    %c0_5 = arith.constant 0 : index
    %4 = vector.load %arg9[%c0_4, %c0_5] : memref<40x512xf32, #tpu.memory_space<vmem>>, vector<4x256xf32>
    tpu.vector_store %arg9[%c0_4, %c0_5], %3 {strides = array<i32>} : memref<40x512xf32, #tpu.memory_space<vmem>>, vector<4x256xf32>,
    %c1 = arith.constant 1 : index
    %c0_6 = arith.constant 0 : index
    %c0_7 = arith.constant 0 : index
    %5 = vector.load %arg1[%c1, %c0_6, %c0_7] : memref<2x4x256xf32, #tpu.memory_space<vmem>>, vector<1x4x256xf32>
    %6 = vector.shape_cast %5 : vector<1x4x256xf32> to vector<4x256xf32>
    %c0_8 = arith.constant 0 : index
    %c256 = arith.constant 256 : index
    %7 = vector.load %arg9[%c0_8, %c256] : memref<40x512xf32, #tpu.memory_space<vmem>>, vector<4x256xf32>
    tpu.vector_store %arg9[%c0_8, %c256], %6 {strides = array<i32>} : memref<40x512xf32, #tpu.memory_space<vmem>>, vector<4x256xf32>,
    %c0_9 = arith.constant 0 : index
    %c0_10 = arith.constant 0 : index
    %8 = vector.load %arg9[%c0_9, %c0_10] : memref<40x512xf32, #tpu.memory_space<vmem>>, vector<40x512xf32>
    %c0_11 = arith.constant 0 : index
    %c0_12 = arith.constant 0 : index
    %c0_13 = arith.constant 0 : index
    %9 = vector.load %arg2[%c0_11, %c0_12, %c0_13] : memref<5x40x1xf32, #tpu.memory_space<vmem>>, vector<1x40x1xf32>
    %10 = vector.shape_cast %9 : vector<1x40x1xf32> to vector<40x1xf32>
    %11 = vector.broadcast %10 : vector<40x1xf32> to vector<40x512xf32>
    %12 = arith.mulf %8, %11 : vector<40x512xf32>
    %c0_14 = arith.constant 0 : index
    %c0_15 = arith.constant 0 : index
    %c0_16 = arith.constant 0 : index
    %13 = vector.load %arg3[%c0_14, %c0_15, %c0_16] : memref<5x40x1xf32, #tpu.memory_space<vmem>>, vector<1x40x1xf32>
    %14 = vector.shape_cast %13 : vector<1x40x1xf32> to vector<40x1xf32>
    %15 = vector.broadcast %14 : vector<40x1xf32> to vector<40x512xf32>
    %16 = arith.addf %12, %15 : vector<40x512xf32>
    %cst_17 = arith.constant 0.000000e+00 : f32
    %17 = vector.broadcast %cst_17 : f32 to vector<40x512xf32>
    %18 = arith.cmpf ogt, %16, %17 : vector<40x512xf32>
    %c0_18 = arith.constant 0 : index
    %19 = memref.load %arg7[%c0_18] : memref<6xf32, #tpu.memory_space<smem>>
    %20 = vector.broadcast %19 : f32 to vector<40x512xf32>
    %21 = arith.mulf %20, %16 : vector<40x512xf32>
    %22 = arith.select %18, %16, %21 : vector<40x512xi1>, vector<40x512xf32>
    %c0_19 = arith.constant 0 : index
    %c0_20 = arith.constant 0 : index
    %c0_21 = arith.constant 0 : index
    %23 = vector.load %arg4[%c0_19, %c0_20, %c0_21] : memref<5x72x40xf32, #tpu.memory_space<vmem>>, vector<1x72x40xf32>
    %24 = vector.shape_cast %23 : vector<1x72x40xf32> to vector<72x40xf32>
    %cst_22 = arith.constant dense<0.000000e+00> : vector<72x512xf32>
    %25 = tpu.matmul %24, %22, %cst_22 {dimension_numbers = #tpu.dot_dimension_numbers<[1], [0], [0], [1], [0, 0, 1, 1], [], []>} : vector<72x40xf32>, vector<40x512xf32>, vector<72x512xf32> -> vector<72x512xf32>
    %26 = vector.extract_strided_slice %25 {offsets = [32, 0], sizes = [8, 512], strides = [1, 1]} : vector<72x512xf32> to vector<8x512xf32>
    %c0_23 = arith.constant 0 : index
    %c0_24 = arith.constant 0 : index
    %c0_25 = arith.constant 0 : index
    %27 = vector.load %arg5[%c0_23, %c0_24, %c0_25] : memref<5x8x1xf32, #tpu.memory_space<vmem>>, vector<1x8x1xf32>
    %28 = vector.shape_cast %27 : vector<1x8x1xf32> to vector<8x1xf32>
    %29 = vector.broadcast %28 : vector<8x1xf32> to vector<8x512xf32>
    %30 = arith.addf %26, %29 : vector<8x512xf32>
    %31 = vector.extract_strided_slice %25 {offsets = [0, 0], sizes = [8, 512], strides = [1, 1]} : vector<72x512xf32> to vector<8x512xf32>
    %c17_i32 = arith.constant 17 : i32
    %32 = tpu.dynamic_rotate %31 by %c17_i32 dim 1 : vector<8x512xf32>, i32 -> vector<8x512xf32>
    %c0_26 = arith.constant 0 : index
    %c0_27 = arith.constant 0 : index
    %c0_28 = arith.constant 0 : index
    %33 = vector.load %arg6[%c0_26, %c0_27, %c0_28] : memref<9x8x512xf32, #tpu.memory_space<vmem>>, vector<1x8x512xf32>
    %34 = vector.shape_cast %33 : vector<1x8x512xf32> to vector<8x512xf32>
    %35 = arith.mulf %32, %34 : vector<8x512xf32>
    %36 = arith.addf %30, %35 : vector<8x512xf32>
    %37 = vector.extract_strided_slice %25 {offsets = [8, 0], sizes = [8, 512], strides = [1, 1]} : vector<72x512xf32> to vector<8x512xf32>
    %c16_i32 = arith.constant 16 : i32
    %38 = tpu.dynamic_rotate %37 by %c16_i32 dim 1 : vector<8x512xf32>, i32 -> vector<8x512xf32>
    %c1_29 = arith.constant 1 : index
    %c0_30 = arith.constant 0 : index
    %c0_31 = arith.constant 0 : index
    %39 = vector.load %arg6[%c1_29, %c0_30, %c0_31] : memref<9x8x512xf32, #tpu.memory_space<vmem>>, vector<1x8x512xf32>
    %40 = vector.shape_cast %39 : vector<1x8x512xf32> to vector<8x512xf32>
    %41 = arith.mulf %38, %40 : vector<8x512xf32>
    %42 = arith.addf %36, %41 : vector<8x512xf32>
    %43 = vector.extract_strided_slice %25 {offsets = [16, 0], sizes = [8, 512], strides = [1, 1]} : vector<72x512xf32> to vector<8x512xf32>
    %c15_i32 = arith.constant 15 : i32
    %44 = tpu.dynamic_rotate %43 by %c15_i32 dim 1 : vector<8x512xf32>, i32 -> vector<8x512xf32>
    %c2 = arith.constant 2 : index
    %c0_32 = arith.constant 0 : index
    %c0_33 = arith.constant 0 : index
    %45 = vector.load %arg6[%c2, %c0_32, %c0_33] : memref<9x8x512xf32, #tpu.memory_space<vmem>>, vector<1x8x512xf32>
    %46 = vector.shape_cast %45 : vector<1x8x512xf32> to vector<8x512xf32>
    %47 = arith.mulf %44, %46 : vector<8x512xf32>
    %48 = arith.addf %42, %47 : vector<8x512xf32>
    %49 = vector.extract_strided_slice %25 {offsets = [24, 0], sizes = [8, 512], strides = [1, 1]} : vector<72x512xf32> to vector<8x512xf32>
    %c1_i32 = arith.constant 1 : i32
    %50 = tpu.dynamic_rotate %49 by %c1_i32 dim 1 : vector<8x512xf32>, i32 -> vector<8x512xf32>
    %c3 = arith.constant 3 : index
    %c0_34 = arith.constant 0 : index
    %c0_35 = arith.constant 0 : index
    %51 = vector.load %arg6[%c3, %c0_34, %c0_35] : memref<9x8x512xf32, #tpu.memory_space<vmem>>, vector<1x8x512xf32>
    %52 = vector.shape_cast %51 : vector<1x8x512xf32> to vector<8x512xf32>
    %53 = arith.mulf %50, %52 : vector<8x512xf32>
    %54 = arith.addf %48, %53 : vector<8x512xf32>
    %55 = vector.extract_strided_slice %25 {offsets = [40, 0], sizes = [8, 512], strides = [1, 1]} : vector<72x512xf32> to vector<8x512xf32>
    %c511_i32 = arith.constant 511 : i32
    %56 = tpu.dynamic_rotate %55 by %c511_i32 dim 1 : vector<8x512xf32>, i32 -> vector<8x512xf32>
    %c5 = arith.constant 5 : index
    %c0_36 = arith.constant 0 : index
    %c0_37 = arith.constant 0 : index
    %57 = vector.load %arg6[%c5, %c0_36, %c0_37] : memref<9x8x512xf32, #tpu.memory_space<vmem>>, vector<1x8x512xf32>
    %58 = vector.shape_cast %57 : vector<1x8x512xf32> to vector<8x512xf32>
    %59 = arith.mulf %56, %58 : vector<8x512xf32>
    %60 = arith.addf %54, %59 : vector<8x512xf32>
    %61 = vector.extract_strided_slice %25 {offsets = [48, 0], sizes = [8, 512], strides = [1, 1]} : vector<72x512xf32> to vector<8x512xf32>
    %c497_i32 = arith.constant 497 : i32
    %62 = tpu.dynamic_rotate %61 by %c497_i32 dim 1 : vector<8x512xf32>, i32 -> vector<8x512xf32>
    %c6 = arith.constant 6 : index
    %c0_38 = arith.constant 0 : index
    %c0_39 = arith.constant 0 : index
    %63 = vector.load %arg6[%c6, %c0_38, %c0_39] : memref<9x8x512xf32, #tpu.memory_space<vmem>>, vector<1x8x512xf32>
    %64 = vector.shape_cast %63 : vector<1x8x512xf32> to vector<8x512xf32>
    %65 = arith.mulf %62, %64 : vector<8x512xf32>
    %66 = arith.addf %60, %65 : vector<8x512xf32>
    %67 = vector.extract_strided_slice %25 {offsets = [56, 0], sizes = [8, 512], strides = [1, 1]} : vector<72x512xf32> to vector<8x512xf32>
    %c496_i32 = arith.constant 496 : i32
    %68 = tpu.dynamic_rotate %67 by %c496_i32 dim 1 : vector<8x512xf32>, i32 -> vector<8x512xf32>
    %c7 = arith.constant 7 : index
    %c0_40 = arith.constant 0 : index
    %c0_41 = arith.constant 0 : index
    %69 = vector.load %arg6[%c7, %c0_40, %c0_41] : memref<9x8x512xf32, #tpu.memory_space<vmem>>, vector<1x8x512xf32>
    %70 = vector.shape_cast %69 : vector<1x8x512xf32> to vector<8x512xf32>
    %71 = arith.mulf %68, %70 : vector<8x512xf32>
    %72 = arith.addf %66, %71 : vector<8x512xf32>
    %73 = vector.extract_strided_slice %25 {offsets = [64, 0], sizes = [8, 512], strides = [1, 1]} : vector<72x512xf32> to vector<8x512xf32>
    %c495_i32 = arith.constant 495 : i32
    %74 = tpu.dynamic_rotate %73 by %c495_i32 dim 1 : vector<8x512xf32>, i32 -> vector<8x512xf32>
    %c8 = arith.constant 8 : index
    %c0_42 = arith.constant 0 : index
    %c0_43 = arith.constant 0 : index
    %75 = vector.load %arg6[%c8, %c0_42, %c0_43] : memref<9x8x512xf32, #tpu.memory_space<vmem>>, vector<1x8x512xf32>
    %76 = vector.shape_cast %75 : vector<1x8x512xf32> to vector<8x512xf32>
    %77 = arith.mulf %74, %76 : vector<8x512xf32>
    %78 = arith.addf %72, %77 : vector<8x512xf32>
    %c8_44 = arith.constant 8 : index
    %c0_45 = arith.constant 0 : index
    %79 = vector.load %arg9[%c8_44, %c0_45] : memref<40x512xf32, #tpu.memory_space<vmem>>, vector<8x512xf32>
    tpu.vector_store %arg9[%c8_44, %c0_45], %78 {strides = array<i32>} : memref<40x512xf32, #tpu.memory_space<vmem>>, vector<8x512xf32>,
    %c0_46 = arith.constant 0 : index
    %c0_47 = arith.constant 0 : index
    %80 = vector.load %arg9[%c0_46, %c0_47] : memref<40x512xf32, #tpu.memory_space<vmem>>, vector<40x512xf32>
    %c1_48 = arith.constant 1 : index
    %c0_49 = arith.constant 0 : index
    %c0_50 = arith.constant 0 : index
    %81 = vector.load %arg2[%c1_48, %c0_49, %c0_50] : memref<5x40x1xf32, #tpu.memory_space<vmem>>, vector<1x40x1xf32>
    %82 = vector.shape_cast %81 : vector<1x40x1xf32> to vector<40x1xf32>
    %83 = vector.broadcast %82 : vector<40x1xf32> to vector<40x512xf32>
    %84 = arith.mulf %80, %83 : vector<40x512xf32>
    %c1_51 = arith.constant 1 : index
    %c0_52 = arith.constant 0 : index
    %c0_53 = arith.constant 0 : index
    %85 = vector.load %arg3[%c1_51, %c0_52, %c0_53] : memref<5x40x1xf32, #tpu.memory_space<vmem>>, vector<1x40x1xf32>
    %86 = vector.shape_cast %85 : vector<1x40x1xf32> to vector<40x1xf32>
    %87 = vector.broadcast %86 : vector<40x1xf32> to vector<40x512xf32>
    %88 = arith.addf %84, %87 : vector<40x512xf32>
    %cst_54 = arith.constant 0.000000e+00 : f32
    %89 = vector.broadcast %cst_54 : f32 to vector<40x512xf32>
    %90 = arith.cmpf ogt, %88, %89 : vector<40x512xf32>
    %c1_55 = arith.constant 1 : index
    %91 = memref.load %arg7[%c1_55] : memref<6xf32, #tpu.memory_space<smem>>
    %92 = vector.broadcast %91 : f32 to vector<40x512xf32>
    %93 = arith.mulf %92, %88 : vector<40x512xf32>
    %94 = arith.select %90, %88, %93 : vector<40x512xi1>, vector<40x512xf32>
    %c1_56 = arith.constant 1 : index
    %c0_57 = arith.constant 0 : index
    %c0_58 = arith.constant 0 : index
    %95 = vector.load %arg4[%c1_56, %c0_57, %c0_58] : memref<5x72x40xf32, #tpu.memory_space<vmem>>, vector<1x72x40xf32>
    %96 = vector.shape_cast %95 : vector<1x72x40xf32> to vector<72x40xf32>
    %cst_59 = arith.constant dense<0.000000e+00> : vector<72x512xf32>
    %97 = tpu.matmul %96, %94, %cst_59 {dimension_numbers = #tpu.dot_dimension_numbers<[1], [0], [0], [1], [0, 0, 1, 1], [], []>} : vector<72x40xf32>, vector<40x512xf32>, vector<72x512xf32> -> vector<72x512xf32>
    %98 = vector.extract_strided_slice %97 {offsets = [32, 0], sizes = [8, 512], strides = [1, 1]} : vector<72x512xf32> to vector<8x512xf32>
    %c1_60 = arith.constant 1 : index
    %c0_61 = arith.constant 0 : index
    %c0_62 = arith.constant 0 : index
    %99 = vector.load %arg5[%c1_60, %c0_61, %c0_62] : memref<5x8x1xf32, #tpu.memory_space<vmem>>, vector<1x8x1xf32>
    %100 = vector.shape_cast %99 : vector<1x8x1xf32> to vector<8x1xf32>
    %101 = vector.broadcast %100 : vector<8x1xf32> to vector<8x512xf32>
    %102 = arith.addf %98, %101 : vector<8x512xf32>
    %103 = vector.extract_strided_slice %97 {offsets = [0, 0], sizes = [8, 512], strides = [1, 1]} : vector<72x512xf32> to vector<8x512xf32>
    %c17_i32_63 = arith.constant 17 : i32
    %104 = tpu.dynamic_rotate %103 by %c17_i32_63 dim 1 : vector<8x512xf32>, i32 -> vector<8x512xf32>
    %c0_64 = arith.constant 0 : index
    %c0_65 = arith.constant 0 : index
    %c0_66 = arith.constant 0 : index
    %105 = vector.load %arg6[%c0_64, %c0_65, %c0_66] : memref<9x8x512xf32, #tpu.memory_space<vmem>>, vector<1x8x512xf32>
    %106 = vector.shape_cast %105 : vector<1x8x512xf32> to vector<8x512xf32>
    %107 = arith.mulf %104, %106 : vector<8x512xf32>
    %108 = arith.addf %102, %107 : vector<8x512xf32>
    %109 = vector.extract_strided_slice %97 {offsets = [8, 0], sizes = [8, 512], strides = [1, 1]} : vector<72x512xf32> to vector<8x512xf32>
    %c16_i32_67 = arith.constant 16 : i32
    %110 = tpu.dynamic_rotate %109 by %c16_i32_67 dim 1 : vector<8x512xf32>, i32 -> vector<8x512xf32>
    %c1_68 = arith.constant 1 : index
    %c0_69 = arith.constant 0 : index
    %c0_70 = arith.constant 0 : index
    %111 = vector.load %arg6[%c1_68, %c0_69, %c0_70] : memref<9x8x512xf32, #tpu.memory_space<vmem>>, vector<1x8x512xf32>
    %112 = vector.shape_cast %111 : vector<1x8x512xf32> to vector<8x512xf32>
    %113 = arith.mulf %110, %112 : vector<8x512xf32>
    %114 = arith.addf %108, %113 : vector<8x512xf32>
    %115 = vector.extract_strided_slice %97 {offsets = [16, 0], sizes = [8, 512], strides = [1, 1]} : vector<72x512xf32> to vector<8x512xf32>
    %c15_i32_71 = arith.constant 15 : i32
    %116 = tpu.dynamic_rotate %115 by %c15_i32_71 dim 1 : vector<8x512xf32>, i32 -> vector<8x512xf32>
    %c2_72 = arith.constant 2 : index
    %c0_73 = arith.constant 0 : index
    %c0_74 = arith.constant 0 : index
    %117 = vector.load %arg6[%c2_72, %c0_73, %c0_74] : memref<9x8x512xf32, #tpu.memory_space<vmem>>, vector<1x8x512xf32>
    %118 = vector.shape_cast %117 : vector<1x8x512xf32> to vector<8x512xf32>
    %119 = arith.mulf %116, %118 : vector<8x512xf32>
    %120 = arith.addf %114, %119 : vector<8x512xf32>
    %121 = vector.extract_strided_slice %97 {offsets = [24, 0], sizes = [8, 512], strides = [1, 1]} : vector<72x512xf32> to vector<8x512xf32>
    %c1_i32_75 = arith.constant 1 : i32
    %122 = tpu.dynamic_rotate %121 by %c1_i32_75 dim 1 : vector<8x512xf32>, i32 -> vector<8x512xf32>
    %c3_76 = arith.constant 3 : index
    %c0_77 = arith.constant 0 : index
    %c0_78 = arith.constant 0 : index
    %123 = vector.load %arg6[%c3_76, %c0_77, %c0_78] : memref<9x8x512xf32, #tpu.memory_space<vmem>>, vector<1x8x512xf32>
    %124 = vector.shape_cast %123 : vector<1x8x512xf32> to vector<8x512xf32>
    %125 = arith.mulf %122, %124 : vector<8x512xf32>
    %126 = arith.addf %120, %125 : vector<8x512xf32>
    %127 = vector.extract_strided_slice %97 {offsets = [40, 0], sizes = [8, 512], strides = [1, 1]} : vector<72x512xf32> to vector<8x512xf32>
    %c511_i32_79 = arith.constant 511 : i32
    %128 = tpu.dynamic_rotate %127 by %c511_i32_79 dim 1 : vector<8x512xf32>, i32 -> vector<8x512xf32>
    %c5_80 = arith.constant 5 : index
    %c0_81 = arith.constant 0 : index
    %c0_82 = arith.constant 0 : index
    %129 = vector.load %arg6[%c5_80, %c0_81, %c0_82] : memref<9x8x512xf32, #tpu.memory_space<vmem>>, vector<1x8x512xf32>
    %130 = vector.shape_cast %129 : vector<1x8x512xf32> to vector<8x512xf32>
    %131 = arith.mulf %128, %130 : vector<8x512xf32>
    %132 = arith.addf %126, %131 : vector<8x512xf32>
    %133 = vector.extract_strided_slice %97 {offsets = [48, 0], sizes = [8, 512], strides = [1, 1]} : vector<72x512xf32> to vector<8x512xf32>
    %c497_i32_83 = arith.constant 497 : i32
    %134 = tpu.dynamic_rotate %133 by %c497_i32_83 dim 1 : vector<8x512xf32>, i32 -> vector<8x512xf32>
    %c6_84 = arith.constant 6 : index
    %c0_85 = arith.constant 0 : index
    %c0_86 = arith.constant 0 : index
    %135 = vector.load %arg6[%c6_84, %c0_85, %c0_86] : memref<9x8x512xf32, #tpu.memory_space<vmem>>, vector<1x8x512xf32>
    %136 = vector.shape_cast %135 : vector<1x8x512xf32> to vector<8x512xf32>
    %137 = arith.mulf %134, %136 : vector<8x512xf32>
    %138 = arith.addf %132, %137 : vector<8x512xf32>
    %139 = vector.extract_strided_slice %97 {offsets = [56, 0], sizes = [8, 512], strides = [1, 1]} : vector<72x512xf32> to vector<8x512xf32>
    %c496_i32_87 = arith.constant 496 : i32
    %140 = tpu.dynamic_rotate %139 by %c496_i32_87 dim 1 : vector<8x512xf32>, i32 -> vector<8x512xf32>
    %c7_88 = arith.constant 7 : index
    %c0_89 = arith.constant 0 : index
    %c0_90 = arith.constant 0 : index
    %141 = vector.load %arg6[%c7_88, %c0_89, %c0_90] : memref<9x8x512xf32, #tpu.memory_space<vmem>>, vector<1x8x512xf32>
    %142 = vector.shape_cast %141 : vector<1x8x512xf32> to vector<8x512xf32>
    %143 = arith.mulf %140, %142 : vector<8x512xf32>
    %144 = arith.addf %138, %143 : vector<8x512xf32>
    %145 = vector.extract_strided_slice %97 {offsets = [64, 0], sizes = [8, 512], strides = [1, 1]} : vector<72x512xf32> to vector<8x512xf32>
    %c495_i32_91 = arith.constant 495 : i32
    %146 = tpu.dynamic_rotate %145 by %c495_i32_91 dim 1 : vector<8x512xf32>, i32 -> vector<8x512xf32>
    %c8_92 = arith.constant 8 : index
    %c0_93 = arith.constant 0 : index
    %c0_94 = arith.constant 0 : index
    %147 = vector.load %arg6[%c8_92, %c0_93, %c0_94] : memref<9x8x512xf32, #tpu.memory_space<vmem>>, vector<1x8x512xf32>
    %148 = vector.shape_cast %147 : vector<1x8x512xf32> to vector<8x512xf32>
    %149 = arith.mulf %146, %148 : vector<8x512xf32>
    %150 = arith.addf %144, %149 : vector<8x512xf32>
    %c16 = arith.constant 16 : index
    %c0_95 = arith.constant 0 : index
    %151 = vector.load %arg9[%c16, %c0_95] : memref<40x512xf32, #tpu.memory_space<vmem>>, vector<8x512xf32>
    tpu.vector_store %arg9[%c16, %c0_95], %150 {strides = array<i32>} : memref<40x512xf32, #tpu.memory_space<vmem>>, vector<8x512xf32>,
    %c0_96 = arith.constant 0 : index
    %c0_97 = arith.constant 0 : index
    %152 = vector.load %arg9[%c0_96, %c0_97] : memref<40x512xf32, #tpu.memory_space<vmem>>, vector<40x512xf32>
    %c2_98 = arith.constant 2 : index
    %c0_99 = arith.constant 0 : index
    %c0_100 = arith.constant 0 : index
    %153 = vector.load %arg2[%c2_98, %c0_99, %c0_100] : memref<5x40x1xf32, #tpu.memory_space<vmem>>, vector<1x40x1xf32>
    %154 = vector.shape_cast %153 : vector<1x40x1xf32> to vector<40x1xf32>
    %155 = vector.broadcast %154 : vector<40x1xf32> to vector<40x512xf32>
    %156 = arith.mulf %152, %155 : vector<40x512xf32>
    %c2_101 = arith.constant 2 : index
    %c0_102 = arith.constant 0 : index
    %c0_103 = arith.constant 0 : index
    %157 = vector.load %arg3[%c2_101, %c0_102, %c0_103] : memref<5x40x1xf32, #tpu.memory_space<vmem>>, vector<1x40x1xf32>
    %158 = vector.shape_cast %157 : vector<1x40x1xf32> to vector<40x1xf32>
    %159 = vector.broadcast %158 : vector<40x1xf32> to vector<40x512xf32>
    %160 = arith.addf %156, %159 : vector<40x512xf32>
    %cst_104 = arith.constant 0.000000e+00 : f32
    %161 = vector.broadcast %cst_104 : f32 to vector<40x512xf32>
    %162 = arith.cmpf ogt, %160, %161 : vector<40x512xf32>
    %c2_105 = arith.constant 2 : index
    %163 = memref.load %arg7[%c2_105] : memref<6xf32, #tpu.memory_space<smem>>
    %164 = vector.broadcast %163 : f32 to vector<40x512xf32>
    %165 = arith.mulf %164, %160 : vector<40x512xf32>
    %166 = arith.select %162, %160, %165 : vector<40x512xi1>, vector<40x512xf32>
    %c2_106 = arith.constant 2 : index
    %c0_107 = arith.constant 0 : index
    %c0_108 = arith.constant 0 : index
    %167 = vector.load %arg4[%c2_106, %c0_107, %c0_108] : memref<5x72x40xf32, #tpu.memory_space<vmem>>, vector<1x72x40xf32>
    %168 = vector.shape_cast %167 : vector<1x72x40xf32> to vector<72x40xf32>
    %cst_109 = arith.constant dense<0.000000e+00> : vector<72x512xf32>
    %169 = tpu.matmul %168, %166, %cst_109 {dimension_numbers = #tpu.dot_dimension_numbers<[1], [0], [0], [1], [0, 0, 1, 1], [], []>} : vector<72x40xf32>, vector<40x512xf32>, vector<72x512xf32> -> vector<72x512xf32>
    %170 = vector.extract_strided_slice %169 {offsets = [32, 0], sizes = [8, 512], strides = [1, 1]} : vector<72x512xf32> to vector<8x512xf32>
    %c2_110 = arith.constant 2 : index
    %c0_111 = arith.constant 0 : index
    %c0_112 = arith.constant 0 : index
    %171 = vector.load %arg5[%c2_110, %c0_111, %c0_112] : memref<5x8x1xf32, #tpu.memory_space<vmem>>, vector<1x8x1xf32>
    %172 = vector.shape_cast %171 : vector<1x8x1xf32> to vector<8x1xf32>
    %173 = vector.broadcast %172 : vector<8x1xf32> to vector<8x512xf32>
    %174 = arith.addf %170, %173 : vector<8x512xf32>
    %175 = vector.extract_strided_slice %169 {offsets = [0, 0], sizes = [8, 512], strides = [1, 1]} : vector<72x512xf32> to vector<8x512xf32>
    %c17_i32_113 = arith.constant 17 : i32
    %176 = tpu.dynamic_rotate %175 by %c17_i32_113 dim 1 : vector<8x512xf32>, i32 -> vector<8x512xf32>
    %c0_114 = arith.constant 0 : index
    %c0_115 = arith.constant 0 : index
    %c0_116 = arith.constant 0 : index
    %177 = vector.load %arg6[%c0_114, %c0_115, %c0_116] : memref<9x8x512xf32, #tpu.memory_space<vmem>>, vector<1x8x512xf32>
    %178 = vector.shape_cast %177 : vector<1x8x512xf32> to vector<8x512xf32>
    %179 = arith.mulf %176, %178 : vector<8x512xf32>
    %180 = arith.addf %174, %179 : vector<8x512xf32>
    %181 = vector.extract_strided_slice %169 {offsets = [8, 0], sizes = [8, 512], strides = [1, 1]} : vector<72x512xf32> to vector<8x512xf32>
    %c16_i32_117 = arith.constant 16 : i32
    %182 = tpu.dynamic_rotate %181 by %c16_i32_117 dim 1 : vector<8x512xf32>, i32 -> vector<8x512xf32>
    %c1_118 = arith.constant 1 : index
    %c0_119 = arith.constant 0 : index
    %c0_120 = arith.constant 0 : index
    %183 = vector.load %arg6[%c1_118, %c0_119, %c0_120] : memref<9x8x512xf32, #tpu.memory_space<vmem>>, vector<1x8x512xf32>
    %184 = vector.shape_cast %183 : vector<1x8x512xf32> to vector<8x512xf32>
    %185 = arith.mulf %182, %184 : vector<8x512xf32>
    %186 = arith.addf %180, %185 : vector<8x512xf32>
    %187 = vector.extract_strided_slice %169 {offsets = [16, 0], sizes = [8, 512], strides = [1, 1]} : vector<72x512xf32> to vector<8x512xf32>
    %c15_i32_121 = arith.constant 15 : i32
    %188 = tpu.dynamic_rotate %187 by %c15_i32_121 dim 1 : vector<8x512xf32>, i32 -> vector<8x512xf32>
    %c2_122 = arith.constant 2 : index
    %c0_123 = arith.constant 0 : index
    %c0_124 = arith.constant 0 : index
    %189 = vector.load %arg6[%c2_122, %c0_123, %c0_124] : memref<9x8x512xf32, #tpu.memory_space<vmem>>, vector<1x8x512xf32>
    %190 = vector.shape_cast %189 : vector<1x8x512xf32> to vector<8x512xf32>
    %191 = arith.mulf %188, %190 : vector<8x512xf32>
    %192 = arith.addf %186, %191 : vector<8x512xf32>
    %193 = vector.extract_strided_slice %169 {offsets = [24, 0], sizes = [8, 512], strides = [1, 1]} : vector<72x512xf32> to vector<8x512xf32>
    %c1_i32_125 = arith.constant 1 : i32
    %194 = tpu.dynamic_rotate %193 by %c1_i32_125 dim 1 : vector<8x512xf32>, i32 -> vector<8x512xf32>
    %c3_126 = arith.constant 3 : index
    %c0_127 = arith.constant 0 : index
    %c0_128 = arith.constant 0 : index
    %195 = vector.load %arg6[%c3_126, %c0_127, %c0_128] : memref<9x8x512xf32, #tpu.memory_space<vmem>>, vector<1x8x512xf32>
    %196 = vector.shape_cast %195 : vector<1x8x512xf32> to vector<8x512xf32>
    %197 = arith.mulf %194, %196 : vector<8x512xf32>
    %198 = arith.addf %192, %197 : vector<8x512xf32>
    %199 = vector.extract_strided_slice %169 {offsets = [40, 0], sizes = [8, 512], strides = [1, 1]} : vector<72x512xf32> to vector<8x512xf32>
    %c511_i32_129 = arith.constant 511 : i32
    %200 = tpu.dynamic_rotate %199 by %c511_i32_129 dim 1 : vector<8x512xf32>, i32 -> vector<8x512xf32>
    %c5_130 = arith.constant 5 : index
    %c0_131 = arith.constant 0 : index
    %c0_132 = arith.constant 0 : index
    %201 = vector.load %arg6[%c5_130, %c0_131, %c0_132] : memref<9x8x512xf32, #tpu.memory_space<vmem>>, vector<1x8x512xf32>
    %202 = vector.shape_cast %201 : vector<1x8x512xf32> to vector<8x512xf32>
    %203 = arith.mulf %200, %202 : vector<8x512xf32>
    %204 = arith.addf %198, %203 : vector<8x512xf32>
    %205 = vector.extract_strided_slice %169 {offsets = [48, 0], sizes = [8, 512], strides = [1, 1]} : vector<72x512xf32> to vector<8x512xf32>
    %c497_i32_133 = arith.constant 497 : i32
    %206 = tpu.dynamic_rotate %205 by %c497_i32_133 dim 1 : vector<8x512xf32>, i32 -> vector<8x512xf32>
    %c6_134 = arith.constant 6 : index
    %c0_135 = arith.constant 0 : index
    %c0_136 = arith.constant 0 : index
    %207 = vector.load %arg6[%c6_134, %c0_135, %c0_136] : memref<9x8x512xf32, #tpu.memory_space<vmem>>, vector<1x8x512xf32>
    %208 = vector.shape_cast %207 : vector<1x8x512xf32> to vector<8x512xf32>
    %209 = arith.mulf %206, %208 : vector<8x512xf32>
    %210 = arith.addf %204, %209 : vector<8x512xf32>
    %211 = vector.extract_strided_slice %169 {offsets = [56, 0], sizes = [8, 512], strides = [1, 1]} : vector<72x512xf32> to vector<8x512xf32>
    %c496_i32_137 = arith.constant 496 : i32
    %212 = tpu.dynamic_rotate %211 by %c496_i32_137 dim 1 : vector<8x512xf32>, i32 -> vector<8x512xf32>
    %c7_138 = arith.constant 7 : index
    %c0_139 = arith.constant 0 : index
    %c0_140 = arith.constant 0 : index
    %213 = vector.load %arg6[%c7_138, %c0_139, %c0_140] : memref<9x8x512xf32, #tpu.memory_space<vmem>>, vector<1x8x512xf32>
    %214 = vector.shape_cast %213 : vector<1x8x512xf32> to vector<8x512xf32>
    %215 = arith.mulf %212, %214 : vector<8x512xf32>
    %216 = arith.addf %210, %215 : vector<8x512xf32>
    %217 = vector.extract_strided_slice %169 {offsets = [64, 0], sizes = [8, 512], strides = [1, 1]} : vector<72x512xf32> to vector<8x512xf32>
    %c495_i32_141 = arith.constant 495 : i32
    %218 = tpu.dynamic_rotate %217 by %c495_i32_141 dim 1 : vector<8x512xf32>, i32 -> vector<8x512xf32>
    %c8_142 = arith.constant 8 : index
    %c0_143 = arith.constant 0 : index
    %c0_144 = arith.constant 0 : index
    %219 = vector.load %arg6[%c8_142, %c0_143, %c0_144] : memref<9x8x512xf32, #tpu.memory_space<vmem>>, vector<1x8x512xf32>
    %220 = vector.shape_cast %219 : vector<1x8x512xf32> to vector<8x512xf32>
    %221 = arith.mulf %218, %220 : vector<8x512xf32>
    %222 = arith.addf %216, %221 : vector<8x512xf32>
    %c24 = arith.constant 24 : index
    %c0_145 = arith.constant 0 : index
    %223 = vector.load %arg9[%c24, %c0_145] : memref<40x512xf32, #tpu.memory_space<vmem>>, vector<8x512xf32>
    tpu.vector_store %arg9[%c24, %c0_145], %222 {strides = array<i32>} : memref<40x512xf32, #tpu.memory_space<vmem>>, vector<8x512xf32>,
    %c0_146 = arith.constant 0 : index
    %c0_147 = arith.constant 0 : index
    %224 = vector.load %arg9[%c0_146, %c0_147] : memref<40x512xf32, #tpu.memory_space<vmem>>, vector<40x512xf32>
    %c3_148 = arith.constant 3 : index
    %c0_149 = arith.constant 0 : index
    %c0_150 = arith.constant 0 : index
    %225 = vector.load %arg2[%c3_148, %c0_149, %c0_150] : memref<5x40x1xf32, #tpu.memory_space<vmem>>, vector<1x40x1xf32>
    %226 = vector.shape_cast %225 : vector<1x40x1xf32> to vector<40x1xf32>
    %227 = vector.broadcast %226 : vector<40x1xf32> to vector<40x512xf32>
    %228 = arith.mulf %224, %227 : vector<40x512xf32>
    %c3_151 = arith.constant 3 : index
    %c0_152 = arith.constant 0 : index
    %c0_153 = arith.constant 0 : index
    %229 = vector.load %arg3[%c3_151, %c0_152, %c0_153] : memref<5x40x1xf32, #tpu.memory_space<vmem>>, vector<1x40x1xf32>
    %230 = vector.shape_cast %229 : vector<1x40x1xf32> to vector<40x1xf32>
    %231 = vector.broadcast %230 : vector<40x1xf32> to vector<40x512xf32>
    %232 = arith.addf %228, %231 : vector<40x512xf32>
    %cst_154 = arith.constant 0.000000e+00 : f32
    %233 = vector.broadcast %cst_154 : f32 to vector<40x512xf32>
    %234 = arith.cmpf ogt, %232, %233 : vector<40x512xf32>
    %c3_155 = arith.constant 3 : index
    %235 = memref.load %arg7[%c3_155] : memref<6xf32, #tpu.memory_space<smem>>
    %236 = vector.broadcast %235 : f32 to vector<40x512xf32>
    %237 = arith.mulf %236, %232 : vector<40x512xf32>
    %238 = arith.select %234, %232, %237 : vector<40x512xi1>, vector<40x512xf32>
    %c3_156 = arith.constant 3 : index
    %c0_157 = arith.constant 0 : index
    %c0_158 = arith.constant 0 : index
    %239 = vector.load %arg4[%c3_156, %c0_157, %c0_158] : memref<5x72x40xf32, #tpu.memory_space<vmem>>, vector<1x72x40xf32>
    %240 = vector.shape_cast %239 : vector<1x72x40xf32> to vector<72x40xf32>
    %cst_159 = arith.constant dense<0.000000e+00> : vector<72x512xf32>
    %241 = tpu.matmul %240, %238, %cst_159 {dimension_numbers = #tpu.dot_dimension_numbers<[1], [0], [0], [1], [0, 0, 1, 1], [], []>} : vector<72x40xf32>, vector<40x512xf32>, vector<72x512xf32> -> vector<72x512xf32>
    %242 = vector.extract_strided_slice %241 {offsets = [32, 0], sizes = [8, 512], strides = [1, 1]} : vector<72x512xf32> to vector<8x512xf32>
    %c3_160 = arith.constant 3 : index
    %c0_161 = arith.constant 0 : index
    %c0_162 = arith.constant 0 : index
    %243 = vector.load %arg5[%c3_160, %c0_161, %c0_162] : memref<5x8x1xf32, #tpu.memory_space<vmem>>, vector<1x8x1xf32>
    %244 = vector.shape_cast %243 : vector<1x8x1xf32> to vector<8x1xf32>
    %245 = vector.broadcast %244 : vector<8x1xf32> to vector<8x512xf32>
    %246 = arith.addf %242, %245 : vector<8x512xf32>
    %247 = vector.extract_strided_slice %241 {offsets = [0, 0], sizes = [8, 512], strides = [1, 1]} : vector<72x512xf32> to vector<8x512xf32>
    %c17_i32_163 = arith.constant 17 : i32
    %248 = tpu.dynamic_rotate %247 by %c17_i32_163 dim 1 : vector<8x512xf32>, i32 -> vector<8x512xf32>
    %c0_164 = arith.constant 0 : index
    %c0_165 = arith.constant 0 : index
    %c0_166 = arith.constant 0 : index
    %249 = vector.load %arg6[%c0_164, %c0_165, %c0_166] : memref<9x8x512xf32, #tpu.memory_space<vmem>>, vector<1x8x512xf32>
    %250 = vector.shape_cast %249 : vector<1x8x512xf32> to vector<8x512xf32>
    %251 = arith.mulf %248, %250 : vector<8x512xf32>
    %252 = arith.addf %246, %251 : vector<8x512xf32>
    %253 = vector.extract_strided_slice %241 {offsets = [8, 0], sizes = [8, 512], strides = [1, 1]} : vector<72x512xf32> to vector<8x512xf32>
    %c16_i32_167 = arith.constant 16 : i32
    %254 = tpu.dynamic_rotate %253 by %c16_i32_167 dim 1 : vector<8x512xf32>, i32 -> vector<8x512xf32>
    %c1_168 = arith.constant 1 : index
    %c0_169 = arith.constant 0 : index
    %c0_170 = arith.constant 0 : index
    %255 = vector.load %arg6[%c1_168, %c0_169, %c0_170] : memref<9x8x512xf32, #tpu.memory_space<vmem>>, vector<1x8x512xf32>
    %256 = vector.shape_cast %255 : vector<1x8x512xf32> to vector<8x512xf32>
    %257 = arith.mulf %254, %256 : vector<8x512xf32>
    %258 = arith.addf %252, %257 : vector<8x512xf32>
    %259 = vector.extract_strided_slice %241 {offsets = [16, 0], sizes = [8, 512], strides = [1, 1]} : vector<72x512xf32> to vector<8x512xf32>
    %c15_i32_171 = arith.constant 15 : i32
    %260 = tpu.dynamic_rotate %259 by %c15_i32_171 dim 1 : vector<8x512xf32>, i32 -> vector<8x512xf32>
    %c2_172 = arith.constant 2 : index
    %c0_173 = arith.constant 0 : index
    %c0_174 = arith.constant 0 : index
    %261 = vector.load %arg6[%c2_172, %c0_173, %c0_174] : memref<9x8x512xf32, #tpu.memory_space<vmem>>, vector<1x8x512xf32>
    %262 = vector.shape_cast %261 : vector<1x8x512xf32> to vector<8x512xf32>
    %263 = arith.mulf %260, %262 : vector<8x512xf32>
    %264 = arith.addf %258, %263 : vector<8x512xf32>
    %265 = vector.extract_strided_slice %241 {offsets = [24, 0], sizes = [8, 512], strides = [1, 1]} : vector<72x512xf32> to vector<8x512xf32>
    %c1_i32_175 = arith.constant 1 : i32
    %266 = tpu.dynamic_rotate %265 by %c1_i32_175 dim 1 : vector<8x512xf32>, i32 -> vector<8x512xf32>
    %c3_176 = arith.constant 3 : index
    %c0_177 = arith.constant 0 : index
    %c0_178 = arith.constant 0 : index
    %267 = vector.load %arg6[%c3_176, %c0_177, %c0_178] : memref<9x8x512xf32, #tpu.memory_space<vmem>>, vector<1x8x512xf32>
    %268 = vector.shape_cast %267 : vector<1x8x512xf32> to vector<8x512xf32>
    %269 = arith.mulf %266, %268 : vector<8x512xf32>
    %270 = arith.addf %264, %269 : vector<8x512xf32>
    %271 = vector.extract_strided_slice %241 {offsets = [40, 0], sizes = [8, 512], strides = [1, 1]} : vector<72x512xf32> to vector<8x512xf32>
    %c511_i32_179 = arith.constant 511 : i32
    %272 = tpu.dynamic_rotate %271 by %c511_i32_179 dim 1 : vector<8x512xf32>, i32 -> vector<8x512xf32>
    %c5_180 = arith.constant 5 : index
    %c0_181 = arith.constant 0 : index
    %c0_182 = arith.constant 0 : index
    %273 = vector.load %arg6[%c5_180, %c0_181, %c0_182] : memref<9x8x512xf32, #tpu.memory_space<vmem>>, vector<1x8x512xf32>
    %274 = vector.shape_cast %273 : vector<1x8x512xf32> to vector<8x512xf32>
    %275 = arith.mulf %272, %274 : vector<8x512xf32>
    %276 = arith.addf %270, %275 : vector<8x512xf32>
    %277 = vector.extract_strided_slice %241 {offsets = [48, 0], sizes = [8, 512], strides = [1, 1]} : vector<72x512xf32> to vector<8x512xf32>
    %c497_i32_183 = arith.constant 497 : i32
    %278 = tpu.dynamic_rotate %277 by %c497_i32_183 dim 1 : vector<8x512xf32>, i32 -> vector<8x512xf32>
    %c6_184 = arith.constant 6 : index
    %c0_185 = arith.constant 0 : index
    %c0_186 = arith.constant 0 : index
    %279 = vector.load %arg6[%c6_184, %c0_185, %c0_186] : memref<9x8x512xf32, #tpu.memory_space<vmem>>, vector<1x8x512xf32>
    %280 = vector.shape_cast %279 : vector<1x8x512xf32> to vector<8x512xf32>
    %281 = arith.mulf %278, %280 : vector<8x512xf32>
    %282 = arith.addf %276, %281 : vector<8x512xf32>
    %283 = vector.extract_strided_slice %241 {offsets = [56, 0], sizes = [8, 512], strides = [1, 1]} : vector<72x512xf32> to vector<8x512xf32>
    %c496_i32_187 = arith.constant 496 : i32
    %284 = tpu.dynamic_rotate %283 by %c496_i32_187 dim 1 : vector<8x512xf32>, i32 -> vector<8x512xf32>
    %c7_188 = arith.constant 7 : index
    %c0_189 = arith.constant 0 : index
    %c0_190 = arith.constant 0 : index
    %285 = vector.load %arg6[%c7_188, %c0_189, %c0_190] : memref<9x8x512xf32, #tpu.memory_space<vmem>>, vector<1x8x512xf32>
    %286 = vector.shape_cast %285 : vector<1x8x512xf32> to vector<8x512xf32>
    %287 = arith.mulf %284, %286 : vector<8x512xf32>
    %288 = arith.addf %282, %287 : vector<8x512xf32>
    %289 = vector.extract_strided_slice %241 {offsets = [64, 0], sizes = [8, 512], strides = [1, 1]} : vector<72x512xf32> to vector<8x512xf32>
    %c495_i32_191 = arith.constant 495 : i32
    %290 = tpu.dynamic_rotate %289 by %c495_i32_191 dim 1 : vector<8x512xf32>, i32 -> vector<8x512xf32>
    %c8_192 = arith.constant 8 : index
    %c0_193 = arith.constant 0 : index
    %c0_194 = arith.constant 0 : index
    %291 = vector.load %arg6[%c8_192, %c0_193, %c0_194] : memref<9x8x512xf32, #tpu.memory_space<vmem>>, vector<1x8x512xf32>
    %292 = vector.shape_cast %291 : vector<1x8x512xf32> to vector<8x512xf32>
    %293 = arith.mulf %290, %292 : vector<8x512xf32>
    %294 = arith.addf %288, %293 : vector<8x512xf32>
    %c32 = arith.constant 32 : index
    %c0_195 = arith.constant 0 : index
    %295 = vector.load %arg9[%c32, %c0_195] : memref<40x512xf32, #tpu.memory_space<vmem>>, vector<8x512xf32>
    tpu.vector_store %arg9[%c32, %c0_195], %294 {strides = array<i32>} : memref<40x512xf32, #tpu.memory_space<vmem>>, vector<8x512xf32>,
    %c0_196 = arith.constant 0 : index
    %c0_197 = arith.constant 0 : index
    %296 = vector.load %arg9[%c0_196, %c0_197] : memref<40x512xf32, #tpu.memory_space<vmem>>, vector<40x512xf32>
    %c4 = arith.constant 4 : index
    %c0_198 = arith.constant 0 : index
    %c0_199 = arith.constant 0 : index
    %297 = vector.load %arg2[%c4, %c0_198, %c0_199] : memref<5x40x1xf32, #tpu.memory_space<vmem>>, vector<1x40x1xf32>
    %298 = vector.shape_cast %297 : vector<1x40x1xf32> to vector<40x1xf32>
    %299 = vector.broadcast %298 : vector<40x1xf32> to vector<40x512xf32>
    %300 = arith.mulf %296, %299 : vector<40x512xf32>
    %c4_200 = arith.constant 4 : index
    %c0_201 = arith.constant 0 : index
    %c0_202 = arith.constant 0 : index
    %301 = vector.load %arg3[%c4_200, %c0_201, %c0_202] : memref<5x40x1xf32, #tpu.memory_space<vmem>>, vector<1x40x1xf32>
    %302 = vector.shape_cast %301 : vector<1x40x1xf32> to vector<40x1xf32>
    %303 = vector.broadcast %302 : vector<40x1xf32> to vector<40x512xf32>
    %304 = arith.addf %300, %303 : vector<40x512xf32>
    %cst_203 = arith.constant 0.000000e+00 : f32
    %305 = vector.broadcast %cst_203 : f32 to vector<40x512xf32>
    %306 = arith.cmpf ogt, %304, %305 : vector<40x512xf32>
    %c4_204 = arith.constant 4 : index
    %307 = memref.load %arg7[%c4_204] : memref<6xf32, #tpu.memory_space<smem>>
    %308 = vector.broadcast %307 : f32 to vector<40x512xf32>
    %309 = arith.mulf %308, %304 : vector<40x512xf32>
    %310 = arith.select %306, %304, %309 : vector<40x512xi1>, vector<40x512xf32>
    %c4_205 = arith.constant 4 : index
    %c0_206 = arith.constant 0 : index
    %c0_207 = arith.constant 0 : index
    %311 = vector.load %arg4[%c4_205, %c0_206, %c0_207] : memref<5x72x40xf32, #tpu.memory_space<vmem>>, vector<1x72x40xf32>
    %312 = vector.shape_cast %311 : vector<1x72x40xf32> to vector<72x40xf32>
    %cst_208 = arith.constant dense<0.000000e+00> : vector<72x512xf32>
    %313 = tpu.matmul %312, %310, %cst_208 {dimension_numbers = #tpu.dot_dimension_numbers<[1], [0], [0], [1], [0, 0, 1, 1], [], []>} : vector<72x40xf32>, vector<40x512xf32>, vector<72x512xf32> -> vector<72x512xf32>
    %314 = vector.extract_strided_slice %313 {offsets = [32, 0], sizes = [8, 512], strides = [1, 1]} : vector<72x512xf32> to vector<8x512xf32>
    %c4_209 = arith.constant 4 : index
    %c0_210 = arith.constant 0 : index
    %c0_211 = arith.constant 0 : index
    %315 = vector.load %arg5[%c4_209, %c0_210, %c0_211] : memref<5x8x1xf32, #tpu.memory_space<vmem>>, vector<1x8x1xf32>
    %316 = vector.shape_cast %315 : vector<1x8x1xf32> to vector<8x1xf32>
    %317 = vector.broadcast %316 : vector<8x1xf32> to vector<8x512xf32>
    %318 = arith.addf %314, %317 : vector<8x512xf32>
    %319 = vector.extract_strided_slice %313 {offsets = [0, 0], sizes = [8, 512], strides = [1, 1]} : vector<72x512xf32> to vector<8x512xf32>
    %c17_i32_212 = arith.constant 17 : i32
    %320 = tpu.dynamic_rotate %319 by %c17_i32_212 dim 1 : vector<8x512xf32>, i32 -> vector<8x512xf32>
    %c0_213 = arith.constant 0 : index
    %c0_214 = arith.constant 0 : index
    %c0_215 = arith.constant 0 : index
    %321 = vector.load %arg6[%c0_213, %c0_214, %c0_215] : memref<9x8x512xf32, #tpu.memory_space<vmem>>, vector<1x8x512xf32>
    %322 = vector.shape_cast %321 : vector<1x8x512xf32> to vector<8x512xf32>
    %323 = arith.mulf %320, %322 : vector<8x512xf32>
    %324 = arith.addf %318, %323 : vector<8x512xf32>
    %325 = vector.extract_strided_slice %313 {offsets = [8, 0], sizes = [8, 512], strides = [1, 1]} : vector<72x512xf32> to vector<8x512xf32>
    %c16_i32_216 = arith.constant 16 : i32
    %326 = tpu.dynamic_rotate %325 by %c16_i32_216 dim 1 : vector<8x512xf32>, i32 -> vector<8x512xf32>
    %c1_217 = arith.constant 1 : index
    %c0_218 = arith.constant 0 : index
    %c0_219 = arith.constant 0 : index
    %327 = vector.load %arg6[%c1_217, %c0_218, %c0_219] : memref<9x8x512xf32, #tpu.memory_space<vmem>>, vector<1x8x512xf32>
    %328 = vector.shape_cast %327 : vector<1x8x512xf32> to vector<8x512xf32>
    %329 = arith.mulf %326, %328 : vector<8x512xf32>
    %330 = arith.addf %324, %329 : vector<8x512xf32>
    %331 = vector.extract_strided_slice %313 {offsets = [16, 0], sizes = [8, 512], strides = [1, 1]} : vector<72x512xf32> to vector<8x512xf32>
    %c15_i32_220 = arith.constant 15 : i32
    %332 = tpu.dynamic_rotate %331 by %c15_i32_220 dim 1 : vector<8x512xf32>, i32 -> vector<8x512xf32>
    %c2_221 = arith.constant 2 : index
    %c0_222 = arith.constant 0 : index
    %c0_223 = arith.constant 0 : index
    %333 = vector.load %arg6[%c2_221, %c0_222, %c0_223] : memref<9x8x512xf32, #tpu.memory_space<vmem>>, vector<1x8x512xf32>
    %334 = vector.shape_cast %333 : vector<1x8x512xf32> to vector<8x512xf32>
    %335 = arith.mulf %332, %334 : vector<8x512xf32>
    %336 = arith.addf %330, %335 : vector<8x512xf32>
    %337 = vector.extract_strided_slice %313 {offsets = [24, 0], sizes = [8, 512], strides = [1, 1]} : vector<72x512xf32> to vector<8x512xf32>
    %c1_i32_224 = arith.constant 1 : i32
    %338 = tpu.dynamic_rotate %337 by %c1_i32_224 dim 1 : vector<8x512xf32>, i32 -> vector<8x512xf32>
    %c3_225 = arith.constant 3 : index
    %c0_226 = arith.constant 0 : index
    %c0_227 = arith.constant 0 : index
    %339 = vector.load %arg6[%c3_225, %c0_226, %c0_227] : memref<9x8x512xf32, #tpu.memory_space<vmem>>, vector<1x8x512xf32>
    %340 = vector.shape_cast %339 : vector<1x8x512xf32> to vector<8x512xf32>
    %341 = arith.mulf %338, %340 : vector<8x512xf32>
    %342 = arith.addf %336, %341 : vector<8x512xf32>
    %343 = vector.extract_strided_slice %313 {offsets = [40, 0], sizes = [8, 512], strides = [1, 1]} : vector<72x512xf32> to vector<8x512xf32>
    %c511_i32_228 = arith.constant 511 : i32
    %344 = tpu.dynamic_rotate %343 by %c511_i32_228 dim 1 : vector<8x512xf32>, i32 -> vector<8x512xf32>
    %c5_229 = arith.constant 5 : index
    %c0_230 = arith.constant 0 : index
    %c0_231 = arith.constant 0 : index
    %345 = vector.load %arg6[%c5_229, %c0_230, %c0_231] : memref<9x8x512xf32, #tpu.memory_space<vmem>>, vector<1x8x512xf32>
    %346 = vector.shape_cast %345 : vector<1x8x512xf32> to vector<8x512xf32>
    %347 = arith.mulf %344, %346 : vector<8x512xf32>
    %348 = arith.addf %342, %347 : vector<8x512xf32>
    %349 = vector.extract_strided_slice %313 {offsets = [48, 0], sizes = [8, 512], strides = [1, 1]} : vector<72x512xf32> to vector<8x512xf32>
    %c497_i32_232 = arith.constant 497 : i32
    %350 = tpu.dynamic_rotate %349 by %c497_i32_232 dim 1 : vector<8x512xf32>, i32 -> vector<8x512xf32>
    %c6_233 = arith.constant 6 : index
    %c0_234 = arith.constant 0 : index
    %c0_235 = arith.constant 0 : index
    %351 = vector.load %arg6[%c6_233, %c0_234, %c0_235] : memref<9x8x512xf32, #tpu.memory_space<vmem>>, vector<1x8x512xf32>
    %352 = vector.shape_cast %351 : vector<1x8x512xf32> to vector<8x512xf32>
    %353 = arith.mulf %350, %352 : vector<8x512xf32>
    %354 = arith.addf %348, %353 : vector<8x512xf32>
    %355 = vector.extract_strided_slice %313 {offsets = [56, 0], sizes = [8, 512], strides = [1, 1]} : vector<72x512xf32> to vector<8x512xf32>
    %c496_i32_236 = arith.constant 496 : i32
    %356 = tpu.dynamic_rotate %355 by %c496_i32_236 dim 1 : vector<8x512xf32>, i32 -> vector<8x512xf32>
    %c7_237 = arith.constant 7 : index
    %c0_238 = arith.constant 0 : index
    %c0_239 = arith.constant 0 : index
    %357 = vector.load %arg6[%c7_237, %c0_238, %c0_239] : memref<9x8x512xf32, #tpu.memory_space<vmem>>, vector<1x8x512xf32>
    %358 = vector.shape_cast %357 : vector<1x8x512xf32> to vector<8x512xf32>
    %359 = arith.mulf %356, %358 : vector<8x512xf32>
    %360 = arith.addf %354, %359 : vector<8x512xf32>
    %361 = vector.extract_strided_slice %313 {offsets = [64, 0], sizes = [8, 512], strides = [1, 1]} : vector<72x512xf32> to vector<8x512xf32>
    %c495_i32_240 = arith.constant 495 : i32
    %362 = tpu.dynamic_rotate %361 by %c495_i32_240 dim 1 : vector<8x512xf32>, i32 -> vector<8x512xf32>
    %c8_241 = arith.constant 8 : index
    %c0_242 = arith.constant 0 : index
    %c0_243 = arith.constant 0 : index
    %363 = vector.load %arg6[%c8_241, %c0_242, %c0_243] : memref<9x8x512xf32, #tpu.memory_space<vmem>>, vector<1x8x512xf32>
    %364 = vector.shape_cast %363 : vector<1x8x512xf32> to vector<8x512xf32>
    %365 = arith.mulf %362, %364 : vector<8x512xf32>
    %366 = arith.addf %360, %365 : vector<8x512xf32>
    %cst_244 = arith.constant 0.000000e+00 : f32
    %367 = vector.broadcast %cst_244 : f32 to vector<8x512xf32>
    %368 = arith.cmpf ogt, %366, %367 : vector<8x512xf32>
    %c5_245 = arith.constant 5 : index
    %369 = memref.load %arg7[%c5_245] : memref<6xf32, #tpu.memory_space<smem>>
    %370 = vector.broadcast %369 : f32 to vector<8x512xf32>
    %371 = arith.mulf %370, %366 : vector<8x512xf32>
    %372 = arith.select %368, %366, %371 : vector<8x512xi1>, vector<8x512xf32>
    %373 = vector.extract_strided_slice %372 {offsets = [0, 0], sizes = [4, 256], strides = [1, 1]} : vector<8x512xf32> to vector<4x256xf32>
    %c0_246 = arith.constant 0 : index
    %c0_247 = arith.constant 0 : index
    %c0_248 = arith.constant 0 : index
    %374 = vector.load %arg8[%c0_246, %c0_247, %c0_248] : memref<2x4x256xf32, #tpu.memory_space<vmem>>, vector<1x4x256xf32>
    %375 = vector.shape_cast %374 : vector<1x4x256xf32> to vector<4x256xf32>
    %376 = vector.shape_cast %373 : vector<4x256xf32> to vector<1x4x256xf32>
    tpu.vector_store %arg8[%c0_246, %c0_247, %c0_248], %376 {strides = array<i32>} : memref<2x4x256xf32, #tpu.memory_space<vmem>>, vector<1x4x256xf32>,
    %377 = vector.extract_strided_slice %372 {offsets = [0, 256], sizes = [4, 256], strides = [1, 1]} : vector<8x512xf32> to vector<4x256xf32>
    %c1_249 = arith.constant 1 : index
    %c0_250 = arith.constant 0 : index
    %c0_251 = arith.constant 0 : index
    %378 = vector.load %arg8[%c1_249, %c0_250, %c0_251] : memref<2x4x256xf32, #tpu.memory_space<vmem>>, vector<1x4x256xf32>
    %379 = vector.shape_cast %378 : vector<1x4x256xf32> to vector<4x256xf32>
    %380 = vector.shape_cast %377 : vector<4x256xf32> to vector<1x4x256xf32>
    tpu.vector_store %arg8[%c1_249, %c0_250, %c0_251], %380 {strides = array<i32>} : memref<2x4x256xf32, #tpu.memory_space<vmem>>, vector<1x4x256xf32>,
    return
  }
  func.func @transform_0(%arg0: i32) -> (i32, i32, i32) {
    %c0_i32 = arith.constant 0 : i32
    %c0_i32_0 = arith.constant 0 : i32
    %c0_i32_1 = arith.constant 0 : i32
    return %arg0, %c0_i32, %c0_i32_0 : i32, i32, i32
  }
  func.func @transform_1(%arg0: i32) -> (i32, i32, i32) {
    %c0_i32 = arith.constant 0 : i32
    %c0_i32_0 = arith.constant 0 : i32
    %c0_i32_1 = arith.constant 0 : i32
    %c0_i32_2 = arith.constant 0 : i32
    return %c0_i32, %c0_i32_0, %c0_i32_1 : i32, i32, i32
  }
  func.func @transform_2(%arg0: i32) -> (i32, i32, i32) {
    %c0_i32 = arith.constant 0 : i32
    %c0_i32_0 = arith.constant 0 : i32
    %c0_i32_1 = arith.constant 0 : i32
    %c0_i32_2 = arith.constant 0 : i32
    return %c0_i32, %c0_i32_0, %c0_i32_1 : i32, i32, i32
  }
  func.func @transform_3(%arg0: i32) -> (i32, i32, i32) {
    %c0_i32 = arith.constant 0 : i32
    %c0_i32_0 = arith.constant 0 : i32
    %c0_i32_1 = arith.constant 0 : i32
    %c0_i32_2 = arith.constant 0 : i32
    return %c0_i32, %c0_i32_0, %c0_i32_1 : i32, i32, i32
  }
  func.func @transform_4(%arg0: i32) -> (i32, i32, i32) {
    %c0_i32 = arith.constant 0 : i32
    %c0_i32_0 = arith.constant 0 : i32
    %c0_i32_1 = arith.constant 0 : i32
    %c0_i32_2 = arith.constant 0 : i32
    return %c0_i32, %c0_i32_0, %c0_i32_1 : i32, i32, i32
  }
  func.func @transform_5(%arg0: i32) -> (i32, i32, i32) {
    %c0_i32 = arith.constant 0 : i32
    %c0_i32_0 = arith.constant 0 : i32
    %c0_i32_1 = arith.constant 0 : i32
    %c0_i32_2 = arith.constant 0 : i32
    return %c0_i32, %c0_i32_0, %c0_i32_1 : i32, i32, i32
  }
  func.func @transform_6(%arg0: i32) -> i32 {
    %c0_i32 = arith.constant 0 : i32
    %c0_i32_0 = arith.constant 0 : i32
    return %c0_i32 : i32
  }
  func.func @transform_7(%arg0: i32) -> (i32, i32, i32) {
    %c0_i32 = arith.constant 0 : i32
    %c0_i32_0 = arith.constant 0 : i32
    %c0_i32_1 = arith.constant 0 : i32
    return %arg0, %c0_i32, %c0_i32_0 : i32, i32, i32
  }
}

</mosaic_0001>

<llo_original>
// kernel: tpu_custom_call.1
$region0: #{tpu_custom_call.1}
  #allocation0 [shape = 'u32[]', space=smem, size = 0x4, offset = 0x4, fixed_abs, tag = 'smem constant byte address 0x4 - core index']
  #allocation1 [shape = 'u32[144,128]{1,0:T(1,128)}', space=vmem, size = 0x12000, scoped, tag = 'internal scratch']
  #allocation2 [shape = 'f32[40,512]{1,0:T(8,128)}', space=vmem, size = 0x14000, scoped, tag = 'scratch operand']
  %s0 = inlined_call_operand.vmem [shape: f32[2,4,256], index: 0, kind: input, shape index: {}]
  %s1 = inlined_call_operand.vmem [shape: f32[5,40,1], index: 1, kind: input, shape index: {}]
  %s2 = inlined_call_operand.vmem [shape: f32[5,40,1], index: 2, kind: input, shape index: {}]
  %s3 = inlined_call_operand.vmem [shape: f32[5,72,40], index: 3, kind: input, shape index: {}]
  %s4 = inlined_call_operand.vmem [shape: f32[5,8,1], index: 4, kind: input, shape index: {}]
  %s5 = inlined_call_operand.vmem [shape: f32[9,8,512], index: 5, kind: input, shape index: {}]
  %s6 = inlined_call_operand.vmem [shape: f32[6], index: 6, kind: input, shape index: {}]
  %s7 = inlined_call_operand.hbm [shape: f32[2,4,256], index: 7, kind: output, shape index: {}]
  %s8 = sld [smem:[#allocation0]]
  $region42: #{tpu_custom_call.1} parent=0
    _
  %s10 = ssub.s32 1, %s8
  %s11 = scalar_select 0, %s10, %s8
  $region1: #{tpu_custom_call.1} parent=0
    #allocation3 [shape = 'u8[512]{0}', space=smem, size = 0x200, scoped, tag = 'input window, operand 6, single buffered']
    #allocation4 [shape = 's32[1]{0}', space=sflag, size = 0x4, scoped, tag = 'scoped memory for tpu_custom_call.1']
    #allocation5 [shape = 's32[1]{0}', space=sflag, size = 0x4, scoped, tag = 'scoped memory for tpu_custom_call.1']
    #allocation6 [shape = 'u8[8192]{0}', space=vmem, size = 0x2000, scoped, tag = 'output window, operand 0, single buffered']
    %12 = vsyncpa [#allocation5], 0
    %13 = vsyncpa [#allocation4], 0
    // Predicated region
    $region2: #{tpu_custom_call.1} parent=1 // pred_check
      _
    $region3: #{tpu_custom_call.1} parent=1 // pred_check_branch
      %15 = sbr.rel (0) target = $region5
    $region4: #{tpu_custom_call.1} parent=1 // pred_region
      _
    $region5: #{tpu_custom_call.1} parent=1 // pred_fallthru
      _
    // Predicated region
    $region6: #{tpu_custom_call.1} parent=1 // pred_check
      _
    $region7: #{tpu_custom_call.1} parent=1 // pred_check_branch
      %17 = sbr.rel (0) target = $region9
    $region8: #{tpu_custom_call.1} parent=1 // pred_region
      _
    $region9: #{tpu_custom_call.1} parent=1 // pred_fallthru
      _
    // Predicated region
    $region10: #{tpu_custom_call.1} parent=1 // pred_check
      _
    $region11: #{tpu_custom_call.1} parent=1 // pred_check_branch
      %19 = sbr.rel (0) target = $region13
    $region12: #{tpu_custom_call.1} parent=1 // pred_region
      _
    $region13: #{tpu_custom_call.1} parent=1 // pred_fallthru
      _
    // Predicated region
    $region14: #{tpu_custom_call.1} parent=1 // pred_check
      _
    $region15: #{tpu_custom_call.1} parent=1 // pred_check_branch
      %21 = sbr.rel (0) target = $region17
    $region16: #{tpu_custom_call.1} parent=1 // pred_region
      _
    $region17: #{tpu_custom_call.1} parent=1 // pred_fallthru
      _
    // Predicated region
    $region18: #{tpu_custom_call.1} parent=1 // pred_check
      _
    $region19: #{tpu_custom_call.1} parent=1 // pred_check_branch
      %23 = sbr.rel (0) target = $region21
    $region20: #{tpu_custom_call.1} parent=1 // pred_region
      _
    $region21: #{tpu_custom_call.1} parent=1 // pred_fallthru
      _
    // Predicated region
    $region22: #{tpu_custom_call.1} parent=1 // pred_check
      _
    $region23: #{tpu_custom_call.1} parent=1 // pred_check_branch
      %25 = sbr.rel (0) target = $region25
    $region24: #{tpu_custom_call.1} parent=1 // pred_region
      _
    $region25: #{tpu_custom_call.1} parent=1 // pred_fallthru
      _
    // Predicated region
    $region26: #{tpu_custom_call.1} parent=1 // pred_check
      _
    $region27: #{tpu_custom_call.1} parent=1 // pred_check_branch
      %27 = sbr.rel (0) target = $region29
    $region28: #{tpu_custom_call.1} parent=1 // pred_region
      %s29 = ssub.s32 16, 16
      %30 = vsyncadd [#allocation5], %s29
      %s32 = sshll.u32 %s6, 4
      %s33 = int_to_ptr.vmem [resolvable:$true] %s32
      %35 = dma.vmem_to_smem %s33, 16, [#allocation3], [#allocation5]
    $region29: #{tpu_custom_call.1} parent=1 // pred_fallthru
      _
    // Predicated region
    $region30: #{tpu_custom_call.1} parent=1 // pred_check
      _
    $region31: #{tpu_custom_call.1} parent=1 // pred_check_branch
      %37 = sbr.rel (0) target = $region33
    $region32: #{tpu_custom_call.1} parent=1 // pred_region
      %38 = dma.done [#allocation5], 16
    $region33: #{tpu_custom_call.1} parent=1 // pred_fallthru
      _
    %39 = sfence
    %40 = vst [vmem:[#allocation2] sm:$0xff] 0.0
    %41 = vst [vmem:[#allocation2 + $0x8] sm:$0xff] 0.0
    %42 = vst [vmem:[#allocation2 + $0x10] sm:$0xff] 0.0
    %43 = vst [vmem:[#allocation2 + $0x18] sm:$0xff] 0.0
    %44 = vst [vmem:[#allocation2 + $0x20] sm:$0xff] 0.0
    %45 = vst [vmem:[#allocation2 + $0x28] sm:$0xff] 0.0
    %46 = vst [vmem:[#allocation2 + $0x30] sm:$0xff] 0.0
    %47 = vst [vmem:[#allocation2 + $0x38] sm:$0xff] 0.0
    %48 = vst [vmem:[#allocation2 + $0x40] sm:$0xff] 0.0
    %49 = vst [vmem:[#allocation2 + $0x48] sm:$0xff] 0.0
    %50 = vst [vmem:[#allocation2 + $0x50] sm:$0xff] 0.0
    %51 = vst [vmem:[#allocation2 + $0x58] sm:$0xff] 0.0
    %52 = vst [vmem:[#allocation2 + $0x60] sm:$0xff] 0.0
    %53 = vst [vmem:[#allocation2 + $0x68] sm:$0xff] 0.0
    %54 = vst [vmem:[#allocation2 + $0x70] sm:$0xff] 0.0
    %55 = vst [vmem:[#allocation2 + $0x78] sm:$0xff] 0.0
    %56 = vst [vmem:[#allocation2 + $0x80] sm:$0xff] 0.0
    %57 = vst [vmem:[#allocation2 + $0x88] sm:$0xff] 0.0
    %58 = vst [vmem:[#allocation2 + $0x90] sm:$0xff] 0.0
    %59 = vst [vmem:[#allocation2 + $0x98] sm:$0xff] 0.0
    %v60 = vld [vmem:[%s0] sm:$0xff]
    %v62 = vcombine.high %v60, %v60
    %64 = vst [vmem:[#allocation2] sm:$0xf] %v60
    %65 = vst [vmem:[#allocation2 + $0x8] sm:$0xf] %v62
    %s66 = scalar_lea.vmem %s0, 8
    %v67 = vld [vmem:[%s66] sm:$0xff]
    %v69 = vcombine.high %v67, %v67
    %71 = vst [vmem:[#allocation2 + $0x10] sm:$0xf] %v67
    %72 = vst [vmem:[#allocation2 + $0x18] sm:$0xf] %v69
    %v73 = vld [vmem:[#allocation2] sm:$0xff]
    %v74 = vld [vmem:[#allocation2 + $0x8] sm:$0xff]
    %v75 = vld [vmem:[#allocation2 + $0x10] sm:$0xff]
    %v76 = vld [vmem:[#allocation2 + $0x18] sm:$0xff]
    %v77 = vld [vmem:[#allocation2 + $0x20] sm:$0xff]
    %v78 = vld [vmem:[#allocation2 + $0x28] sm:$0xff]
    %v79 = vld [vmem:[#allocation2 + $0x30] sm:$0xff]
    %v80 = vld [vmem:[#allocation2 + $0x38] sm:$0xff]
    %v81 = vld [vmem:[#allocation2 + $0x40] sm:$0xff]
    %v82 = vld [vmem:[#allocation2 + $0x48] sm:$0xff]
    %v83 = vld [vmem:[#allocation2 + $0x50] sm:$0xff]
    %v84 = vld [vmem:[#allocation2 + $0x58] sm:$0xff]
    %v85 = vld [vmem:[#allocation2 + $0x60] sm:$0xff]
    %v86 = vld [vmem:[#allocation2 + $0x68] sm:$0xff]
    %v87 = vld [vmem:[#allocation2 + $0x70] sm:$0xff]
    %v88 = vld [vmem:[#allocation2 + $0x78] sm:$0xff]
    %v89 = vld [vmem:[#allocation2 + $0x80] sm:$0xff]
    %v90 = vld [vmem:[#allocation2 + $0x88] sm:$0xff]
    %v91 = vld [vmem:[#allocation2 + $0x90] sm:$0xff]
    %v92 = vld [vmem:[#allocation2 + $0x98] sm:$0xff]
    %v93 = vld [vmem:[%s1] sm:$0xff]
    %v94 = vld [vmem:[%s1 + $0x8] sm:$0xff]
    %v95 = vld [vmem:[%s1 + $0x10] sm:$0xff]
    %v96 = vld [vmem:[%s1 + $0x18] sm:$0xff]
    %v97 = vld [vmem:[%s1 + $0x20] sm:$0xff]
    %99 = vset.pattern.permute.xlu0 0
    %100 = vperm.xlu0 %99, %v93
    %v101 = vpop.permute.xlu0 %100
    %104 = vset.pattern.permute.xlu0 0
    %105 = vperm.xlu0 %104, %v94
    %v106 = vpop.permute.xlu0 %105
    %109 = vset.pattern.permute.xlu0 0
    %110 = vperm.xlu0 %109, %v95
    %v111 = vpop.permute.xlu0 %110
    %114 = vset.pattern.permute.xlu0 0
    %115 = vperm.xlu0 %114, %v96
    %v116 = vpop.permute.xlu0 %115
    %119 = vset.pattern.permute.xlu0 0
    %120 = vperm.xlu0 %119, %v97
    %v121 = vpop.permute.xlu0 %120
    %v123 = vmul.f32 %v73, %v101
    %v124 = vmul.f32 %v74, %v101
    %v125 = vmul.f32 %v75, %v101
    %v126 = vmul.f32 %v76, %v101
    %v127 = vmul.f32 %v77, %v106
    %v128 = vmul.f32 %v78, %v106
    %v129 = vmul.f32 %v79, %v106
    %v130 = vmul.f32 %v80, %v106
    %v131 = vmul.f32 %v81, %v111
    %v132 = vmul.f32 %v82, %v111
    %v133 = vmul.f32 %v83, %v111
    %v134 = vmul.f32 %v84, %v111
    %v135 = vmul.f32 %v85, %v116
    %v136 = vmul.f32 %v86, %v116
    %v137 = vmul.f32 %v87, %v116
    %v138 = vmul.f32 %v88, %v116
    %v139 = vmul.f32 %v89, %v121
    %v140 = vmul.f32 %v90, %v121
    %v141 = vmul.f32 %v91, %v121
    %v142 = vmul.f32 %v92, %v121
    %v143 = vld [vmem:[%s2] sm:$0xff]
    %v144 = vld [vmem:[%s2 + $0x8] sm:$0xff]
    %v145 = vld [vmem:[%s2 + $0x10] sm:$0xff]
    %v146 = vld [vmem:[%s2 + $0x18] sm:$0xff]
    %v147 = vld [vmem:[%s2 + $0x20] sm:$0xff]
    %149 = vset.pattern.permute.xlu0 0
    %150 = vperm.xlu0 %149, %v143
    %v151 = vpop.permute.xlu0 %150
    %154 = vset.pattern.permute.xlu0 0
    %155 = vperm.xlu0 %154, %v144
    %v156 = vpop.permute.xlu0 %155
    %159 = vset.pattern.permute.xlu0 0
    %160 = vperm.xlu0 %159, %v145
    %v161 = vpop.permute.xlu0 %160
    %164 = vset.pattern.permute.xlu0 0
    %165 = vperm.xlu0 %164, %v146
    %v166 = vpop.permute.xlu0 %165
    %169 = vset.pattern.permute.xlu0 0
    %170 = vperm.xlu0 %169, %v147
    %v171 = vpop.permute.xlu0 %170
    %v173 = vadd.f32 %v123, %v151
    %v174 = vadd.f32 %v124, %v151
    %v175 = vadd.f32 %v125, %v151
    %v176 = vadd.f32 %v126, %v151
    %v177 = vadd.f32 %v127, %v156
    %v178 = vadd.f32 %v128, %v156
    %v179 = vadd.f32 %v129, %v156
    %v180 = vadd.f32 %v130, %v156
    %v181 = vadd.f32 %v131, %v161
    %v182 = vadd.f32 %v132, %v161
    %v183 = vadd.f32 %v133, %v161
    %v184 = vadd.f32 %v134, %v161
    %v185 = vadd.f32 %v135, %v166
    %v186 = vadd.f32 %v136, %v166
    %v187 = vadd.f32 %v137, %v166
    %v188 = vadd.f32 %v138, %v166
    %v189 = vadd.f32 %v139, %v171
    %v190 = vadd.f32 %v140, %v171
    %v191 = vadd.f32 %v141, %v171
    %v192 = vadd.f32 %v142, %v171
    %vm193 = vcmp.gt.f32.partialorder %v173, 0.0
    %vm194 = vcmp.gt.f32.partialorder %v174, 0.0
    %vm195 = vcmp.gt.f32.partialorder %v175, 0.0
    %vm196 = vcmp.gt.f32.partialorder %v176, 0.0
    %vm197 = vcmp.gt.f32.partialorder %v177, 0.0
    %vm198 = vcmp.gt.f32.partialorder %v178, 0.0
    %vm199 = vcmp.gt.f32.partialorder %v179, 0.0
    %vm200 = vcmp.gt.f32.partialorder %v180, 0.0
    %vm201 = vcmp.gt.f32.partialorder %v181, 0.0
    %vm202 = vcmp.gt.f32.partialorder %v182, 0.0
    %vm203 = vcmp.gt.f32.partialorder %v183, 0.0
    %vm204 = vcmp.gt.f32.partialorder %v184, 0.0
    %vm205 = vcmp.gt.f32.partialorder %v185, 0.0
    %vm206 = vcmp.gt.f32.partialorder %v186, 0.0
    %vm207 = vcmp.gt.f32.partialorder %v187, 0.0
    %vm208 = vcmp.gt.f32.partialorder %v188, 0.0
    %vm209 = vcmp.gt.f32.partialorder %v189, 0.0
    %vm210 = vcmp.gt.f32.partialorder %v190, 0.0
    %vm211 = vcmp.gt.f32.partialorder %v191, 0.0
    %vm212 = vcmp.gt.f32.partialorder %v192, 0.0
    %s213 = sld [smem:[#allocation3]]
    %v214 = vstv %s213
    %v215 = vmul.f32 %v214, %v173
    %v216 = vmul.f32 %v214, %v174
    %v217 = vmul.f32 %v214, %v175
    %v218 = vmul.f32 %v214, %v176
    %v219 = vmul.f32 %v214, %v177
    %v220 = vmul.f32 %v214, %v178
    %v221 = vmul.f32 %v214, %v179
    %v222 = vmul.f32 %v214, %v180
    %v223 = vmul.f32 %v214, %v181
    %v224 = vmul.f32 %v214, %v182
    %v225 = vmul.f32 %v214, %v183
    %v226 = vmul.f32 %v214, %v184
    %v227 = vmul.f32 %v214, %v185
    %v228 = vmul.f32 %v214, %v186
    %v229 = vmul.f32 %v214, %v187
    %v230 = vmul.f32 %v214, %v188
    %v231 = vmul.f32 %v214, %v189
    %v232 = vmul.f32 %v214, %v190
    %v233 = vmul.f32 %v214, %v191
    %v234 = vmul.f32 %v214, %v192
    %v235 = vsel %vm193, %v173, %v215
    %v236 = vsel %vm194, %v174, %v216
    %v237 = vsel %vm195, %v175, %v217
    %v238 = vsel %vm196, %v176, %v218
    %v239 = vsel %vm197, %v177, %v219
    %v240 = vsel %vm198, %v178, %v220
    %v241 = vsel %vm199, %v179, %v221
    %v242 = vsel %vm200, %v180, %v222
    %v243 = vsel %vm201, %v181, %v223
    %v244 = vsel %vm202, %v182, %v224
    %v245 = vsel %vm203, %v183, %v225
    %v246 = vsel %vm204, %v184, %v226
    %v247 = vsel %vm205, %v185, %v227
    %v248 = vsel %vm206, %v186, %v228
    %v249 = vsel %vm207, %v187, %v229
    %v250 = vsel %vm208, %v188, %v230
    %v251 = vsel %vm209, %v189, %v231
    %v252 = vsel %vm210, %v190, %v232
    %v253 = vsel %vm211, %v191, %v233
    %v254 = vsel %vm212, %v192, %v234
    %v255 = vld [vmem:[%s3] sm:$0xff]
    %v256 = vld [vmem:[%s3 + $0x8] sm:$0xff]
    %v257 = vld [vmem:[%s3 + $0x10] sm:$0xff]
    %v258 = vld [vmem:[%s3 + $0x18] sm:$0xff]
    %v259 = vld [vmem:[%s3 + $0x20] sm:$0xff]
    %v260 = vld [vmem:[%s3 + $0x28] sm:$0xff]
    %v261 = vld [vmem:[%s3 + $0x30] sm:$0xff]
    %v262 = vld [vmem:[%s3 + $0x38] sm:$0xff]
    %v263 = vld [vmem:[%s3 + $0x40] sm:$0xff]
    %vm264 = vcmask 326656
    %v266 = vsel %vm264, %v255, 0
    %v269 = vsel %vm264, %v256, 0
    %v272 = vsel %vm264, %v257, 0
    %v275 = vsel %vm264, %v258, 0
    %v278 = vsel %vm264, %v259, 0
    %v281 = vsel %vm264, %v260, 0
    %v284 = vsel %vm264, %v261, 0
    %v287 = vsel %vm264, %v262, 0
    %v290 = vsel %vm264, %v263, 0
    %292 = vmatprep.subr.mxu0 %v236
    %293 = vmatpush1.msra.mxu0 %v235
    %294 = vmatprep.subr.mxu0 %v240
    %295 = vmatpush1.msra.mxu0 %v239
    %296 = vmatprep.subr.mxu0 %v244
    %297 = vmatpush1.msra.mxu0 %v243
    %298 = vmatprep.subr.mxu0 %v248
    %299 = vmatpush1.msra.mxu0 %v247
    %300 = vmatprep.subr.mxu0 %v252
    %301 = vmatpush1.msra.mxu0 %v251
    %302 = vmatprep.subr.mxu0 0.0
    %303 = vmatpush1.msra.mxu0 0.0
    %304 = vmatprep.subr.mxu0 0.0
    %305 = vmatpush1.msra.mxu0 0.0
    %306 = vmatprep.subr.mxu0 0.0
    %307 = vmatpush1.msra.mxu0 0.0
    %308 = vmatprep.subr.mxu0 0.0
    %309 = vmatpush1.msra.mxu0 0.0
    %310 = vmatprep.subr.mxu0 0.0
    %311 = vmatpush1.msra.mxu0 0.0
    %312 = vmatprep.subr.mxu0 0.0
    %313 = vmatpush1.msra.mxu0 0.0
    %314 = vmatprep.subr.mxu0 0.0
    %315 = vmatpush1.msra.mxu0 0.0
    %316 = vmatprep.subr.mxu0 0.0
    %317 = vmatpush1.msra.mxu0 0.0
    %318 = vmatprep.subr.mxu0 0.0
    %319 = vmatpush1.msra.mxu0 0.0
    %320 = vmatprep.subr.mxu0 0.0
    %321 = vmatpush1.msra.mxu0 0.0
    %322 = vmatprep.subr.mxu0 0.0
    %323 = vmatpush1.msra.mxu0 0.0
    %324 = vmatprep.subr.mxu0 0.0
    %325 = vmatpush1.msra.mxu0 0.0
    %326 = vmatprep.subr.mxu0 0.0
    %327 = vmatpush1.msra.mxu0 0.0
    %328 = vmatprep.subr.mxu0 0.0
    %329 = vmatpush1.msra.mxu0 0.0
    %330 = vmatprep.subr.mxu0 0.0
    %331 = vmatpush1.msra.mxu0 0.0
    %332 = vmatprep.subr.mxu0 0.0
    %333 = vmatpush1.msra.mxu0 0.0
    %334 = vmatprep.subr.mxu0 0.0
    %335 = vmatpush1.msra.mxu0 0.0
    %336 = vmatprep.subr.mxu0 0.0
    %337 = vmatpush1.msra.mxu0 0.0
    %338 = vmatprep.subr.mxu0 0.0
    %339 = vmatpush1.msra.mxu0 0.0
    %340 = vmatprep.subr.mxu0 0.0
    %341 = vmatpush1.msra.mxu0 0.0
    %342 = vmatprep.subr.mxu0 0.0
    %343 = vmatpush1.msra.mxu0 0.0
    %344 = vmatprep.subr.mxu0 0.0
    %345 = vmatpush1.msra.mxu0 0.0
    %346 = vmatprep.subr.mxu0 0.0
    %347 = vmatpush1.msra.mxu0 0.0
    %348 = vmatprep.subr.mxu0 0.0
    %349 = vmatpush1.msra.mxu0 0.0
    %350 = vmatprep.subr.mxu0 0.0
    %351 = vmatpush1.msra.mxu0 0.0
    %352 = vmatprep.subr.mxu0 0.0
    %353 = vmatpush1.msra.mxu0 0.0
    %354 = vmatprep.subr.mxu0 0.0
    %355 = vmatpush1.msra.mxu0 0.0
    %356 = vmatprep.mubr.f32.mxu0 0.0
    %357 = vmatmul.mubr.f32.gmra.mrb[0].mxu0 %v266
    %v358 = vpop.f32.mrb[0].mxu0
    %v359 = vadd.f32 0.0, %v358
    %v360 = vpop.f32.mrb[0].mxu0
    %v361 = vadd.f32 0.0, %v360
    %362 = vmatprep.mubr.f32.mxu0 0.0
    %363 = vmatmul.mubr.f32.gmra.mrb[0].mxu0 %v269
    %v364 = vpop.f32.mrb[0].mxu0
    %v365 = vadd.f32 0.0, %v364
    %v366 = vpop.f32.mrb[0].mxu0
    %v367 = vadd.f32 0.0, %v366
    %368 = vmatprep.mubr.f32.mxu0 0.0
    %369 = vmatmul.mubr.f32.gmra.mrb[0].mxu0 %v272
    %v370 = vpop.f32.mrb[0].mxu0
    %v371 = vadd.f32 0.0, %v370
    %v372 = vpop.f32.mrb[0].mxu0
    %v373 = vadd.f32 0.0, %v372
    %374 = vmatprep.mubr.f32.mxu0 0.0
    %375 = vmatmul.mubr.f32.gmra.mrb[0].mxu0 %v275
    %v376 = vpop.f32.mrb[0].mxu0
    %v377 = vadd.f32 0.0, %v376
    %v378 = vpop.f32.mrb[0].mxu0
    %v379 = vadd.f32 0.0, %v378
    %380 = vmatprep.mubr.f32.mxu0 0.0
    %381 = vmatmul.mubr.f32.gmra.mrb[0].mxu0 %v278
    %v382 = vpop.f32.mrb[0].mxu0
    %v383 = vadd.f32 0.0, %v382
    %v384 = vpop.f32.mrb[0].mxu0
    %v385 = vadd.f32 0.0, %v384
    %386 = vmatprep.mubr.f32.mxu0 0.0
    %387 = vmatmul.mubr.f32.gmra.mrb[0].mxu0 %v281
    %v388 = vpop.f32.mrb[0].mxu0
    %v389 = vadd.f32 0.0, %v388
    %v390 = vpop.f32.mrb[0].mxu0
    %v391 = vadd.f32 0.0, %v390
    %392 = vmatprep.mubr.f32.mxu0 0.0
    %393 = vmatmul.mubr.f32.gmra.mrb[0].mxu0 %v284
    %v394 = vpop.f32.mrb[0].mxu0
    %v395 = vadd.f32 0.0, %v394
    %v396 = vpop.f32.mrb[0].mxu0
    %v397 = vadd.f32 0.0, %v396
    %398 = vmatprep.mubr.f32.mxu0 0.0
    %399 = vmatmul.mubr.f32.gmra.mrb[0].mxu0 %v287
    %v400 = vpop.f32.mrb[0].mxu0
    %v401 = vadd.f32 0.0, %v400
    %v402 = vpop.f32.mrb[0].mxu0
    %v403 = vadd.f32 0.0, %v402
    %404 = vmatprep.mubr.f32.mxu0 0.0
    %405 = vmatmul.mubr.f32.gmra.mrb[0].mxu0 %v290
    %v406 = vpop.f32.mrb[0].mxu0
    %v407 = vadd.f32 0.0, %v406
    %v408 = vpop.f32.mrb[0].mxu0
    %v409 = vadd.f32 0.0, %v408
    %410 = vdwg.mxu0
    %411 = vmatprep.subr.mxu0 %v238
    %412 = vmatpush1.msra.mxu0 %v237
    %413 = vmatprep.subr.mxu0 %v242
    %414 = vmatpush1.msra.mxu0 %v241
    %415 = vmatprep.subr.mxu0 %v246
    %416 = vmatpush1.msra.mxu0 %v245
    %417 = vmatprep.subr.mxu0 %v250
    %418 = vmatpush1.msra.mxu0 %v249
    %419 = vmatprep.subr.mxu0 %v254
    %420 = vmatpush1.msra.mxu0 %v253
    %421 = vmatprep.subr.mxu0 0.0
    %422 = vmatpush1.msra.mxu0 0.0
    %423 = vmatprep.subr.mxu0 0.0
    %424 = vmatpush1.msra.mxu0 0.0
    %425 = vmatprep.subr.mxu0 0.0
    %426 = vmatpush1.msra.mxu0 0.0
    %427 = vmatprep.subr.mxu0 0.0
    %428 = vmatpush1.msra.mxu0 0.0
    %429 = vmatprep.subr.mxu0 0.0
    %430 = vmatpush1.msra.mxu0 0.0
    %431 = vmatprep.subr.mxu0 0.0
    %432 = vmatpush1.msra.mxu0 0.0
    %433 = vmatprep.subr.mxu0 0.0
    %434 = vmatpush1.msra.mxu0 0.0
    %435 = vmatprep.subr.mxu0 0.0
    %436 = vmatpush1.msra.mxu0 0.0
    %437 = vmatprep.subr.mxu0 0.0
    %438 = vmatpush1.msra.mxu0 0.0
    %439 = vmatprep.subr.mxu0 0.0
    %440 = vmatpush1.msra.mxu0 0.0
    %441 = vmatprep.subr.mxu0 0.0
    %442 = vmatpush1.msra.mxu0 0.0
    %443 = vmatprep.subr.mxu0 0.0
    %444 = vmatpush1.msra.mxu0 0.0
    %445 = vmatprep.subr.mxu0 0.0
    %446 = vmatpush1.msra.mxu0 0.0
    %447 = vmatprep.subr.mxu0 0.0
    %448 = vmatpush1.msra.mxu0 0.0
    %449 = vmatprep.subr.mxu0 0.0
    %450 = vmatpush1.msra.mxu0 0.0
    %451 = vmatprep.subr.mxu0 0.0
    %452 = vmatpush1.msra.mxu0 0.0
    %453 = vmatprep.subr.mxu0 0.0
    %454 = vmatpush1.msra.mxu0 0.0
    %455 = vmatprep.subr.mxu0 0.0
    %456 = vmatpush1.msra.mxu0 0.0
    %457 = vmatprep.subr.mxu0 0.0
    %458 = vmatpush1.msra.mxu0 0.0
    %459 = vmatprep.subr.mxu0 0.0
    %460 = vmatpush1.msra.mxu0 0.0
    %461 = vmatprep.subr.mxu0 0.0
    %462 = vmatpush1.msra.mxu0 0.0
    %463 = vmatprep.subr.mxu0 0.0
    %464 = vmatpush1.msra.mxu0 0.0
    %465 = vmatprep.subr.mxu0 0.0
    %466 = vmatpush1.msra.mxu0 0.0
    %467 = vmatprep.subr.mxu0 0.0
    %468 = vmatpush1.msra.mxu0 0.0
    %469 = vmatprep.subr.mxu0 0.0
    %470 = vmatpush1.msra.mxu0 0.0
    %471 = vmatprep.subr.mxu0 0.0
    %472 = vmatpush1.msra.mxu0 0.0
    %473 = vmatprep.subr.mxu0 0.0
    %474 = vmatpush1.msra.mxu0 0.0
    %475 = vmatprep.mubr.f32.mxu0 0.0
    %476 = vmatmul.mubr.f32.gmra.mrb[0].mxu0 %v266
    %v477 = vpop.f32.mrb[0].mxu0
    %v478 = vadd.f32 0.0, %v477
    %v479 = vpop.f32.mrb[0].mxu0
    %v480 = vadd.f32 0.0, %v479
    %481 = vmatprep.mubr.f32.mxu0 0.0
    %482 = vmatmul.mubr.f32.gmra.mrb[0].mxu0 %v269
    %v483 = vpop.f32.mrb[0].mxu0
    %v484 = vadd.f32 0.0, %v483
    %v485 = vpop.f32.mrb[0].mxu0
    %v486 = vadd.f32 0.0, %v485
    %487 = vmatprep.mubr.f32.mxu0 0.0
    %488 = vmatmul.mubr.f32.gmra.mrb[0].mxu0 %v272
    %v489 = vpop.f32.mrb[0].mxu0
    %v490 = vadd.f32 0.0, %v489
    %v491 = vpop.f32.mrb[0].mxu0
    %v492 = vadd.f32 0.0, %v491
    %493 = vmatprep.mubr.f32.mxu0 0.0
    %494 = vmatmul.mubr.f32.gmra.mrb[0].mxu0 %v275
    %v495 = vpop.f32.mrb[0].mxu0
    %v496 = vadd.f32 0.0, %v495
    %v497 = vpop.f32.mrb[0].mxu0
    %v498 = vadd.f32 0.0, %v497
    %499 = vmatprep.mubr.f32.mxu0 0.0
    %500 = vmatmul.mubr.f32.gmra.mrb[0].mxu0 %v278
    %v501 = vpop.f32.mrb[0].mxu0
    %v502 = vadd.f32 0.0, %v501
    %v503 = vpop.f32.mrb[0].mxu0
    %v504 = vadd.f32 0.0, %v503
    %505 = vmatprep.mubr.f32.mxu0 0.0
    %506 = vmatmul.mubr.f32.gmra.mrb[0].mxu0 %v281
    %v507 = vpop.f32.mrb[0].mxu0
    %v508 = vadd.f32 0.0, %v507
    %v509 = vpop.f32.mrb[0].mxu0
    %v510 = vadd.f32 0.0, %v509
    %511 = vmatprep.mubr.f32.mxu0 0.0
    %512 = vmatmul.mubr.f32.gmra.mrb[0].mxu0 %v284
    %v513 = vpop.f32.mrb[0].mxu0
    %v514 = vadd.f32 0.0, %v513
    %v515 = vpop.f32.mrb[0].mxu0
    %v516 = vadd.f32 0.0, %v515
    %517 = vmatprep.mubr.f32.mxu0 0.0
    %518 = vmatmul.mubr.f32.gmra.mrb[0].mxu0 %v287
    %v519 = vpop.f32.mrb[0].mxu0
    %v520 = vadd.f32 0.0, %v519
    %v521 = vpop.f32.mrb[0].mxu0
    %v522 = vadd.f32 0.0, %v521
    %523 = vmatprep.mubr.f32.mxu0 0.0
    %524 = vmatmul.mubr.f32.gmra.mrb[0].mxu0 %v290
    %v525 = vpop.f32.mrb[0].mxu0
    %v526 = vadd.f32 0.0, %v525
    %v527 = vpop.f32.mrb[0].mxu0
    %v528 = vadd.f32 0.0, %v527
    %529 = vdwg.mxu0
    %v530 = vld [vmem:[%s4] sm:$0xff]
    %532 = vset.pattern.permute.xlu0 0
    %533 = vperm.xlu0 %532, %v530
    %v534 = vpop.permute.xlu0 %533
    %v536 = vadd.f32 %v383, %v534
    %v537 = vadd.f32 %v385, %v534
    %v538 = vadd.f32 %v502, %v534
    %v539 = vadd.f32 %v504, %v534
    %540 = vrot.lane.b32.xlu0 %v359, 17
    %v541 = vpop.permute.xlu0 %540
    %542 = vrot.lane.b32.xlu0 %v361, 17
    %v543 = vpop.permute.xlu0 %542
    %544 = vrot.lane.b32.xlu0 %v478, 17
    %v545 = vpop.permute.xlu0 %544
    %546 = vrot.lane.b32.xlu0 %v480, 17
    %v547 = vpop.permute.xlu0 %546
    %v548 = vlaneseq
    %v549 = vand.u32 %v548, 127
    %vm550 = vcmp.lt.s32.totalorder %v549, 17
    %v551 = vsel %vm550, %v545, %v547
    %v552 = vsel %vm550, %v543, %v545
    %v553 = vsel %vm550, %v541, %v543
    %v554 = vsel %vm550, %v547, %v541
    %v555 = vld [vmem:[%s5] sm:$0xff]
    %v556 = vld [vmem:[%s5 + $0x8] sm:$0xff]
    %v557 = vld [vmem:[%s5 + $0x10] sm:$0xff]
    %v558 = vld [vmem:[%s5 + $0x18] sm:$0xff]
    %v559 = vmul.f32 %v554, %v555
    %v560 = vmul.f32 %v553, %v556
    %v561 = vmul.f32 %v552, %v557
    %v562 = vmul.f32 %v551, %v558
    %v563 = vadd.f32 %v536, %v559
    %v564 = vadd.f32 %v537, %v560
    %v565 = vadd.f32 %v538, %v561
    %v566 = vadd.f32 %v539, %v562
    %567 = vrot.lane.b32.xlu0 %v365, 16
    %v568 = vpop.permute.xlu0 %567
    %569 = vrot.lane.b32.xlu0 %v367, 16
    %v570 = vpop.permute.xlu0 %569
    %571 = vrot.lane.b32.xlu0 %v484, 16
    %v572 = vpop.permute.xlu0 %571
    %573 = vrot.lane.b32.xlu0 %v486, 16
    %v574 = vpop.permute.xlu0 %573
    %vm575 = vcmp.lt.s32.totalorder %v549, 16
    %v576 = vsel %vm575, %v572, %v574
    %v577 = vsel %vm575, %v570, %v572
    %v578 = vsel %vm575, %v568, %v570
    %v579 = vsel %vm575, %v574, %v568
    %s580 = scalar_lea.vmem %s5, 32
    %v581 = vld [vmem:[%s580] sm:$0xff]
    %v582 = vld [vmem:[%s580 + $0x8] sm:$0xff]
    %v583 = vld [vmem:[%s580 + $0x10] sm:$0xff]
    %v584 = vld [vmem:[%s580 + $0x18] sm:$0xff]
    %v585 = vmul.f32 %v579, %v581
    %v586 = vmul.f32 %v578, %v582
    %v587 = vmul.f32 %v577, %v583
    %v588 = vmul.f32 %v576, %v584
    %v589 = vadd.f32 %v563, %v585
    %v590 = vadd.f32 %v564, %v586
    %v591 = vadd.f32 %v565, %v587
    %v592 = vadd.f32 %v566, %v588
    %593 = vrot.lane.b32.xlu0 %v371, 15
    %v594 = vpop.permute.xlu0 %593
    %595 = vrot.lane.b32.xlu0 %v373, 15
    %v596 = vpop.permute.xlu0 %595
    %597 = vrot.lane.b32.xlu0 %v490, 15
    %v598 = vpop.permute.xlu0 %597
    %599 = vrot.lane.b32.xlu0 %v492, 15
    %v600 = vpop.permute.xlu0 %599
    %vm601 = vcmp.lt.s32.totalorder %v549, 15
    %v602 = vsel %vm601, %v598, %v600
    %v603 = vsel %vm601, %v596, %v598
    %v604 = vsel %vm601, %v594, %v596
    %v605 = vsel %vm601, %v600, %v594
    %s606 = scalar_lea.vmem %s5, 64
    %v607 = vld [vmem:[%s606] sm:$0xff]
    %v608 = vld [vmem:[%s606 + $0x8] sm:$0xff]
    %v609 = vld [vmem:[%s606 + $0x10] sm:$0xff]
    %v610 = vld [vmem:[%s606 + $0x18] sm:$0xff]
    %v611 = vmul.f32 %v605, %v607
    %v612 = vmul.f32 %v604, %v608
    %v613 = vmul.f32 %v603, %v609
    %v614 = vmul.f32 %v602, %v610
    %v615 = vadd.f32 %v589, %v611
    %v616 = vadd.f32 %v590, %v612
    %v617 = vadd.f32 %v591, %v613
    %v618 = vadd.f32 %v592, %v614
    %619 = vrot.lane.b32.xlu0 %v377, 1
    %v620 = vpop.permute.xlu0 %619
    %621 = vrot.lane.b32.xlu0 %v379, 1
    %v622 = vpop.permute.xlu0 %621
    %623 = vrot.lane.b32.xlu0 %v496, 1
    %v624 = vpop.permute.xlu0 %623
    %625 = vrot.lane.b32.xlu0 %v498, 1
    %v626 = vpop.permute.xlu0 %625
    %vm627 = vcmp.lt.s32.totalorder %v549, 1
    %v628 = vsel %vm627, %v624, %v626
    %v629 = vsel %vm627, %v622, %v624
    %v630 = vsel %vm627, %v620, %v622
    %v631 = vsel %vm627, %v626, %v620
    %s632 = scalar_lea.vmem %s5, 96
    %v633 = vld [vmem:[%s632] sm:$0xff]
    %v634 = vld [vmem:[%s632 + $0x8] sm:$0xff]
    %v635 = vld [vmem:[%s632 + $0x10] sm:$0xff]
    %v636 = vld [vmem:[%s632 + $0x18] sm:$0xff]
    %v637 = vmul.f32 %v631, %v633
    %v638 = vmul.f32 %v630, %v634
    %v639 = vmul.f32 %v629, %v635
    %v640 = vmul.f32 %v628, %v636
    %v641 = vadd.f32 %v615, %v637
    %v642 = vadd.f32 %v616, %v638
    %v643 = vadd.f32 %v617, %v639
    %v644 = vadd.f32 %v618, %v640
    %645 = vrot.lane.b32.xlu0 %v389, 127
    %v646 = vpop.permute.xlu0 %645
    %647 = vrot.lane.b32.xlu0 %v391, 127
    %v648 = vpop.permute.xlu0 %647
    %649 = vrot.lane.b32.xlu0 %v508, 127
    %v650 = vpop.permute.xlu0 %649
    %651 = vrot.lane.b32.xlu0 %v510, 127
    %v652 = vpop.permute.xlu0 %651
    %vm653 = vcmp.lt.s32.totalorder %v549, 127
    %v654 = vsel %vm653, %v650, %v652
    %v655 = vsel %vm653, %v648, %v650
    %v656 = vsel %vm653, %v646, %v648
    %v657 = vsel %vm653, %v652, %v646
    %s658 = scalar_lea.vmem %s5, 160
    %v659 = vld [vmem:[%s658] sm:$0xff]
    %v660 = vld [vmem:[%s658 + $0x8] sm:$0xff]
    %v661 = vld [vmem:[%s658 + $0x10] sm:$0xff]
    %v662 = vld [vmem:[%s658 + $0x18] sm:$0xff]
    %v663 = vmul.f32 %v656, %v659
    %v664 = vmul.f32 %v655, %v660
    %v665 = vmul.f32 %v654, %v661
    %v666 = vmul.f32 %v657, %v662
    %v667 = vadd.f32 %v641, %v663
    %v668 = vadd.f32 %v642, %v664
    %v669 = vadd.f32 %v643, %v665
    %v670 = vadd.f32 %v644, %v666
    %671 = vrot.lane.b32.xlu0 %v395, 113
    %v672 = vpop.permute.xlu0 %671
    %673 = vrot.lane.b32.xlu0 %v397, 113
    %v674 = vpop.permute.xlu0 %673
    %675 = vrot.lane.b32.xlu0 %v514, 113
    %v676 = vpop.permute.xlu0 %675
    %677 = vrot.lane.b32.xlu0 %v516, 113
    %v678 = vpop.permute.xlu0 %677
    %vm679 = vcmp.lt.s32.totalorder %v549, 113
    %v680 = vsel %vm679, %v676, %v678
    %v681 = vsel %vm679, %v674, %v676
    %v682 = vsel %vm679, %v672, %v674
    %v683 = vsel %vm679, %v678, %v672
    %s684 = scalar_lea.vmem %s5, 192
    %v685 = vld [vmem:[%s684] sm:$0xff]
    %v686 = vld [vmem:[%s684 + $0x8] sm:$0xff]
    %v687 = vld [vmem:[%s684 + $0x10] sm:$0xff]
    %v688 = vld [vmem:[%s684 + $0x18] sm:$0xff]
    %v689 = vmul.f32 %v682, %v685
    %v690 = vmul.f32 %v681, %v686
    %v691 = vmul.f32 %v680, %v687
    %v692 = vmul.f32 %v683, %v688
    %v693 = vadd.f32 %v667, %v689
    %v694 = vadd.f32 %v668, %v690
    %v695 = vadd.f32 %v669, %v691
    %v696 = vadd.f32 %v670, %v692
    %697 = vrot.lane.b32.xlu0 %v401, 112
    %v698 = vpop.permute.xlu0 %697
    %699 = vrot.lane.b32.xlu0 %v403, 112
    %v700 = vpop.permute.xlu0 %699
    %701 = vrot.lane.b32.xlu0 %v520, 112
    %v702 = vpop.permute.xlu0 %701
    %703 = vrot.lane.b32.xlu0 %v522, 112
    %v704 = vpop.permute.xlu0 %703
    %vm705 = vcmp.lt.s32.totalorder %v549, 112
    %v706 = vsel %vm705, %v702, %v704
    %v707 = vsel %vm705, %v700, %v702
    %v708 = vsel %vm705, %v698, %v700
    %v709 = vsel %vm705, %v704, %v698
    %s710 = scalar_lea.vmem %s5, 224
    %v711 = vld [vmem:[%s710] sm:$0xff]
    %v712 = vld [vmem:[%s710 + $0x8] sm:$0xff]
    %v713 = vld [vmem:[%s710 + $0x10] sm:$0xff]
    %v714 = vld [vmem:[%s710 + $0x18] sm:$0xff]
    %v715 = vmul.f32 %v708, %v711
    %v716 = vmul.f32 %v707, %v712
    %v717 = vmul.f32 %v706, %v713
    %v718 = vmul.f32 %v709, %v714
    %v719 = vadd.f32 %v693, %v715
    %v720 = vadd.f32 %v694, %v716
    %v721 = vadd.f32 %v695, %v717
    %v722 = vadd.f32 %v696, %v718
    %723 = vrot.lane.b32.xlu0 %v407, 111
    %v724 = vpop.permute.xlu0 %723
    %725 = vrot.lane.b32.xlu0 %v409, 111
    %v726 = vpop.permute.xlu0 %725
    %727 = vrot.lane.b32.xlu0 %v526, 111
    %v728 = vpop.permute.xlu0 %727
    %729 = vrot.lane.b32.xlu0 %v528, 111
    %v730 = vpop.permute.xlu0 %729
    %vm731 = vcmp.lt.s32.totalorder %v549, 111
    %v732 = vsel %vm731, %v728, %v730
    %v733 = vsel %vm731, %v726, %v728
    %v734 = vsel %vm731, %v724, %v726
    %v735 = vsel %vm731, %v730, %v724
    %s736 = scalar_lea.vmem %s5, 256
    %v737 = vld [vmem:[%s736] sm:$0xff]
    %v738 = vld [vmem:[%s736 + $0x8] sm:$0xff]
    %v739 = vld [vmem:[%s736 + $0x10] sm:$0xff]
    %v740 = vld [vmem:[%s736 + $0x18] sm:$0xff]
    %v741 = vmul.f32 %v734, %v737
    %v742 = vmul.f32 %v733, %v738
    %v743 = vmul.f32 %v732, %v739
    %v744 = vmul.f32 %v735, %v740
    %v745 = vadd.f32 %v719, %v741
    %v746 = vadd.f32 %v720, %v742
    %v747 = vadd.f32 %v721, %v743
    %v748 = vadd.f32 %v722, %v744
    %749 = vst [vmem:[#allocation2 + $0x20] sm:$0xff] %v745
    %750 = vst [vmem:[#allocation2 + $0x28] sm:$0xff] %v746
    %751 = vst [vmem:[#allocation2 + $0x30] sm:$0xff] %v747
    %752 = vst [vmem:[#allocation2 + $0x38] sm:$0xff] %v748
    %v753 = vld [vmem:[#allocation2] sm:$0xff]
    %v754 = vld [vmem:[#allocation2 + $0x8] sm:$0xff]
    %v755 = vld [vmem:[#allocation2 + $0x10] sm:$0xff]
    %v756 = vld [vmem:[#allocation2 + $0x18] sm:$0xff]
    %v757 = vld [vmem:[#allocation2 + $0x20] sm:$0xff]
    %v758 = vld [vmem:[#allocation2 + $0x28] sm:$0xff]
    %v759 = vld [vmem:[#allocation2 + $0x30] sm:$0xff]
    %v760 = vld [vmem:[#allocation2 + $0x38] sm:$0xff]
    %v761 = vld [vmem:[#allocation2 + $0x40] sm:$0xff]
    %v762 = vld [vmem:[#allocation2 + $0x48] sm:$0xff]
    %v763 = vld [vmem:[#allocation2 + $0x50] sm:$0xff]
    %v764 = vld [vmem:[#allocation2 + $0x58] sm:$0xff]
    %v765 = vld [vmem:[#allocation2 + $0x60] sm:$0xff]
    %v766 = vld [vmem:[#allocation2 + $0x68] sm:$0xff]
    %v767 = vld [vmem:[#allocation2 + $0x70] sm:$0xff]
    %v768 = vld [vmem:[#allocation2 + $0x78] sm:$0xff]
    %v769 = vld [vmem:[#allocation2 + $0x80] sm:$0xff]
    %v770 = vld [vmem:[#allocation2 + $0x88] sm:$0xff]
    %v771 = vld [vmem:[#allocation2 + $0x90] sm:$0xff]
    %v772 = vld [vmem:[#allocation2 + $0x98] sm:$0xff]
    %s773 = scalar_lea.vmem %s1, 40
    %v774 = vld [vmem:[%s773] sm:$0xff]
    %v775 = vld [vmem:[%s773 + $0x8] sm:$0xff]
    %v776 = vld [vmem:[%s773 + $0x10] sm:$0xff]
    %v777 = vld [vmem:[%s773 + $0x18] sm:$0xff]
    %v778 = vld [vmem:[%s773 + $0x20] sm:$0xff]
    %780 = vset.pattern.permute.xlu0 0
    %781 = vperm.xlu0 %780, %v774
    %v782 = vpop.permute.xlu0 %781
    %785 = vset.pattern.permute.xlu0 0
    %786 = vperm.xlu0 %785, %v775
    %v787 = vpop.permute.xlu0 %786
    %790 = vset.pattern.permute.xlu0 0
    %791 = vperm.xlu0 %790, %v776
    %v792 = vpop.permute.xlu0 %791
    %795 = vset.pattern.permute.xlu0 0
    %796 = vperm.xlu0 %795, %v777
    %v797 = vpop.permute.xlu0 %796
    %800 = vset.pattern.permute.xlu0 0
    %801 = vperm.xlu0 %800, %v778
    %v802 = vpop.permute.xlu0 %801
    %v804 = vmul.f32 %v753, %v782
    %v805 = vmul.f32 %v754, %v782
    %v806 = vmul.f32 %v755, %v782
    %v807 = vmul.f32 %v756, %v782
    %v808 = vmul.f32 %v757, %v787
    %v809 = vmul.f32 %v758, %v787
    %v810 = vmul.f32 %v759, %v787
    %v811 = vmul.f32 %v760, %v787
    %v812 = vmul.f32 %v761, %v792
    %v813 = vmul.f32 %v762, %v792
    %v814 = vmul.f32 %v763, %v792
    %v815 = vmul.f32 %v764, %v792
    %v816 = vmul.f32 %v765, %v797
    %v817 = vmul.f32 %v766, %v797
    %v818 = vmul.f32 %v767, %v797
    %v819 = vmul.f32 %v768, %v797
    %v820 = vmul.f32 %v769, %v802
    %v821 = vmul.f32 %v770, %v802
    %v822 = vmul.f32 %v771, %v802
    %v823 = vmul.f32 %v772, %v802
    %s824 = scalar_lea.vmem %s2, 40
    %v825 = vld [vmem:[%s824] sm:$0xff]
    %v826 = vld [vmem:[%s824 + $0x8] sm:$0xff]
    %v827 = vld [vmem:[%s824 + $0x10] sm:$0xff]
    %v828 = vld [vmem:[%s824 + $0x18] sm:$0xff]
    %v829 = vld [vmem:[%s824 + $0x20] sm:$0xff]
    %831 = vset.pattern.permute.xlu0 0
    %832 = vperm.xlu0 %831, %v825
    %v833 = vpop.permute.xlu0 %832
    %836 = vset.pattern.permute.xlu0 0
    %837 = vperm.xlu0 %836, %v826
    %v838 = vpop.permute.xlu0 %837
    %841 = vset.pattern.permute.xlu0 0
    %842 = vperm.xlu0 %841, %v827
    %v843 = vpop.permute.xlu0 %842
    %846 = vset.pattern.permute.xlu0 0
    %847 = vperm.xlu0 %846, %v828
    %v848 = vpop.permute.xlu0 %847
    %851 = vset.pattern.permute.xlu0 0
    %852 = vperm.xlu0 %851, %v829
    %v853 = vpop.permute.xlu0 %852
    %v855 = vadd.f32 %v804, %v833
    %v856 = vadd.f32 %v805, %v833
    %v857 = vadd.f32 %v806, %v833
    %v858 = vadd.f32 %v807, %v833
    %v859 = vadd.f32 %v808, %v838
    %v860 = vadd.f32 %v809, %v838
    %v861 = vadd.f32 %v810, %v838
    %v862 = vadd.f32 %v811, %v838
    %v863 = vadd.f32 %v812, %v843
    %v864 = vadd.f32 %v813, %v843
    %v865 = vadd.f32 %v814, %v843
    %v866 = vadd.f32 %v815, %v843
    %v867 = vadd.f32 %v816, %v848
    %v868 = vadd.f32 %v817, %v848
    %v869 = vadd.f32 %v818, %v848
    %v870 = vadd.f32 %v819, %v848
    %v871 = vadd.f32 %v820, %v853
    %v872 = vadd.f32 %v821, %v853
    %v873 = vadd.f32 %v822, %v853
    %v874 = vadd.f32 %v823, %v853
    %vm875 = vcmp.gt.f32.partialorder %v855, 0.0
    %vm876 = vcmp.gt.f32.partialorder %v856, 0.0
    %vm877 = vcmp.gt.f32.partialorder %v857, 0.0
    %vm878 = vcmp.gt.f32.partialorder %v858, 0.0
    %vm879 = vcmp.gt.f32.partialorder %v859, 0.0
    %vm880 = vcmp.gt.f32.partialorder %v860, 0.0
    %vm881 = vcmp.gt.f32.partialorder %v861, 0.0
    %vm882 = vcmp.gt.f32.partialorder %v862, 0.0
    %vm883 = vcmp.gt.f32.partialorder %v863, 0.0
    %vm884 = vcmp.gt.f32.partialorder %v864, 0.0
    %vm885 = vcmp.gt.f32.partialorder %v865, 0.0
    %vm886 = vcmp.gt.f32.partialorder %v866, 0.0
    %vm887 = vcmp.gt.f32.partialorder %v867, 0.0
    %vm888 = vcmp.gt.f32.partialorder %v868, 0.0
    %vm889 = vcmp.gt.f32.partialorder %v869, 0.0
    %vm890 = vcmp.gt.f32.partialorder %v870, 0.0
    %vm891 = vcmp.gt.f32.partialorder %v871, 0.0
    %vm892 = vcmp.gt.f32.partialorder %v872, 0.0
    %vm893 = vcmp.gt.f32.partialorder %v873, 0.0
    %vm894 = vcmp.gt.f32.partialorder %v874, 0.0
    %s895 = sld [smem:[#allocation3 + $0x1]]
    %v896 = vstv %s895
    %v897 = vmul.f32 %v896, %v855
    %v898 = vmul.f32 %v896, %v856
    %v899 = vmul.f32 %v896, %v857
    %v900 = vmul.f32 %v896, %v858
    %v901 = vmul.f32 %v896, %v859
    %v902 = vmul.f32 %v896, %v860
    %v903 = vmul.f32 %v896, %v861
    %v904 = vmul.f32 %v896, %v862
    %v905 = vmul.f32 %v896, %v863
    %v906 = vmul.f32 %v896, %v864
    %v907 = vmul.f32 %v896, %v865
    %v908 = vmul.f32 %v896, %v866
    %v909 = vmul.f32 %v896, %v867
    %v910 = vmul.f32 %v896, %v868
    %v911 = vmul.f32 %v896, %v869
    %v912 = vmul.f32 %v896, %v870
    %v913 = vmul.f32 %v896, %v871
    %v914 = vmul.f32 %v896, %v872
    %v915 = vmul.f32 %v896, %v873
    %v916 = vmul.f32 %v896, %v874
    %v917 = vsel %vm875, %v855, %v897
    %v918 = vsel %vm876, %v856, %v898
    %v919 = vsel %vm877, %v857, %v899
    %v920 = vsel %vm878, %v858, %v900
    %v921 = vsel %vm879, %v859, %v901
    %v922 = vsel %vm880, %v860, %v902
    %v923 = vsel %vm881, %v861, %v903
    %v924 = vsel %vm882, %v862, %v904
    %v925 = vsel %vm883, %v863, %v905
    %v926 = vsel %vm884, %v864, %v906
    %v927 = vsel %vm885, %v865, %v907
    %v928 = vsel %vm886, %v866, %v908
    %v929 = vsel %vm887, %v867, %v909
    %v930 = vsel %vm888, %v868, %v910
    %v931 = vsel %vm889, %v869, %v911
    %v932 = vsel %vm890, %v870, %v912
    %v933 = vsel %vm891, %v871, %v913
    %v934 = vsel %vm892, %v872, %v914
    %v935 = vsel %vm893, %v873, %v915
    %v936 = vsel %vm894, %v874, %v916
    %s937 = scalar_lea.vmem %s3, 72
    %v938 = vld [vmem:[%s937] sm:$0xff]
    %v939 = vld [vmem:[%s937 + $0x8] sm:$0xff]
    %v940 = vld [vmem:[%s937 + $0x10] sm:$0xff]
    %v941 = vld [vmem:[%s937 + $0x18] sm:$0xff]
    %v942 = vld [vmem:[%s937 + $0x20] sm:$0xff]
    %v943 = vld [vmem:[%s937 + $0x28] sm:$0xff]
    %v944 = vld [vmem:[%s937 + $0x30] sm:$0xff]
    %v945 = vld [vmem:[%s937 + $0x38] sm:$0xff]
    %v946 = vld [vmem:[%s937 + $0x40] sm:$0xff]
    %v948 = vsel %vm264, %v938, 0
    %v951 = vsel %vm264, %v939, 0
    %v954 = vsel %vm264, %v940, 0
    %v957 = vsel %vm264, %v941, 0
    %v960 = vsel %vm264, %v942, 0
    %v963 = vsel %vm264, %v943, 0
    %v966 = vsel %vm264, %v944, 0
    %v969 = vsel %vm264, %v945, 0
    %v972 = vsel %vm264, %v946, 0
    %974 = vmatprep.subr.mxu0 %v918
    %975 = vmatpush1.msra.mxu0 %v917
    %976 = vmatprep.subr.mxu0 %v922
    %977 = vmatpush1.msra.mxu0 %v921
    %978 = vmatprep.subr.mxu0 %v926
    %979 = vmatpush1.msra.mxu0 %v925
    %980 = vmatprep.subr.mxu0 %v930
    %981 = vmatpush1.msra.mxu0 %v929
    %982 = vmatprep.subr.mxu0 %v934
    %983 = vmatpush1.msra.mxu0 %v933
    %984 = vmatprep.subr.mxu0 0.0
    %985 = vmatpush1.msra.mxu0 0.0
    %986 = vmatprep.subr.mxu0 0.0
    %987 = vmatpush1.msra.mxu0 0.0
    %988 = vmatprep.subr.mxu0 0.0
    %989 = vmatpush1.msra.mxu0 0.0
    %990 = vmatprep.subr.mxu0 0.0
    %991 = vmatpush1.msra.mxu0 0.0
    %992 = vmatprep.subr.mxu0 0.0
    %993 = vmatpush1.msra.mxu0 0.0
    %994 = vmatprep.subr.mxu0 0.0
    %995 = vmatpush1.msra.mxu0 0.0
    %996 = vmatprep.subr.mxu0 0.0
    %997 = vmatpush1.msra.mxu0 0.0
    %998 = vmatprep.subr.mxu0 0.0
    %999 = vmatpush1.msra.mxu0 0.0
    %1000 = vmatprep.subr.mxu0 0.0
    %1001 = vmatpush1.msra.mxu0 0.0
    %1002 = vmatprep.subr.mxu0 0.0
    %1003 = vmatpush1.msra.mxu0 0.0
    %1004 = vmatprep.subr.mxu0 0.0
    %1005 = vmatpush1.msra.mxu0 0.0
    %1006 = vmatprep.subr.mxu0 0.0
    %1007 = vmatpush1.msra.mxu0 0.0
    %1008 = vmatprep.subr.mxu0 0.0
    %1009 = vmatpush1.msra.mxu0 0.0
    %1010 = vmatprep.subr.mxu0 0.0
    %1011 = vmatpush1.msra.mxu0 0.0
    %1012 = vmatprep.subr.mxu0 0.0
    %1013 = vmatpush1.msra.mxu0 0.0
    %1014 = vmatprep.subr.mxu0 0.0
    %1015 = vmatpush1.msra.mxu0 0.0
    %1016 = vmatprep.subr.mxu0 0.0
    %1017 = vmatpush1.msra.mxu0 0.0
    %1018 = vmatprep.subr.mxu0 0.0
    %1019 = vmatpush1.msra.mxu0 0.0
    %1020 = vmatprep.subr.mxu0 0.0
    %1021 = vmatpush1.msra.mxu0 0.0
    %1022 = vmatprep.subr.mxu0 0.0
    %1023 = vmatpush1.msra.mxu0 0.0
    %1024 = vmatprep.subr.mxu0 0.0
    %1025 = vmatpush1.msra.mxu0 0.0
    %1026 = vmatprep.subr.mxu0 0.0
    %1027 = vmatpush1.msra.mxu0 0.0
    %1028 = vmatprep.subr.mxu0 0.0
    %1029 = vmatpush1.msra.mxu0 0.0
    %1030 = vmatprep.subr.mxu0 0.0
    %1031 = vmatpush1.msra.mxu0 0.0
    %1032 = vmatprep.subr.mxu0 0.0
    %1033 = vmatpush1.msra.mxu0 0.0
    %1034 = vmatprep.subr.mxu0 0.0
    %1035 = vmatpush1.msra.mxu0 0.0
    %1036 = vmatprep.subr.mxu0 0.0
    %1037 = vmatpush1.msra.mxu0 0.0
    %1038 = vmatprep.mubr.f32.mxu0 0.0
    %1039 = vmatmul.mubr.f32.gmra.mrb[0].mxu0 %v948
    %v1040 = vpop.f32.mrb[0].mxu0
    %v1041 = vadd.f32 0.0, %v1040
    %v1042 = vpop.f32.mrb[0].mxu0
    %v1043 = vadd.f32 0.0, %v1042
    %1044 = vmatprep.mubr.f32.mxu0 0.0
    %1045 = vmatmul.mubr.f32.gmra.mrb[0].mxu0 %v951
    %v1046 = vpop.f32.mrb[0].mxu0
    %v1047 = vadd.f32 0.0, %v1046
    %v1048 = vpop.f32.mrb[0].mxu0
    %v1049 = vadd.f32 0.0, %v1048
    %1050 = vmatprep.mubr.f32.mxu0 0.0
    %1051 = vmatmul.mubr.f32.gmra.mrb[0].mxu0 %v954
    %v1052 = vpop.f32.mrb[0].mxu0
    %v1053 = vadd.f32 0.0, %v1052
    %v1054 = vpop.f32.mrb[0].mxu0
    %v1055 = vadd.f32 0.0, %v1054
    %1056 = vmatprep.mubr.f32.mxu0 0.0
    %1057 = vmatmul.mubr.f32.gmra.mrb[0].mxu0 %v957
    %v1058 = vpop.f32.mrb[0].mxu0
    %v1059 = vadd.f32 0.0, %v1058
    %v1060 = vpop.f32.mrb[0].mxu0
    %v1061 = vadd.f32 0.0, %v1060
    %1062 = vmatprep.mubr.f32.mxu0 0.0
    %1063 = vmatmul.mubr.f32.gmra.mrb[0].mxu0 %v960
    %v1064 = vpop.f32.mrb[0].mxu0
    %v1065 = vadd.f32 0.0, %v1064
    %v1066 = vpop.f32.mrb[0].mxu0
    %v1067 = vadd.f32 0.0, %v1066
    %1068 = vmatprep.mubr.f32.mxu0 0.0
    %1069 = vmatmul.mubr.f32.gmra.mrb[0].mxu0 %v963
    %v1070 = vpop.f32.mrb[0].mxu0
    %v1071 = vadd.f32 0.0, %v1070
    %v1072 = vpop.f32.mrb[0].mxu0
    %v1073 = vadd.f32 0.0, %v1072
    %1074 = vmatprep.mubr.f32.mxu0 0.0
    %1075 = vmatmul.mubr.f32.gmra.mrb[0].mxu0 %v966
    %v1076 = vpop.f32.mrb[0].mxu0
    %v1077 = vadd.f32 0.0, %v1076
    %v1078 = vpop.f32.mrb[0].mxu0
    %v1079 = vadd.f32 0.0, %v1078
    %1080 = vmatprep.mubr.f32.mxu0 0.0
    %1081 = vmatmul.mubr.f32.gmra.mrb[0].mxu0 %v969
    %v1082 = vpop.f32.mrb[0].mxu0
    %v1083 = vadd.f32 0.0, %v1082
    %v1084 = vpop.f32.mrb[0].mxu0
    %v1085 = vadd.f32 0.0, %v1084
    %1086 = vmatprep.mubr.f32.mxu0 0.0
    %1087 = vmatmul.mubr.f32.gmra.mrb[0].mxu0 %v972
    %v1088 = vpop.f32.mrb[0].mxu0
    %v1089 = vadd.f32 0.0, %v1088
    %v1090 = vpop.f32.mrb[0].mxu0
    %v1091 = vadd.f32 0.0, %v1090
    %1092 = vdwg.mxu0
    %1093 = vmatprep.subr.mxu0 %v920
    %1094 = vmatpush1.msra.mxu0 %v919
    %1095 = vmatprep.subr.mxu0 %v924
    %1096 = vmatpush1.msra.mxu0 %v923
    %1097 = vmatprep.subr.mxu0 %v928
    %1098 = vmatpush1.msra.mxu0 %v927
    %1099 = vmatprep.subr.mxu0 %v932
    %1100 = vmatpush1.msra.mxu0 %v931
    %1101 = vmatprep.subr.mxu0 %v936
    %1102 = vmatpush1.msra.mxu0 %v935
    %1103 = vmatprep.subr.mxu0 0.0
    %1104 = vmatpush1.msra.mxu0 0.0
    %1105 = vmatprep.subr.mxu0 0.0
    %1106 = vmatpush1.msra.mxu0 0.0
    %1107 = vmatprep.subr.mxu0 0.0
    %1108 = vmatpush1.msra.mxu0 0.0
    %1109 = vmatprep.subr.mxu0 0.0
    %1110 = vmatpush1.msra.mxu0 0.0
    %1111 = vmatprep.subr.mxu0 0.0
    %1112 = vmatpush1.msra.mxu0 0.0
    %1113 = vmatprep.subr.mxu0 0.0
    %1114 = vmatpush1.msra.mxu0 0.0
    %1115 = vmatprep.subr.mxu0 0.0
    %1116 = vmatpush1.msra.mxu0 0.0
    %1117 = vmatprep.subr.mxu0 0.0
    %1118 = vmatpush1.msra.mxu0 0.0
    %1119 = vmatprep.subr.mxu0 0.0
    %1120 = vmatpush1.msra.mxu0 0.0
    %1121 = vmatprep.subr.mxu0 0.0
    %1122 = vmatpush1.msra.mxu0 0.0
    %1123 = vmatprep.subr.mxu0 0.0
    %1124 = vmatpush1.msra.mxu0 0.0
    %1125 = vmatprep.subr.mxu0 0.0
    %1126 = vmatpush1.msra.mxu0 0.0
    %1127 = vmatprep.subr.mxu0 0.0
    %1128 = vmatpush1.msra.mxu0 0.0
    %1129 = vmatprep.subr.mxu0 0.0
    %1130 = vmatpush1.msra.mxu0 0.0
    %1131 = vmatprep.subr.mxu0 0.0
    %1132 = vmatpush1.msra.mxu0 0.0
    %1133 = vmatprep.subr.mxu0 0.0
    %1134 = vmatpush1.msra.mxu0 0.0
    %1135 = vmatprep.subr.mxu0 0.0
    %1136 = vmatpush1.msra.mxu0 0.0
    %1137 = vmatprep.subr.mxu0 0.0
    %1138 = vmatpush1.msra.mxu0 0.0
    %1139 = vmatprep.subr.mxu0 0.0
    %1140 = vmatpush1.msra.mxu0 0.0
    %1141 = vmatprep.subr.mxu0 0.0
    %1142 = vmatpush1.msra.mxu0 0.0
    %1143 = vmatprep.subr.mxu0 0.0
    %1144 = vmatpush1.msra.mxu0 0.0
    %1145 = vmatprep.subr.mxu0 0.0
    %1146 = vmatpush1.msra.mxu0 0.0
    %1147 = vmatprep.subr.mxu0 0.0
    %1148 = vmatpush1.msra.mxu0 0.0
    %1149 = vmatprep.subr.mxu0 0.0
    %1150 = vmatpush1.msra.mxu0 0.0
    %1151 = vmatprep.subr.mxu0 0.0
    %1152 = vmatpush1.msra.mxu0 0.0
    %1153 = vmatprep.subr.mxu0 0.0
    %1154 = vmatpush1.msra.mxu0 0.0
    %1155 = vmatprep.subr.mxu0 0.0
    %1156 = vmatpush1.msra.mxu0 0.0
    %1157 = vmatprep.mubr.f32.mxu0 0.0
    %1158 = vmatmul.mubr.f32.gmra.mrb[0].mxu0 %v948
    %v1159 = vpop.f32.mrb[0].mxu0
    %v1160 = vadd.f32 0.0, %v1159
    %v1161 = vpop.f32.mrb[0].mxu0
    %v1162 = vadd.f32 0.0, %v1161
    %1163 = vmatprep.mubr.f32.mxu0 0.0
    %1164 = vmatmul.mubr.f32.gmra.mrb[0].mxu0 %v951
    %v1165 = vpop.f32.mrb[0].mxu0
    %v1166 = vadd.f32 0.0, %v1165
    %v1167 = vpop.f32.mrb[0].mxu0
    %v1168 = vadd.f32 0.0, %v1167
    %1169 = vmatprep.mubr.f32.mxu0 0.0
    %1170 = vmatmul.mubr.f32.gmra.mrb[0].mxu0 %v954
    %v1171 = vpop.f32.mrb[0].mxu0
    %v1172 = vadd.f32 0.0, %v1171
    %v1173 = vpop.f32.mrb[0].mxu0
    %v1174 = vadd.f32 0.0, %v1173
    %1175 = vmatprep.mubr.f32.mxu0 0.0
    %1176 = vmatmul.mubr.f32.gmra.mrb[0].mxu0 %v957
    %v1177 = vpop.f32.mrb[0].mxu0
    %v1178 = vadd.f32 0.0, %v1177
    %v1179 = vpop.f32.mrb[0].mxu0
    %v1180 = vadd.f32 0.0, %v1179
    %1181 = vmatprep.mubr.f32.mxu0 0.0
    %1182 = vmatmul.mubr.f32.gmra.mrb[0].mxu0 %v960
    %v1183 = vpop.f32.mrb[0].mxu0
    %v1184 = vadd.f32 0.0, %v1183
    %v1185 = vpop.f32.mrb[0].mxu0
    %v1186 = vadd.f32 0.0, %v1185
    %1187 = vmatprep.mubr.f32.mxu0 0.0
    %1188 = vmatmul.mubr.f32.gmra.mrb[0].mxu0 %v963
    %v1189 = vpop.f32.mrb[0].mxu0
    %v1190 = vadd.f32 0.0, %v1189
    %v1191 = vpop.f32.mrb[0].mxu0
    %v1192 = vadd.f32 0.0, %v1191
    %1193 = vmatprep.mubr.f32.mxu0 0.0
    %1194 = vmatmul.mubr.f32.gmra.mrb[0].mxu0 %v966
    %v1195 = vpop.f32.mrb[0].mxu0
    %v1196 = vadd.f32 0.0, %v1195
    %v1197 = vpop.f32.mrb[0].mxu0
    %v1198 = vadd.f32 0.0, %v1197
    %1199 = vmatprep.mubr.f32.mxu0 0.0
    %1200 = vmatmul.mubr.f32.gmra.mrb[0].mxu0 %v969
    %v1201 = vpop.f32.mrb[0].mxu0
    %v1202 = vadd.f32 0.0, %v1201
    %v1203 = vpop.f32.mrb[0].mxu0
    %v1204 = vadd.f32 0.0, %v1203
    %1205 = vmatprep.mubr.f32.mxu0 0.0
    %1206 = vmatmul.mubr.f32.gmra.mrb[0].mxu0 %v972
    %v1207 = vpop.f32.mrb[0].mxu0
    %v1208 = vadd.f32 0.0, %v1207
    %v1209 = vpop.f32.mrb[0].mxu0
    %v1210 = vadd.f32 0.0, %v1209
    %1211 = vdwg.mxu0
    %s1212 = scalar_lea.vmem %s4, 8
    %v1213 = vld [vmem:[%s1212] sm:$0xff]
    %1215 = vset.pattern.permute.xlu0 0
    %1216 = vperm.xlu0 %1215, %v1213
    %v1217 = vpop.permute.xlu0 %1216
    %v1219 = vadd.f32 %v1065, %v1217
    %v1220 = vadd.f32 %v1067, %v1217
    %v1221 = vadd.f32 %v1184, %v1217
    %v1222 = vadd.f32 %v1186, %v1217
    %1223 = vrot.lane.b32.xlu0 %v1041, 17
    %v1224 = vpop.permute.xlu0 %1223
    %1225 = vrot.lane.b32.xlu0 %v1043, 17
    %v1226 = vpop.permute.xlu0 %1225
    %1227 = vrot.lane.b32.xlu0 %v1160, 17
    %v1228 = vpop.permute.xlu0 %1227
    %1229 = vrot.lane.b32.xlu0 %v1162, 17
    %v1230 = vpop.permute.xlu0 %1229
    %v1231 = vsel %vm550, %v1228, %v1230
    %v1232 = vsel %vm550, %v1226, %v1228
    %v1233 = vsel %vm550, %v1224, %v1226
    %v1234 = vsel %vm550, %v1230, %v1224
    %v1235 = vld [vmem:[%s5] sm:$0xff]
    %v1236 = vld [vmem:[%s5 + $0x8] sm:$0xff]
    %v1237 = vld [vmem:[%s5 + $0x10] sm:$0xff]
    %v1238 = vld [vmem:[%s5 + $0x18] sm:$0xff]
    %v1239 = vmul.f32 %v1234, %v1235
    %v1240 = vmul.f32 %v1233, %v1236
    %v1241 = vmul.f32 %v1232, %v1237
    %v1242 = vmul.f32 %v1231, %v1238
    %v1243 = vadd.f32 %v1219, %v1239
    %v1244 = vadd.f32 %v1220, %v1240
    %v1245 = vadd.f32 %v1221, %v1241
    %v1246 = vadd.f32 %v1222, %v1242
    %1247 = vrot.lane.b32.xlu0 %v1047, 16
    %v1248 = vpop.permute.xlu0 %1247
    %1249 = vrot.lane.b32.xlu0 %v1049, 16
    %v1250 = vpop.permute.xlu0 %1249
    %1251 = vrot.lane.b32.xlu0 %v1166, 16
    %v1252 = vpop.permute.xlu0 %1251
    %1253 = vrot.lane.b32.xlu0 %v1168, 16
    %v1254 = vpop.permute.xlu0 %1253
    %v1255 = vsel %vm575, %v1252, %v1254
    %v1256 = vsel %vm575, %v1250, %v1252
    %v1257 = vsel %vm575, %v1248, %v1250
    %v1258 = vsel %vm575, %v1254, %v1248
    %v1259 = vld [vmem:[%s580] sm:$0xff]
    %v1260 = vld [vmem:[%s580 + $0x8] sm:$0xff]
    %v1261 = vld [vmem:[%s580 + $0x10] sm:$0xff]
    %v1262 = vld [vmem:[%s580 + $0x18] sm:$0xff]
    %v1263 = vmul.f32 %v1258, %v1259
    %v1264 = vmul.f32 %v1257, %v1260
    %v1265 = vmul.f32 %v1256, %v1261
    %v1266 = vmul.f32 %v1255, %v1262
    %v1267 = vadd.f32 %v1243, %v1263
    %v1268 = vadd.f32 %v1244, %v1264
    %v1269 = vadd.f32 %v1245, %v1265
    %v1270 = vadd.f32 %v1246, %v1266
    %1271 = vrot.lane.b32.xlu0 %v1053, 15
    %v1272 = vpop.permute.xlu0 %1271
    %1273 = vrot.lane.b32.xlu0 %v1055, 15
    %v1274 = vpop.permute.xlu0 %1273
    %1275 = vrot.lane.b32.xlu0 %v1172, 15
    %v1276 = vpop.permute.xlu0 %1275
    %1277 = vrot.lane.b32.xlu0 %v1174, 15
    %v1278 = vpop.permute.xlu0 %1277
    %v1279 = vsel %vm601, %v1276, %v1278
    %v1280 = vsel %vm601, %v1274, %v1276
    %v1281 = vsel %vm601, %v1272, %v1274
    %v1282 = vsel %vm601, %v1278, %v1272
    %v1283 = vld [vmem:[%s606] sm:$0xff]
    %v1284 = vld [vmem:[%s606 + $0x8] sm:$0xff]
    %v1285 = vld [vmem:[%s606 + $0x10] sm:$0xff]
    %v1286 = vld [vmem:[%s606 + $0x18] sm:$0xff]
    %v1287 = vmul.f32 %v1282, %v1283
    %v1288 = vmul.f32 %v1281, %v1284
    %v1289 = vmul.f32 %v1280, %v1285
    %v1290 = vmul.f32 %v1279, %v1286
    %v1291 = vadd.f32 %v1267, %v1287
    %v1292 = vadd.f32 %v1268, %v1288
    %v1293 = vadd.f32 %v1269, %v1289
    %v1294 = vadd.f32 %v1270, %v1290
    %1295 = vrot.lane.b32.xlu0 %v1059, 1
    %v1296 = vpop.permute.xlu0 %1295
    %1297 = vrot.lane.b32.xlu0 %v1061, 1
    %v1298 = vpop.permute.xlu0 %1297
    %1299 = vrot.lane.b32.xlu0 %v1178, 1
    %v1300 = vpop.permute.xlu0 %1299
    %1301 = vrot.lane.b32.xlu0 %v1180, 1
    %v1302 = vpop.permute.xlu0 %1301
    %v1303 = vsel %vm627, %v1300, %v1302
    %v1304 = vsel %vm627, %v1298, %v1300
    %v1305 = vsel %vm627, %v1296, %v1298
    %v1306 = vsel %vm627, %v1302, %v1296
    %v1307 = vld [vmem:[%s632] sm:$0xff]
    %v1308 = vld [vmem:[%s632 + $0x8] sm:$0xff]
    %v1309 = vld [vmem:[%s632 + $0x10] sm:$0xff]
    %v1310 = vld [vmem:[%s632 + $0x18] sm:$0xff]
    %v1311 = vmul.f32 %v1306, %v1307
    %v1312 = vmul.f32 %v1305, %v1308
    %v1313 = vmul.f32 %v1304, %v1309
    %v1314 = vmul.f32 %v1303, %v1310
    %v1315 = vadd.f32 %v1291, %v1311
    %v1316 = vadd.f32 %v1292, %v1312
    %v1317 = vadd.f32 %v1293, %v1313
    %v1318 = vadd.f32 %v1294, %v1314
    %1319 = vrot.lane.b32.xlu0 %v1071, 127
    %v1320 = vpop.permute.xlu0 %1319
    %1321 = vrot.lane.b32.xlu0 %v1073, 127
    %v1322 = vpop.permute.xlu0 %1321
    %1323 = vrot.lane.b32.xlu0 %v1190, 127
    %v1324 = vpop.permute.xlu0 %1323
    %1325 = vrot.lane.b32.xlu0 %v1192, 127
    %v1326 = vpop.permute.xlu0 %1325
    %v1327 = vsel %vm653, %v1324, %v1326
    %v1328 = vsel %vm653, %v1322, %v1324
    %v1329 = vsel %vm653, %v1320, %v1322
    %v1330 = vsel %vm653, %v1326, %v1320
    %v1331 = vld [vmem:[%s658] sm:$0xff]
    %v1332 = vld [vmem:[%s658 + $0x8] sm:$0xff]
    %v1333 = vld [vmem:[%s658 + $0x10] sm:$0xff]
    %v1334 = vld [vmem:[%s658 + $0x18] sm:$0xff]
    %v1335 = vmul.f32 %v1329, %v1331
    %v1336 = vmul.f32 %v1328, %v1332
    %v1337 = vmul.f32 %v1327, %v1333
    %v1338 = vmul.f32 %v1330, %v1334
    %v1339 = vadd.f32 %v1315, %v1335
    %v1340 = vadd.f32 %v1316, %v1336
    %v1341 = vadd.f32 %v1317, %v1337
    %v1342 = vadd.f32 %v1318, %v1338
    %1343 = vrot.lane.b32.xlu0 %v1077, 113
    %v1344 = vpop.permute.xlu0 %1343
    %1345 = vrot.lane.b32.xlu0 %v1079, 113
    %v1346 = vpop.permute.xlu0 %1345
    %1347 = vrot.lane.b32.xlu0 %v1196, 113
    %v1348 = vpop.permute.xlu0 %1347
    %1349 = vrot.lane.b32.xlu0 %v1198, 113
    %v1350 = vpop.permute.xlu0 %1349
    %v1351 = vsel %vm679, %v1348, %v1350
    %v1352 = vsel %vm679, %v1346, %v1348
    %v1353 = vsel %vm679, %v1344, %v1346
    %v1354 = vsel %vm679, %v1350, %v1344
    %v1355 = vld [vmem:[%s684] sm:$0xff]
    %v1356 = vld [vmem:[%s684 + $0x8] sm:$0xff]
    %v1357 = vld [vmem:[%s684 + $0x10] sm:$0xff]
    %v1358 = vld [vmem:[%s684 + $0x18] sm:$0xff]
    %v1359 = vmul.f32 %v1353, %v1355
    %v1360 = vmul.f32 %v1352, %v1356
    %v1361 = vmul.f32 %v1351, %v1357
    %v1362 = vmul.f32 %v1354, %v1358
    %v1363 = vadd.f32 %v1339, %v1359
    %v1364 = vadd.f32 %v1340, %v1360
    %v1365 = vadd.f32 %v1341, %v1361
    %v1366 = vadd.f32 %v1342, %v1362
    %1367 = vrot.lane.b32.xlu0 %v1083, 112
    %v1368 = vpop.permute.xlu0 %1367
    %1369 = vrot.lane.b32.xlu0 %v1085, 112
    %v1370 = vpop.permute.xlu0 %1369
    %1371 = vrot.lane.b32.xlu0 %v1202, 112
    %v1372 = vpop.permute.xlu0 %1371
    %1373 = vrot.lane.b32.xlu0 %v1204, 112
    %v1374 = vpop.permute.xlu0 %1373
    %v1375 = vsel %vm705, %v1372, %v1374
    %v1376 = vsel %vm705, %v1370, %v1372
    %v1377 = vsel %vm705, %v1368, %v1370
    %v1378 = vsel %vm705, %v1374, %v1368
    %v1379 = vld [vmem:[%s710] sm:$0xff]
    %v1380 = vld [vmem:[%s710 + $0x8] sm:$0xff]
    %v1381 = vld [vmem:[%s710 + $0x10] sm:$0xff]
    %v1382 = vld [vmem:[%s710 + $0x18] sm:$0xff]
    %v1383 = vmul.f32 %v1377, %v1379
    %v1384 = vmul.f32 %v1376, %v1380
    %v1385 = vmul.f32 %v1375, %v1381
    %v1386 = vmul.f32 %v1378, %v1382
    %v1387 = vadd.f32 %v1363, %v1383
    %v1388 = vadd.f32 %v1364, %v1384
    %v1389 = vadd.f32 %v1365, %v1385
    %v1390 = vadd.f32 %v1366, %v1386
    %1391 = vrot.lane.b32.xlu0 %v1089, 111
    %v1392 = vpop.permute.xlu0 %1391
    %1393 = vrot.lane.b32.xlu0 %v1091, 111
    %v1394 = vpop.permute.xlu0 %1393
    %1395 = vrot.lane.b32.xlu0 %v1208, 111
    %v1396 = vpop.permute.xlu0 %1395
    %1397 = vrot.lane.b32.xlu0 %v1210, 111
    %v1398 = vpop.permute.xlu0 %1397
    %v1399 = vsel %vm731, %v1396, %v1398
    %v1400 = vsel %vm731, %v1394, %v1396
    %v1401 = vsel %vm731, %v1392, %v1394
    %v1402 = vsel %vm731, %v1398, %v1392
    %v1403 = vld [vmem:[%s736] sm:$0xff]
    %v1404 = vld [vmem:[%s736 + $0x8] sm:$0xff]
    %v1405 = vld [vmem:[%s736 + $0x10] sm:$0xff]
    %v1406 = vld [vmem:[%s736 + $0x18] sm:$0xff]
    %v1407 = vmul.f32 %v1401, %v1403
    %v1408 = vmul.f32 %v1400, %v1404
    %v1409 = vmul.f32 %v1399, %v1405
    %v1410 = vmul.f32 %v1402, %v1406
    %v1411 = vadd.f32 %v1387, %v1407
    %v1412 = vadd.f32 %v1388, %v1408
    %v1413 = vadd.f32 %v1389, %v1409
    %v1414 = vadd.f32 %v1390, %v1410
    %1415 = vst [vmem:[#allocation2 + $0x40] sm:$0xff] %v1411
    %1416 = vst [vmem:[#allocation2 + $0x48] sm:$0xff] %v1412
    %1417 = vst [vmem:[#allocation2 + $0x50] sm:$0xff] %v1413
    %1418 = vst [vmem:[#allocation2 + $0x58] sm:$0xff] %v1414
    %v1419 = vld [vmem:[#allocation2] sm:$0xff]
    %v1420 = vld [vmem:[#allocation2 + $0x8] sm:$0xff]
    %v1421 = vld [vmem:[#allocation2 + $0x10] sm:$0xff]
    %v1422 = vld [vmem:[#allocation2 + $0x18] sm:$0xff]
    %v1423 = vld [vmem:[#allocation2 + $0x20] sm:$0xff]
    %v1424 = vld [vmem:[#allocation2 + $0x28] sm:$0xff]
    %v1425 = vld [vmem:[#allocation2 + $0x30] sm:$0xff]
    %v1426 = vld [vmem:[#allocation2 + $0x38] sm:$0xff]
    %v1427 = vld [vmem:[#allocation2 + $0x40] sm:$0xff]
    %v1428 = vld [vmem:[#allocation2 + $0x48] sm:$0xff]
    %v1429 = vld [vmem:[#allocation2 + $0x50] sm:$0xff]
    %v1430 = vld [vmem:[#allocation2 + $0x58] sm:$0xff]
    %v1431 = vld [vmem:[#allocation2 + $0x60] sm:$0xff]
    %v1432 = vld [vmem:[#allocation2 + $0x68] sm:$0xff]
    %v1433 = vld [vmem:[#allocation2 + $0x70] sm:$0xff]
    %v1434 = vld [vmem:[#allocation2 + $0x78] sm:$0xff]
    %v1435 = vld [vmem:[#allocation2 + $0x80] sm:$0xff]
    %v1436 = vld [vmem:[#allocation2 + $0x88] sm:$0xff]
    %v1437 = vld [vmem:[#allocation2 + $0x90] sm:$0xff]
    %v1438 = vld [vmem:[#allocation2 + $0x98] sm:$0xff]
    %s1439 = scalar_lea.vmem %s1, 80
    %v1440 = vld [vmem:[%s1439] sm:$0xff]
    %v1441 = vld [vmem:[%s1439 + $0x8] sm:$0xff]
    %v1442 = vld [vmem:[%s1439 + $0x10] sm:$0xff]
    %v1443 = vld [vmem:[%s1439 + $0x18] sm:$0xff]
    %v1444 = vld [vmem:[%s1439 + $0x20] sm:$0xff]
    %1446 = vset.pattern.permute.xlu0 0
    %1447 = vperm.xlu0 %1446, %v1440
    %v1448 = vpop.permute.xlu0 %1447
    %1451 = vset.pattern.permute.xlu0 0
    %1452 = vperm.xlu0 %1451, %v1441
    %v1453 = vpop.permute.xlu0 %1452
    %1456 = vset.pattern.permute.xlu0 0
    %1457 = vperm.xlu0 %1456, %v1442
    %v1458 = vpop.permute.xlu0 %1457
    %1461 = vset.pattern.permute.xlu0 0
    %1462 = vperm.xlu0 %1461, %v1443
    %v1463 = vpop.permute.xlu0 %1462
    %1466 = vset.pattern.permute.xlu0 0
    %1467 = vperm.xlu0 %1466, %v1444
    %v1468 = vpop.permute.xlu0 %1467
    %v1470 = vmul.f32 %v1419, %v1448
    %v1471 = vmul.f32 %v1420, %v1448
    %v1472 = vmul.f32 %v1421, %v1448
    %v1473 = vmul.f32 %v1422, %v1448
    %v1474 = vmul.f32 %v1423, %v1453
    %v1475 = vmul.f32 %v1424, %v1453
    %v1476 = vmul.f32 %v1425, %v1453
    %v1477 = vmul.f32 %v1426, %v1453
    %v1478 = vmul.f32 %v1427, %v1458
    %v1479 = vmul.f32 %v1428, %v1458
    %v1480 = vmul.f32 %v1429, %v1458
    %v1481 = vmul.f32 %v1430, %v1458
    %v1482 = vmul.f32 %v1431, %v1463
    %v1483 = vmul.f32 %v1432, %v1463
    %v1484 = vmul.f32 %v1433, %v1463
    %v1485 = vmul.f32 %v1434, %v1463
    %v1486 = vmul.f32 %v1435, %v1468
    %v1487 = vmul.f32 %v1436, %v1468
    %v1488 = vmul.f32 %v1437, %v1468
    %v1489 = vmul.f32 %v1438, %v1468
    %s1490 = scalar_lea.vmem %s2, 80
    %v1491 = vld [vmem:[%s1490] sm:$0xff]
    %v1492 = vld [vmem:[%s1490 + $0x8] sm:$0xff]
    %v1493 = vld [vmem:[%s1490 + $0x10] sm:$0xff]
    %v1494 = vld [vmem:[%s1490 + $0x18] sm:$0xff]
    %v1495 = vld [vmem:[%s1490 + $0x20] sm:$0xff]
    %1497 = vset.pattern.permute.xlu0 0
    %1498 = vperm.xlu0 %1497, %v1491
    %v1499 = vpop.permute.xlu0 %1498
    %1502 = vset.pattern.permute.xlu0 0
    %1503 = vperm.xlu0 %1502, %v1492
    %v1504 = vpop.permute.xlu0 %1503
    %1507 = vset.pattern.permute.xlu0 0
    %1508 = vperm.xlu0 %1507, %v1493
    %v1509 = vpop.permute.xlu0 %1508
    %1512 = vset.pattern.permute.xlu0 0
    %1513 = vperm.xlu0 %1512, %v1494
    %v1514 = vpop.permute.xlu0 %1513
    %1517 = vset.pattern.permute.xlu0 0
    %1518 = vperm.xlu0 %1517, %v1495
    %v1519 = vpop.permute.xlu0 %1518
    %v1521 = vadd.f32 %v1470, %v1499
    %v1522 = vadd.f32 %v1471, %v1499
    %v1523 = vadd.f32 %v1472, %v1499
    %v1524 = vadd.f32 %v1473, %v1499
    %v1525 = vadd.f32 %v1474, %v1504
    %v1526 = vadd.f32 %v1475, %v1504
    %v1527 = vadd.f32 %v1476, %v1504
    %v1528 = vadd.f32 %v1477, %v1504
    %v1529 = vadd.f32 %v1478, %v1509
    %v1530 = vadd.f32 %v1479, %v1509
    %v1531 = vadd.f32 %v1480, %v1509
    %v1532 = vadd.f32 %v1481, %v1509
    %v1533 = vadd.f32 %v1482, %v1514
    %v1534 = vadd.f32 %v1483, %v1514
    %v1535 = vadd.f32 %v1484, %v1514
    %v1536 = vadd.f32 %v1485, %v1514
    %v1537 = vadd.f32 %v1486, %v1519
    %v1538 = vadd.f32 %v1487, %v1519
    %v1539 = vadd.f32 %v1488, %v1519
    %v1540 = vadd.f32 %v1489, %v1519
    %vm1541 = vcmp.gt.f32.partialorder %v1521, 0.0
    %vm1542 = vcmp.gt.f32.partialorder %v1522, 0.0
    %vm1543 = vcmp.gt.f32.partialorder %v1523, 0.0
    %vm1544 = vcmp.gt.f32.partialorder %v1524, 0.0
    %vm1545 = vcmp.gt.f32.partialorder %v1525, 0.0
    %vm1546 = vcmp.gt.f32.partialorder %v1526, 0.0
    %vm1547 = vcmp.gt.f32.partialorder %v1527, 0.0
    %vm1548 = vcmp.gt.f32.partialorder %v1528, 0.0
    %vm1549 = vcmp.gt.f32.partialorder %v1529, 0.0
    %vm1550 = vcmp.gt.f32.partialorder %v1530, 0.0
    %vm1551 = vcmp.gt.f32.partialorder %v1531, 0.0
    %vm1552 = vcmp.gt.f32.partialorder %v1532, 0.0
    %vm1553 = vcmp.gt.f32.partialorder %v1533, 0.0
    %vm1554 = vcmp.gt.f32.partialorder %v1534, 0.0
    %vm1555 = vcmp.gt.f32.partialorder %v1535, 0.0
    %vm1556 = vcmp.gt.f32.partialorder %v1536, 0.0
    %vm1557 = vcmp.gt.f32.partialorder %v1537, 0.0
    %vm1558 = vcmp.gt.f32.partialorder %v1538, 0.0
    %vm1559 = vcmp.gt.f32.partialorder %v1539, 0.0
    %vm1560 = vcmp.gt.f32.partialorder %v1540, 0.0
    %s1561 = sld [smem:[#allocation3 + $0x2]]
    %v1562 = vstv %s1561
    %v1563 = vmul.f32 %v1562, %v1521
    %v1564 = vmul.f32 %v1562, %v1522
    %v1565 = vmul.f32 %v1562, %v1523
    %v1566 = vmul.f32 %v1562, %v1524
    %v1567 = vmul.f32 %v1562, %v1525
    %v1568 = vmul.f32 %v1562, %v1526
    %v1569 = vmul.f32 %v1562, %v1527
    %v1570 = vmul.f32 %v1562, %v1528
    %v1571 = vmul.f32 %v1562, %v1529
    %v1572 = vmul.f32 %v1562, %v1530
    %v1573 = vmul.f32 %v1562, %v1531
    %v1574 = vmul.f32 %v1562, %v1532
    %v1575 = vmul.f32 %v1562, %v1533
    %v1576 = vmul.f32 %v1562, %v1534
    %v1577 = vmul.f32 %v1562, %v1535
    %v1578 = vmul.f32 %v1562, %v1536
    %v1579 = vmul.f32 %v1562, %v1537
    %v1580 = vmul.f32 %v1562, %v1538
    %v1581 = vmul.f32 %v1562, %v1539
    %v1582 = vmul.f32 %v1562, %v1540
    %v1583 = vsel %vm1541, %v1521, %v1563
    %v1584 = vsel %vm1542, %v1522, %v1564
    %v1585 = vsel %vm1543, %v1523, %v1565
    %v1586 = vsel %vm1544, %v1524, %v1566
    %v1587 = vsel %vm1545, %v1525, %v1567
    %v1588 = vsel %vm1546, %v1526, %v1568
    %v1589 = vsel %vm1547, %v1527, %v1569
    %v1590 = vsel %vm1548, %v1528, %v1570
    %v1591 = vsel %vm1549, %v1529, %v1571
    %v1592 = vsel %vm1550, %v1530, %v1572
    %v1593 = vsel %vm1551, %v1531, %v1573
    %v1594 = vsel %vm1552, %v1532, %v1574
    %v1595 = vsel %vm1553, %v1533, %v1575
    %v1596 = vsel %vm1554, %v1534, %v1576
    %v1597 = vsel %vm1555, %v1535, %v1577
    %v1598 = vsel %vm1556, %v1536, %v1578
    %v1599 = vsel %vm1557, %v1537, %v1579
    %v1600 = vsel %vm1558, %v1538, %v1580
    %v1601 = vsel %vm1559, %v1539, %v1581
    %v1602 = vsel %vm1560, %v1540, %v1582
    %s1603 = scalar_lea.vmem %s3, 144
    %v1604 = vld [vmem:[%s1603] sm:$0xff]
    %v1605 = vld [vmem:[%s1603 + $0x8] sm:$0xff]
    %v1606 = vld [vmem:[%s1603 + $0x10] sm:$0xff]
    %v1607 = vld [vmem:[%s1603 + $0x18] sm:$0xff]
    %v1608 = vld [vmem:[%s1603 + $0x20] sm:$0xff]
    %v1609 = vld [vmem:[%s1603 + $0x28] sm:$0xff]
    %v1610 = vld [vmem:[%s1603 + $0x30] sm:$0xff]
    %v1611 = vld [vmem:[%s1603 + $0x38] sm:$0xff]
    %v1612 = vld [vmem:[%s1603 + $0x40] sm:$0xff]
    %v1614 = vsel %vm264, %v1604, 0
    %v1617 = vsel %vm264, %v1605, 0
    %v1620 = vsel %vm264, %v1606, 0
    %v1623 = vsel %vm264, %v1607, 0
    %v1626 = vsel %vm264, %v1608, 0
    %v1629 = vsel %vm264, %v1609, 0
    %v1632 = vsel %vm264, %v1610, 0
    %v1635 = vsel %vm264, %v1611, 0
    %v1638 = vsel %vm264, %v1612, 0
    %1640 = vmatprep.subr.mxu0 %v1584
    %1641 = vmatpush1.msra.mxu0 %v1583
    %1642 = vmatprep.subr.mxu0 %v1588
    %1643 = vmatpush1.msra.mxu0 %v1587
    %1644 = vmatprep.subr.mxu0 %v1592
    %1645 = vmatpush1.msra.mxu0 %v1591
    %1646 = vmatprep.subr.mxu0 %v1596
    %1647 = vmatpush1.msra.mxu0 %v1595
    %1648 = vmatprep.subr.mxu0 %v1600
    %1649 = vmatpush1.msra.mxu0 %v1599
    %1650 = vmatprep.subr.mxu0 0.0
    %1651 = vmatpush1.msra.mxu0 0.0
    %1652 = vmatprep.subr.mxu0 0.0
    %1653 = vmatpush1.msra.mxu0 0.0
    %1654 = vmatprep.subr.mxu0 0.0
    %1655 = vmatpush1.msra.mxu0 0.0
    %1656 = vmatprep.subr.mxu0 0.0
    %1657 = vmatpush1.msra.mxu0 0.0
    %1658 = vmatprep.subr.mxu0 0.0
    %1659 = vmatpush1.msra.mxu0 0.0
    %1660 = vmatprep.subr.mxu0 0.0
    %1661 = vmatpush1.msra.mxu0 0.0
    %1662 = vmatprep.subr.mxu0 0.0
    %1663 = vmatpush1.msra.mxu0 0.0
    %1664 = vmatprep.subr.mxu0 0.0
    %1665 = vmatpush1.msra.mxu0 0.0
    %1666 = vmatprep.subr.mxu0 0.0
    %1667 = vmatpush1.msra.mxu0 0.0
    %1668 = vmatprep.subr.mxu0 0.0
    %1669 = vmatpush1.msra.mxu0 0.0
    %1670 = vmatprep.subr.mxu0 0.0
    %1671 = vmatpush1.msra.mxu0 0.0
    %1672 = vmatprep.subr.mxu0 0.0
    %1673 = vmatpush1.msra.mxu0 0.0
    %1674 = vmatprep.subr.mxu0 0.0
    %1675 = vmatpush1.msra.mxu0 0.0
    %1676 = vmatprep.subr.mxu0 0.0
    %1677 = vmatpush1.msra.mxu0 0.0
    %1678 = vmatprep.subr.mxu0 0.0
    %1679 = vmatpush1.msra.mxu0 0.0
    %1680 = vmatprep.subr.mxu0 0.0
    %1681 = vmatpush1.msra.mxu0 0.0
    %1682 = vmatprep.subr.mxu0 0.0
    %1683 = vmatpush1.msra.mxu0 0.0
    %1684 = vmatprep.subr.mxu0 0.0
    %1685 = vmatpush1.msra.mxu0 0.0
    %1686 = vmatprep.subr.mxu0 0.0
    %1687 = vmatpush1.msra.mxu0 0.0
    %1688 = vmatprep.subr.mxu0 0.0
    %1689 = vmatpush1.msra.mxu0 0.0
    %1690 = vmatprep.subr.mxu0 0.0
    %1691 = vmatpush1.msra.mxu0 0.0
    %1692 = vmatprep.subr.mxu0 0.0
    %1693 = vmatpush1.msra.mxu0 0.0
    %1694 = vmatprep.subr.mxu0 0.0
    %1695 = vmatpush1.msra.mxu0 0.0
    %1696 = vmatprep.subr.mxu0 0.0
    %1697 = vmatpush1.msra.mxu0 0.0
    %1698 = vmatprep.subr.mxu0 0.0
    %1699 = vmatpush1.msra.mxu0 0.0
    %1700 = vmatprep.subr.mxu0 0.0
    %1701 = vmatpush1.msra.mxu0 0.0
    %1702 = vmatprep.subr.mxu0 0.0
    %1703 = vmatpush1.msra.mxu0 0.0
    %1704 = vmatprep.mubr.f32.mxu0 0.0
    %1705 = vmatmul.mubr.f32.gmra.mrb[0].mxu0 %v1614
    %v1706 = vpop.f32.mrb[0].mxu0
    %v1707 = vadd.f32 0.0, %v1706
    %v1708 = vpop.f32.mrb[0].mxu0
    %v1709 = vadd.f32 0.0, %v1708
    %1710 = vmatprep.mubr.f32.mxu0 0.0
    %1711 = vmatmul.mubr.f32.gmra.mrb[0].mxu0 %v1617
    %v1712 = vpop.f32.mrb[0].mxu0
    %v1713 = vadd.f32 0.0, %v1712
    %v1714 = vpop.f32.mrb[0].mxu0
    %v1715 = vadd.f32 0.0, %v1714
    %1716 = vmatprep.mubr.f32.mxu0 0.0
    %1717 = vmatmul.mubr.f32.gmra.mrb[0].mxu0 %v1620
    %v1718 = vpop.f32.mrb[0].mxu0
    %v1719 = vadd.f32 0.0, %v1718
    %v1720 = vpop.f32.mrb[0].mxu0
    %v1721 = vadd.f32 0.0, %v1720
    %1722 = vmatprep.mubr.f32.mxu0 0.0
    %1723 = vmatmul.mubr.f32.gmra.mrb[0].mxu0 %v1623
    %v1724 = vpop.f32.mrb[0].mxu0
    %v1725 = vadd.f32 0.0, %v1724
    %v1726 = vpop.f32.mrb[0].mxu0
    %v1727 = vadd.f32 0.0, %v1726
    %1728 = vmatprep.mubr.f32.mxu0 0.0
    %1729 = vmatmul.mubr.f32.gmra.mrb[0].mxu0 %v1626
    %v1730 = vpop.f32.mrb[0].mxu0
    %v1731 = vadd.f32 0.0, %v1730
    %v1732 = vpop.f32.mrb[0].mxu0
    %v1733 = vadd.f32 0.0, %v1732
    %1734 = vmatprep.mubr.f32.mxu0 0.0
    %1735 = vmatmul.mubr.f32.gmra.mrb[0].mxu0 %v1629
    %v1736 = vpop.f32.mrb[0].mxu0
    %v1737 = vadd.f32 0.0, %v1736
    %v1738 = vpop.f32.mrb[0].mxu0
    %v1739 = vadd.f32 0.0, %v1738
    %1740 = vmatprep.mubr.f32.mxu0 0.0
    %1741 = vmatmul.mubr.f32.gmra.mrb[0].mxu0 %v1632
    %v1742 = vpop.f32.mrb[0].mxu0
    %v1743 = vadd.f32 0.0, %v1742
    %v1744 = vpop.f32.mrb[0].mxu0
    %v1745 = vadd.f32 0.0, %v1744
    %1746 = vmatprep.mubr.f32.mxu0 0.0
    %1747 = vmatmul.mubr.f32.gmra.mrb[0].mxu0 %v1635
    %v1748 = vpop.f32.mrb[0].mxu0
    %v1749 = vadd.f32 0.0, %v1748
    %v1750 = vpop.f32.mrb[0].mxu0
    %v1751 = vadd.f32 0.0, %v1750
    %1752 = vmatprep.mubr.f32.mxu0 0.0
    %1753 = vmatmul.mubr.f32.gmra.mrb[0].mxu0 %v1638
    %v1754 = vpop.f32.mrb[0].mxu0
    %v1755 = vadd.f32 0.0, %v1754
    %v1756 = vpop.f32.mrb[0].mxu0
    %v1757 = vadd.f32 0.0, %v1756
    %1758 = vdwg.mxu0
    %1759 = vmatprep.subr.mxu0 %v1586
    %1760 = vmatpush1.msra.mxu0 %v1585
    %1761 = vmatprep.subr.mxu0 %v1590
    %1762 = vmatpush1.msra.mxu0 %v1589
    %1763 = vmatprep.subr.mxu0 %v1594
    %1764 = vmatpush1.msra.mxu0 %v1593
    %1765 = vmatprep.subr.mxu0 %v1598
    %1766 = vmatpush1.msra.mxu0 %v1597
    %1767 = vmatprep.subr.mxu0 %v1602
    %1768 = vmatpush1.msra.mxu0 %v1601
    %1769 = vmatprep.subr.mxu0 0.0
    %1770 = vmatpush1.msra.mxu0 0.0
    %1771 = vmatprep.subr.mxu0 0.0
    %1772 = vmatpush1.msra.mxu0 0.0
    %1773 = vmatprep.subr.mxu0 0.0
    %1774 = vmatpush1.msra.mxu0 0.0
    %1775 = vmatprep.subr.mxu0 0.0
    %1776 = vmatpush1.msra.mxu0 0.0
    %1777 = vmatprep.subr.mxu0 0.0
    %1778 = vmatpush1.msra.mxu0 0.0
    %1779 = vmatprep.subr.mxu0 0.0
    %1780 = vmatpush1.msra.mxu0 0.0
    %1781 = vmatprep.subr.mxu0 0.0
    %1782 = vmatpush1.msra.mxu0 0.0
    %1783 = vmatprep.subr.mxu0 0.0
    %1784 = vmatpush1.msra.mxu0 0.0
    %1785 = vmatprep.subr.mxu0 0.0
    %1786 = vmatpush1.msra.mxu0 0.0
    %1787 = vmatprep.subr.mxu0 0.0
    %1788 = vmatpush1.msra.mxu0 0.0
    %1789 = vmatprep.subr.mxu0 0.0
    %1790 = vmatpush1.msra.mxu0 0.0
    %1791 = vmatprep.subr.mxu0 0.0
    %1792 = vmatpush1.msra.mxu0 0.0
    %1793 = vmatprep.subr.mxu0 0.0
    %1794 = vmatpush1.msra.mxu0 0.0
    %1795 = vmatprep.subr.mxu0 0.0
    %1796 = vmatpush1.msra.mxu0 0.0
    %1797 = vmatprep.subr.mxu0 0.0
    %1798 = vmatpush1.msra.mxu0 0.0
    %1799 = vmatprep.subr.mxu0 0.0
    %1800 = vmatpush1.msra.mxu0 0.0
    %1801 = vmatprep.subr.mxu0 0.0
    %1802 = vmatpush1.msra.mxu0 0.0
    %1803 = vmatprep.subr.mxu0 0.0
    %1804 = vmatpush1.msra.mxu0 0.0
    %1805 = vmatprep.subr.mxu0 0.0
    %1806 = vmatpush1.msra.mxu0 0.0
    %1807 = vmatprep.subr.mxu0 0.0
    %1808 = vmatpush1.msra.mxu0 0.0
    %1809 = vmatprep.subr.mxu0 0.0
    %1810 = vmatpush1.msra.mxu0 0.0
    %1811 = vmatprep.subr.mxu0 0.0
    %1812 = vmatpush1.msra.mxu0 0.0
    %1813 = vmatprep.subr.mxu0 0.0
    %1814 = vmatpush1.msra.mxu0 0.0
    %1815 = vmatprep.subr.mxu0 0.0
    %1816 = vmatpush1.msra.mxu0 0.0
    %1817 = vmatprep.subr.mxu0 0.0
    %1818 = vmatpush1.msra.mxu0 0.0
    %1819 = vmatprep.subr.mxu0 0.0
    %1820 = vmatpush1.msra.mxu0 0.0
    %1821 = vmatprep.subr.mxu0 0.0
    %1822 = vmatpush1.msra.mxu0 0.0
    %1823 = vmatprep.mubr.f32.mxu0 0.0
    %1824 = vmatmul.mubr.f32.gmra.mrb[0].mxu0 %v1614
    %v1825 = vpop.f32.mrb[0].mxu0
    %v1826 = vadd.f32 0.0, %v1825
    %v1827 = vpop.f32.mrb[0].mxu0
    %v1828 = vadd.f32 0.0, %v1827
    %1829 = vmatprep.mubr.f32.mxu0 0.0
    %1830 = vmatmul.mubr.f32.gmra.mrb[0].mxu0 %v1617
    %v1831 = vpop.f32.mrb[0].mxu0
    %v1832 = vadd.f32 0.0, %v1831
    %v1833 = vpop.f32.mrb[0].mxu0
    %v1834 = vadd.f32 0.0, %v1833
    %1835 = vmatprep.mubr.f32.mxu0 0.0
    %1836 = vmatmul.mubr.f32.gmra.mrb[0].mxu0 %v1620
    %v1837 = vpop.f32.mrb[0].mxu0
    %v1838 = vadd.f32 0.0, %v1837
    %v1839 = vpop.f32.mrb[0].mxu0
    %v1840 = vadd.f32 0.0, %v1839
    %1841 = vmatprep.mubr.f32.mxu0 0.0
    %1842 = vmatmul.mubr.f32.gmra.mrb[0].mxu0 %v1623
    %v1843 = vpop.f32.mrb[0].mxu0
    %v1844 = vadd.f32 0.0, %v1843
    %v1845 = vpop.f32.mrb[0].mxu0
    %v1846 = vadd.f32 0.0, %v1845
    %1847 = vmatprep.mubr.f32.mxu0 0.0
    %1848 = vmatmul.mubr.f32.gmra.mrb[0].mxu0 %v1626
    %v1849 = vpop.f32.mrb[0].mxu0
    %v1850 = vadd.f32 0.0, %v1849
    %v1851 = vpop.f32.mrb[0].mxu0
    %v1852 = vadd.f32 0.0, %v1851
    %1853 = vmatprep.mubr.f32.mxu0 0.0
    %1854 = vmatmul.mubr.f32.gmra.mrb[0].mxu0 %v1629
    %v1855 = vpop.f32.mrb[0].mxu0
    %v1856 = vadd.f32 0.0, %v1855
    %v1857 = vpop.f32.mrb[0].mxu0
    %v1858 = vadd.f32 0.0, %v1857
    %1859 = vmatprep.mubr.f32.mxu0 0.0
    %1860 = vmatmul.mubr.f32.gmra.mrb[0].mxu0 %v1632
    %v1861 = vpop.f32.mrb[0].mxu0
    %v1862 = vadd.f32 0.0, %v1861
    %v1863 = vpop.f32.mrb[0].mxu0
    %v1864 = vadd.f32 0.0, %v1863
    %1865 = vmatprep.mubr.f32.mxu0 0.0
    %1866 = vmatmul.mubr.f32.gmra.mrb[0].mxu0 %v1635
    %v1867 = vpop.f32.mrb[0].mxu0
    %v1868 = vadd.f32 0.0, %v1867
    %v1869 = vpop.f32.mrb[0].mxu0
    %v1870 = vadd.f32 0.0, %v1869
    %1871 = vmatprep.mubr.f32.mxu0 0.0
    %1872 = vmatmul.mubr.f32.gmra.mrb[0].mxu0 %v1638
    %v1873 = vpop.f32.mrb[0].mxu0
    %v1874 = vadd.f32 0.0, %v1873
    %v1875 = vpop.f32.mrb[0].mxu0
    %v1876 = vadd.f32 0.0, %v1875
    %1877 = vdwg.mxu0
    %s1878 = scalar_lea.vmem %s4, 16
    %v1879 = vld [vmem:[%s1878] sm:$0xff]
    %1881 = vset.pattern.permute.xlu0 0
    %1882 = vperm.xlu0 %1881, %v1879
    %v1883 = vpop.permute.xlu0 %1882
    %v1885 = vadd.f32 %v1731, %v1883
    %v1886 = vadd.f32 %v1733, %v1883
    %v1887 = vadd.f32 %v1850, %v1883
    %v1888 = vadd.f32 %v1852, %v1883
    %1889 = vrot.lane.b32.xlu0 %v1707, 17
    %v1890 = vpop.permute.xlu0 %1889
    %1891 = vrot.lane.b32.xlu0 %v1709, 17
    %v1892 = vpop.permute.xlu0 %1891
    %1893 = vrot.lane.b32.xlu0 %v1826, 17
    %v1894 = vpop.permute.xlu0 %1893
    %1895 = vrot.lane.b32.xlu0 %v1828, 17
    %v1896 = vpop.permute.xlu0 %1895
    %v1897 = vsel %vm550, %v1894, %v1896
    %v1898 = vsel %vm550, %v1892, %v1894
    %v1899 = vsel %vm550, %v1890, %v1892
    %v1900 = vsel %vm550, %v1896, %v1890
    %v1901 = vld [vmem:[%s5] sm:$0xff]
    %v1902 = vld [vmem:[%s5 + $0x8] sm:$0xff]
    %v1903 = vld [vmem:[%s5 + $0x10] sm:$0xff]
    %v1904 = vld [vmem:[%s5 + $0x18] sm:$0xff]
    %v1905 = vmul.f32 %v1900, %v1901
    %v1906 = vmul.f32 %v1899, %v1902
    %v1907 = vmul.f32 %v1898, %v1903
    %v1908 = vmul.f32 %v1897, %v1904
    %v1909 = vadd.f32 %v1885, %v1905
    %v1910 = vadd.f32 %v1886, %v1906
    %v1911 = vadd.f32 %v1887, %v1907
    %v1912 = vadd.f32 %v1888, %v1908
    %1913 = vrot.lane.b32.xlu0 %v1713, 16
    %v1914 = vpop.permute.xlu0 %1913
    %1915 = vrot.lane.b32.xlu0 %v1715, 16
    %v1916 = vpop.permute.xlu0 %1915
    %1917 = vrot.lane.b32.xlu0 %v1832, 16
    %v1918 = vpop.permute.xlu0 %1917
    %1919 = vrot.lane.b32.xlu0 %v1834, 16
    %v1920 = vpop.permute.xlu0 %1919
    %v1921 = vsel %vm575, %v1918, %v1920
    %v1922 = vsel %vm575, %v1916, %v1918
    %v1923 = vsel %vm575, %v1914, %v1916
    %v1924 = vsel %vm575, %v1920, %v1914
    %v1925 = vld [vmem:[%s580] sm:$0xff]
    %v1926 = vld [vmem:[%s580 + $0x8] sm:$0xff]
    %v1927 = vld [vmem:[%s580 + $0x10] sm:$0xff]
    %v1928 = vld [vmem:[%s580 + $0x18] sm:$0xff]
    %v1929 = vmul.f32 %v1924, %v1925
    %v1930 = vmul.f32 %v1923, %v1926
    %v1931 = vmul.f32 %v1922, %v1927
    %v1932 = vmul.f32 %v1921, %v1928
    %v1933 = vadd.f32 %v1909, %v1929
    %v1934 = vadd.f32 %v1910, %v1930
    %v1935 = vadd.f32 %v1911, %v1931
    %v1936 = vadd.f32 %v1912, %v1932
    %1937 = vrot.lane.b32.xlu0 %v1719, 15
    %v1938 = vpop.permute.xlu0 %1937
    %1939 = vrot.lane.b32.xlu0 %v1721, 15
    %v1940 = vpop.permute.xlu0 %1939
    %1941 = vrot.lane.b32.xlu0 %v1838, 15
    %v1942 = vpop.permute.xlu0 %1941
    %1943 = vrot.lane.b32.xlu0 %v1840, 15
    %v1944 = vpop.permute.xlu0 %1943
    %v1945 = vsel %vm601, %v1942, %v1944
    %v1946 = vsel %vm601, %v1940, %v1942
    %v1947 = vsel %vm601, %v1938, %v1940
    %v1948 = vsel %vm601, %v1944, %v1938
    %v1949 = vld [vmem:[%s606] sm:$0xff]
    %v1950 = vld [vmem:[%s606 + $0x8] sm:$0xff]
    %v1951 = vld [vmem:[%s606 + $0x10] sm:$0xff]
    %v1952 = vld [vmem:[%s606 + $0x18] sm:$0xff]
    %v1953 = vmul.f32 %v1948, %v1949
    %v1954 = vmul.f32 %v1947, %v1950
    %v1955 = vmul.f32 %v1946, %v1951
    %v1956 = vmul.f32 %v1945, %v1952
    %v1957 = vadd.f32 %v1933, %v1953
    %v1958 = vadd.f32 %v1934, %v1954
    %v1959 = vadd.f32 %v1935, %v1955
    %v1960 = vadd.f32 %v1936, %v1956
    %1961 = vrot.lane.b32.xlu0 %v1725, 1
    %v1962 = vpop.permute.xlu0 %1961
    %1963 = vrot.lane.b32.xlu0 %v1727, 1
    %v1964 = vpop.permute.xlu0 %1963
    %1965 = vrot.lane.b32.xlu0 %v1844, 1
    %v1966 = vpop.permute.xlu0 %1965
    %1967 = vrot.lane.b32.xlu0 %v1846, 1
    %v1968 = vpop.permute.xlu0 %1967
    %v1969 = vsel %vm627, %v1966, %v1968
    %v1970 = vsel %vm627, %v1964, %v1966
    %v1971 = vsel %vm627, %v1962, %v1964
    %v1972 = vsel %vm627, %v1968, %v1962
    %v1973 = vld [vmem:[%s632] sm:$0xff]
    %v1974 = vld [vmem:[%s632 + $0x8] sm:$0xff]
    %v1975 = vld [vmem:[%s632 + $0x10] sm:$0xff]
    %v1976 = vld [vmem:[%s632 + $0x18] sm:$0xff]
    %v1977 = vmul.f32 %v1972, %v1973
    %v1978 = vmul.f32 %v1971, %v1974
    %v1979 = vmul.f32 %v1970, %v1975
    %v1980 = vmul.f32 %v1969, %v1976
    %v1981 = vadd.f32 %v1957, %v1977
    %v1982 = vadd.f32 %v1958, %v1978
    %v1983 = vadd.f32 %v1959, %v1979
    %v1984 = vadd.f32 %v1960, %v1980
    %1985 = vrot.lane.b32.xlu0 %v1737, 127
    %v1986 = vpop.permute.xlu0 %1985
    %1987 = vrot.lane.b32.xlu0 %v1739, 127
    %v1988 = vpop.permute.xlu0 %1987
    %1989 = vrot.lane.b32.xlu0 %v1856, 127
    %v1990 = vpop.permute.xlu0 %1989
    %1991 = vrot.lane.b32.xlu0 %v1858, 127
    %v1992 = vpop.permute.xlu0 %1991
    %v1993 = vsel %vm653, %v1990, %v1992
    %v1994 = vsel %vm653, %v1988, %v1990
    %v1995 = vsel %vm653, %v1986, %v1988
    %v1996 = vsel %vm653, %v1992, %v1986
    %v1997 = vld [vmem:[%s658] sm:$0xff]
    %v1998 = vld [vmem:[%s658 + $0x8] sm:$0xff]
    %v1999 = vld [vmem:[%s658 + $0x10] sm:$0xff]
    %v2000 = vld [vmem:[%s658 + $0x18] sm:$0xff]
    %v2001 = vmul.f32 %v1995, %v1997
    %v2002 = vmul.f32 %v1994, %v1998
    %v2003 = vmul.f32 %v1993, %v1999
    %v2004 = vmul.f32 %v1996, %v2000
    %v2005 = vadd.f32 %v1981, %v2001
    %v2006 = vadd.f32 %v1982, %v2002
    %v2007 = vadd.f32 %v1983, %v2003
    %v2008 = vadd.f32 %v1984, %v2004
    %2009 = vrot.lane.b32.xlu0 %v1743, 113
    %v2010 = vpop.permute.xlu0 %2009
    %2011 = vrot.lane.b32.xlu0 %v1745, 113
    %v2012 = vpop.permute.xlu0 %2011
    %2013 = vrot.lane.b32.xlu0 %v1862, 113
    %v2014 = vpop.permute.xlu0 %2013
    %2015 = vrot.lane.b32.xlu0 %v1864, 113
    %v2016 = vpop.permute.xlu0 %2015
    %v2017 = vsel %vm679, %v2014, %v2016
    %v2018 = vsel %vm679, %v2012, %v2014
    %v2019 = vsel %vm679, %v2010, %v2012
    %v2020 = vsel %vm679, %v2016, %v2010
    %v2021 = vld [vmem:[%s684] sm:$0xff]
    %v2022 = vld [vmem:[%s684 + $0x8] sm:$0xff]
    %v2023 = vld [vmem:[%s684 + $0x10] sm:$0xff]
    %v2024 = vld [vmem:[%s684 + $0x18] sm:$0xff]
    %v2025 = vmul.f32 %v2019, %v2021
    %v2026 = vmul.f32 %v2018, %v2022
    %v2027 = vmul.f32 %v2017, %v2023
    %v2028 = vmul.f32 %v2020, %v2024
    %v2029 = vadd.f32 %v2005, %v2025
    %v2030 = vadd.f32 %v2006, %v2026
    %v2031 = vadd.f32 %v2007, %v2027
    %v2032 = vadd.f32 %v2008, %v2028
    %2033 = vrot.lane.b32.xlu0 %v1749, 112
    %v2034 = vpop.permute.xlu0 %2033
    %2035 = vrot.lane.b32.xlu0 %v1751, 112
    %v2036 = vpop.permute.xlu0 %2035
    %2037 = vrot.lane.b32.xlu0 %v1868, 112
    %v2038 = vpop.permute.xlu0 %2037
    %2039 = vrot.lane.b32.xlu0 %v1870, 112
    %v2040 = vpop.permute.xlu0 %2039
    %v2041 = vsel %vm705, %v2038, %v2040
    %v2042 = vsel %vm705, %v2036, %v2038
    %v2043 = vsel %vm705, %v2034, %v2036
    %v2044 = vsel %vm705, %v2040, %v2034
    %v2045 = vld [vmem:[%s710] sm:$0xff]
    %v2046 = vld [vmem:[%s710 + $0x8] sm:$0xff]
    %v2047 = vld [vmem:[%s710 + $0x10] sm:$0xff]
    %v2048 = vld [vmem:[%s710 + $0x18] sm:$0xff]
    %v2049 = vmul.f32 %v2043, %v2045
    %v2050 = vmul.f32 %v2042, %v2046
    %v2051 = vmul.f32 %v2041, %v2047
    %v2052 = vmul.f32 %v2044, %v2048
    %v2053 = vadd.f32 %v2029, %v2049
    %v2054 = vadd.f32 %v2030, %v2050
    %v2055 = vadd.f32 %v2031, %v2051
    %v2056 = vadd.f32 %v2032, %v2052
    %2057 = vrot.lane.b32.xlu0 %v1755, 111
    %v2058 = vpop.permute.xlu0 %2057
    %2059 = vrot.lane.b32.xlu0 %v1757, 111
    %v2060 = vpop.permute.xlu0 %2059
    %2061 = vrot.lane.b32.xlu0 %v1874, 111
    %v2062 = vpop.permute.xlu0 %2061
    %2063 = vrot.lane.b32.xlu0 %v1876, 111
    %v2064 = vpop.permute.xlu0 %2063
    %v2065 = vsel %vm731, %v2062, %v2064
    %v2066 = vsel %vm731, %v2060, %v2062
    %v2067 = vsel %vm731, %v2058, %v2060
    %v2068 = vsel %vm731, %v2064, %v2058
    %v2069 = vld [vmem:[%s736] sm:$0xff]
    %v2070 = vld [vmem:[%s736 + $0x8] sm:$0xff]
    %v2071 = vld [vmem:[%s736 + $0x10] sm:$0xff]
    %v2072 = vld [vmem:[%s736 + $0x18] sm:$0xff]
    %v2073 = vmul.f32 %v2067, %v2069
    %v2074 = vmul.f32 %v2066, %v2070
    %v2075 = vmul.f32 %v2065, %v2071
    %v2076 = vmul.f32 %v2068, %v2072
    %v2077 = vadd.f32 %v2053, %v2073
    %v2078 = vadd.f32 %v2054, %v2074
    %v2079 = vadd.f32 %v2055, %v2075
    %v2080 = vadd.f32 %v2056, %v2076
    %2081 = vst [vmem:[#allocation2 + $0x60] sm:$0xff] %v2077
    %2082 = vst [vmem:[#allocation2 + $0x68] sm:$0xff] %v2078
    %2083 = vst [vmem:[#allocation2 + $0x70] sm:$0xff] %v2079
    %2084 = vst [vmem:[#allocation2 + $0x78] sm:$0xff] %v2080
    %v2085 = vld [vmem:[#allocation2] sm:$0xff]
    %v2086 = vld [vmem:[#allocation2 + $0x8] sm:$0xff]
    %v2087 = vld [vmem:[#allocation2 + $0x10] sm:$0xff]
    %v2088 = vld [vmem:[#allocation2 + $0x18] sm:$0xff]
    %v2089 = vld [vmem:[#allocation2 + $0x20] sm:$0xff]
    %v2090 = vld [vmem:[#allocation2 + $0x28] sm:$0xff]
    %v2091 = vld [vmem:[#allocation2 + $0x30] sm:$0xff]
    %v2092 = vld [vmem:[#allocation2 + $0x38] sm:$0xff]
    %v2093 = vld [vmem:[#allocation2 + $0x40] sm:$0xff]
    %v2094 = vld [vmem:[#allocation2 + $0x48] sm:$0xff]
    %v2095 = vld [vmem:[#allocation2 + $0x50] sm:$0xff]
    %v2096 = vld [vmem:[#allocation2 + $0x58] sm:$0xff]
    %v2097 = vld [vmem:[#allocation2 + $0x60] sm:$0xff]
    %v2098 = vld [vmem:[#allocation2 + $0x68] sm:$0xff]
    %v2099 = vld [vmem:[#allocation2 + $0x70] sm:$0xff]
    %v2100 = vld [vmem:[#allocation2 + $0x78] sm:$0xff]
    %v2101 = vld [vmem:[#allocation2 + $0x80] sm:$0xff]
    %v2102 = vld [vmem:[#allocation2 + $0x88] sm:$0xff]
    %v2103 = vld [vmem:[#allocation2 + $0x90] sm:$0xff]
    %v2104 = vld [vmem:[#allocation2 + $0x98] sm:$0xff]
    %s2105 = scalar_lea.vmem %s1, 120
    %v2106 = vld [vmem:[%s2105] sm:$0xff]
    %v2107 = vld [vmem:[%s2105 + $0x8] sm:$0xff]
    %v2108 = vld [vmem:[%s2105 + $0x10] sm:$0xff]
    %v2109 = vld [vmem:[%s2105 + $0x18] sm:$0xff]
    %v2110 = vld [vmem:[%s2105 + $0x20] sm:$0xff]
    %2112 = vset.pattern.permute.xlu0 0
    %2113 = vperm.xlu0 %2112, %v2106
    %v2114 = vpop.permute.xlu0 %2113
    %2117 = vset.pattern.permute.xlu0 0
    %2118 = vperm.xlu0 %2117, %v2107
    %v2119 = vpop.permute.xlu0 %2118
    %2122 = vset.pattern.permute.xlu0 0
    %2123 = vperm.xlu0 %2122, %v2108
    %v2124 = vpop.permute.xlu0 %2123
    %2127 = vset.pattern.permute.xlu0 0
    %2128 = vperm.xlu0 %2127, %v2109
    %v2129 = vpop.permute.xlu0 %2128
    %2132 = vset.pattern.permute.xlu0 0
    %2133 = vperm.xlu0 %2132, %v2110
    %v2134 = vpop.permute.xlu0 %2133
    %v2136 = vmul.f32 %v2085, %v2114
    %v2137 = vmul.f32 %v2086, %v2114
    %v2138 = vmul.f32 %v2087, %v2114
    %v2139 = vmul.f32 %v2088, %v2114
    %v2140 = vmul.f32 %v2089, %v2119
    %v2141 = vmul.f32 %v2090, %v2119
    %v2142 = vmul.f32 %v2091, %v2119
    %v2143 = vmul.f32 %v2092, %v2119
    %v2144 = vmul.f32 %v2093, %v2124
    %v2145 = vmul.f32 %v2094, %v2124
    %v2146 = vmul.f32 %v2095, %v2124
    %v2147 = vmul.f32 %v2096, %v2124
    %v2148 = vmul.f32 %v2097, %v2129
    %v2149 = vmul.f32 %v2098, %v2129
    %v2150 = vmul.f32 %v2099, %v2129
    %v2151 = vmul.f32 %v2100, %v2129
    %v2152 = vmul.f32 %v2101, %v2134
    %v2153 = vmul.f32 %v2102, %v2134
    %v2154 = vmul.f32 %v2103, %v2134
    %v2155 = vmul.f32 %v2104, %v2134
    %s2156 = scalar_lea.vmem %s2, 120
    %v2157 = vld [vmem:[%s2156] sm:$0xff]
    %v2158 = vld [vmem:[%s2156 + $0x8] sm:$0xff]
    %v2159 = vld [vmem:[%s2156 + $0x10] sm:$0xff]
    %v2160 = vld [vmem:[%s2156 + $0x18] sm:$0xff]
    %v2161 = vld [vmem:[%s2156 + $0x20] sm:$0xff]
    %2163 = vset.pattern.permute.xlu0 0
    %2164 = vperm.xlu0 %2163, %v2157
    %v2165 = vpop.permute.xlu0 %2164
    %2168 = vset.pattern.permute.xlu0 0
    %2169 = vperm.xlu0 %2168, %v2158
    %v2170 = vpop.permute.xlu0 %2169
    %2173 = vset.pattern.permute.xlu0 0
    %2174 = vperm.xlu0 %2173, %v2159
    %v2175 = vpop.permute.xlu0 %2174
    %2178 = vset.pattern.permute.xlu0 0
    %2179 = vperm.xlu0 %2178, %v2160
    %v2180 = vpop.permute.xlu0 %2179
    %2183 = vset.pattern.permute.xlu0 0
    %2184 = vperm.xlu0 %2183, %v2161
    %v2185 = vpop.permute.xlu0 %2184
    %v2187 = vadd.f32 %v2136, %v2165
    %v2188 = vadd.f32 %v2137, %v2165
    %v2189 = vadd.f32 %v2138, %v2165
    %v2190 = vadd.f32 %v2139, %v2165
    %v2191 = vadd.f32 %v2140, %v2170
    %v2192 = vadd.f32 %v2141, %v2170
    %v2193 = vadd.f32 %v2142, %v2170
    %v2194 = vadd.f32 %v2143, %v2170
    %v2195 = vadd.f32 %v2144, %v2175
    %v2196 = vadd.f32 %v2145, %v2175
    %v2197 = vadd.f32 %v2146, %v2175
    %v2198 = vadd.f32 %v2147, %v2175
    %v2199 = vadd.f32 %v2148, %v2180
    %v2200 = vadd.f32 %v2149, %v2180
    %v2201 = vadd.f32 %v2150, %v2180
    %v2202 = vadd.f32 %v2151, %v2180
    %v2203 = vadd.f32 %v2152, %v2185
    %v2204 = vadd.f32 %v2153, %v2185
    %v2205 = vadd.f32 %v2154, %v2185
    %v2206 = vadd.f32 %v2155, %v2185
    %vm2207 = vcmp.gt.f32.partialorder %v2187, 0.0
    %vm2208 = vcmp.gt.f32.partialorder %v2188, 0.0
    %vm2209 = vcmp.gt.f32.partialorder %v2189, 0.0
    %vm2210 = vcmp.gt.f32.partialorder %v2190, 0.0
    %vm2211 = vcmp.gt.f32.partialorder %v2191, 0.0
    %vm2212 = vcmp.gt.f32.partialorder %v2192, 0.0
    %vm2213 = vcmp.gt.f32.partialorder %v2193, 0.0
    %vm2214 = vcmp.gt.f32.partialorder %v2194, 0.0
    %vm2215 = vcmp.gt.f32.partialorder %v2195, 0.0
    %vm2216 = vcmp.gt.f32.partialorder %v2196, 0.0
    %vm2217 = vcmp.gt.f32.partialorder %v2197, 0.0
    %vm2218 = vcmp.gt.f32.partialorder %v2198, 0.0
    %vm2219 = vcmp.gt.f32.partialorder %v2199, 0.0
    %vm2220 = vcmp.gt.f32.partialorder %v2200, 0.0
    %vm2221 = vcmp.gt.f32.partialorder %v2201, 0.0
    %vm2222 = vcmp.gt.f32.partialorder %v2202, 0.0
    %vm2223 = vcmp.gt.f32.partialorder %v2203, 0.0
    %vm2224 = vcmp.gt.f32.partialorder %v2204, 0.0
    %vm2225 = vcmp.gt.f32.partialorder %v2205, 0.0
    %vm2226 = vcmp.gt.f32.partialorder %v2206, 0.0
    %s2227 = sld [smem:[#allocation3 + $0x3]]
    %v2228 = vstv %s2227
    %v2229 = vmul.f32 %v2228, %v2187
    %v2230 = vmul.f32 %v2228, %v2188
    %v2231 = vmul.f32 %v2228, %v2189
    %v2232 = vmul.f32 %v2228, %v2190
    %v2233 = vmul.f32 %v2228, %v2191
    %v2234 = vmul.f32 %v2228, %v2192
    %v2235 = vmul.f32 %v2228, %v2193
    %v2236 = vmul.f32 %v2228, %v2194
    %v2237 = vmul.f32 %v2228, %v2195
    %v2238 = vmul.f32 %v2228, %v2196
    %v2239 = vmul.f32 %v2228, %v2197
    %v2240 = vmul.f32 %v2228, %v2198
    %v2241 = vmul.f32 %v2228, %v2199
    %v2242 = vmul.f32 %v2228, %v2200
    %v2243 = vmul.f32 %v2228, %v2201
    %v2244 = vmul.f32 %v2228, %v2202
    %v2245 = vmul.f32 %v2228, %v2203
    %v2246 = vmul.f32 %v2228, %v2204
    %v2247 = vmul.f32 %v2228, %v2205
    %v2248 = vmul.f32 %v2228, %v2206
    %v2249 = vsel %vm2207, %v2187, %v2229
    %v2250 = vsel %vm2208, %v2188, %v2230
    %v2251 = vsel %vm2209, %v2189, %v2231
    %v2252 = vsel %vm2210, %v2190, %v2232
    %v2253 = vsel %vm2211, %v2191, %v2233
    %v2254 = vsel %vm2212, %v2192, %v2234
    %v2255 = vsel %vm2213, %v2193, %v2235
    %v2256 = vsel %vm2214, %v2194, %v2236
    %v2257 = vsel %vm2215, %v2195, %v2237
    %v2258 = vsel %vm2216, %v2196, %v2238
    %v2259 = vsel %vm2217, %v2197, %v2239
    %v2260 = vsel %vm2218, %v2198, %v2240
    %v2261 = vsel %vm2219, %v2199, %v2241
    %v2262 = vsel %vm2220, %v2200, %v2242
    %v2263 = vsel %vm2221, %v2201, %v2243
    %v2264 = vsel %vm2222, %v2202, %v2244
    %v2265 = vsel %vm2223, %v2203, %v2245
    %v2266 = vsel %vm2224, %v2204, %v2246
    %v2267 = vsel %vm2225, %v2205, %v2247
    %v2268 = vsel %vm2226, %v2206, %v2248
    %s2269 = scalar_lea.vmem %s3, 216
    %v2270 = vld [vmem:[%s2269] sm:$0xff]
    %v2271 = vld [vmem:[%s2269 + $0x8] sm:$0xff]
    %v2272 = vld [vmem:[%s2269 + $0x10] sm:$0xff]
    %v2273 = vld [vmem:[%s2269 + $0x18] sm:$0xff]
    %v2274 = vld [vmem:[%s2269 + $0x20] sm:$0xff]
    %v2275 = vld [vmem:[%s2269 + $0x28] sm:$0xff]
    %v2276 = vld [vmem:[%s2269 + $0x30] sm:$0xff]
    %v2277 = vld [vmem:[%s2269 + $0x38] sm:$0xff]
    %v2278 = vld [vmem:[%s2269 + $0x40] sm:$0xff]
    %v2280 = vsel %vm264, %v2270, 0
    %v2283 = vsel %vm264, %v2271, 0
    %v2286 = vsel %vm264, %v2272, 0
    %v2289 = vsel %vm264, %v2273, 0
    %v2292 = vsel %vm264, %v2274, 0
    %v2295 = vsel %vm264, %v2275, 0
    %v2298 = vsel %vm264, %v2276, 0
    %v2301 = vsel %vm264, %v2277, 0
    %v2304 = vsel %vm264, %v2278, 0
    %2306 = vmatprep.subr.mxu0 %v2250
    %2307 = vmatpush1.msra.mxu0 %v2249
    %2308 = vmatprep.subr.mxu0 %v2254
    %2309 = vmatpush1.msra.mxu0 %v2253
    %2310 = vmatprep.subr.mxu0 %v2258
    %2311 = vmatpush1.msra.mxu0 %v2257
    %2312 = vmatprep.subr.mxu0 %v2262
    %2313 = vmatpush1.msra.mxu0 %v2261
    %2314 = vmatprep.subr.mxu0 %v2266
    %2315 = vmatpush1.msra.mxu0 %v2265
    %2316 = vmatprep.subr.mxu0 0.0
    %2317 = vmatpush1.msra.mxu0 0.0
    %2318 = vmatprep.subr.mxu0 0.0
    %2319 = vmatpush1.msra.mxu0 0.0
    %2320 = vmatprep.subr.mxu0 0.0
    %2321 = vmatpush1.msra.mxu0 0.0
    %2322 = vmatprep.subr.mxu0 0.0
    %2323 = vmatpush1.msra.mxu0 0.0
    %2324 = vmatprep.subr.mxu0 0.0
    %2325 = vmatpush1.msra.mxu0 0.0
    %2326 = vmatprep.subr.mxu0 0.0
    %2327 = vmatpush1.msra.mxu0 0.0
    %2328 = vmatprep.subr.mxu0 0.0
    %2329 = vmatpush1.msra.mxu0 0.0
    %2330 = vmatprep.subr.mxu0 0.0
    %2331 = vmatpush1.msra.mxu0 0.0
    %2332 = vmatprep.subr.mxu0 0.0
    %2333 = vmatpush1.msra.mxu0 0.0
    %2334 = vmatprep.subr.mxu0 0.0
    %2335 = vmatpush1.msra.mxu0 0.0
    %2336 = vmatprep.subr.mxu0 0.0
    %2337 = vmatpush1.msra.mxu0 0.0
    %2338 = vmatprep.subr.mxu0 0.0
    %2339 = vmatpush1.msra.mxu0 0.0
    %2340 = vmatprep.subr.mxu0 0.0
    %2341 = vmatpush1.msra.mxu0 0.0
    %2342 = vmatprep.subr.mxu0 0.0
    %2343 = vmatpush1.msra.mxu0 0.0
    %2344 = vmatprep.subr.mxu0 0.0
    %2345 = vmatpush1.msra.mxu0 0.0
    %2346 = vmatprep.subr.mxu0 0.0
    %2347 = vmatpush1.msra.mxu0 0.0
    %2348 = vmatprep.subr.mxu0 0.0
    %2349 = vmatpush1.msra.mxu0 0.0
    %2350 = vmatprep.subr.mxu0 0.0
    %2351 = vmatpush1.msra.mxu0 0.0
    %2352 = vmatprep.subr.mxu0 0.0
    %2353 = vmatpush1.msra.mxu0 0.0
    %2354 = vmatprep.subr.mxu0 0.0
    %2355 = vmatpush1.msra.mxu0 0.0
    %2356 = vmatprep.subr.mxu0 0.0
    %2357 = vmatpush1.msra.mxu0 0.0
    %2358 = vmatprep.subr.mxu0 0.0
    %2359 = vmatpush1.msra.mxu0 0.0
    %2360 = vmatprep.subr.mxu0 0.0
    %2361 = vmatpush1.msra.mxu0 0.0
    %2362 = vmatprep.subr.mxu0 0.0
    %2363 = vmatpush1.msra.mxu0 0.0
    %2364 = vmatprep.subr.mxu0 0.0
    %2365 = vmatpush1.msra.mxu0 0.0
    %2366 = vmatprep.subr.mxu0 0.0
    %2367 = vmatpush1.msra.mxu0 0.0
    %2368 = vmatprep.subr.mxu0 0.0
    %2369 = vmatpush1.msra.mxu0 0.0
    %2370 = vmatprep.mubr.f32.mxu0 0.0
    %2371 = vmatmul.mubr.f32.gmra.mrb[0].mxu0 %v2280
    %v2372 = vpop.f32.mrb[0].mxu0
    %v2373 = vadd.f32 0.0, %v2372
    %v2374 = vpop.f32.mrb[0].mxu0
    %v2375 = vadd.f32 0.0, %v2374
    %2376 = vmatprep.mubr.f32.mxu0 0.0
    %2377 = vmatmul.mubr.f32.gmra.mrb[0].mxu0 %v2283
    %v2378 = vpop.f32.mrb[0].mxu0
    %v2379 = vadd.f32 0.0, %v2378
    %v2380 = vpop.f32.mrb[0].mxu0
    %v2381 = vadd.f32 0.0, %v2380
    %2382 = vmatprep.mubr.f32.mxu0 0.0
    %2383 = vmatmul.mubr.f32.gmra.mrb[0].mxu0 %v2286
    %v2384 = vpop.f32.mrb[0].mxu0
    %v2385 = vadd.f32 0.0, %v2384
    %v2386 = vpop.f32.mrb[0].mxu0
    %v2387 = vadd.f32 0.0, %v2386
    %2388 = vmatprep.mubr.f32.mxu0 0.0
    %2389 = vmatmul.mubr.f32.gmra.mrb[0].mxu0 %v2289
    %v2390 = vpop.f32.mrb[0].mxu0
    %v2391 = vadd.f32 0.0, %v2390
    %v2392 = vpop.f32.mrb[0].mxu0
    %v2393 = vadd.f32 0.0, %v2392
    %2394 = vmatprep.mubr.f32.mxu0 0.0
    %2395 = vmatmul.mubr.f32.gmra.mrb[0].mxu0 %v2292
    %v2396 = vpop.f32.mrb[0].mxu0
    %v2397 = vadd.f32 0.0, %v2396
    %v2398 = vpop.f32.mrb[0].mxu0
    %v2399 = vadd.f32 0.0, %v2398
    %2400 = vmatprep.mubr.f32.mxu0 0.0
    %2401 = vmatmul.mubr.f32.gmra.mrb[0].mxu0 %v2295
    %v2402 = vpop.f32.mrb[0].mxu0
    %v2403 = vadd.f32 0.0, %v2402
    %v2404 = vpop.f32.mrb[0].mxu0
    %v2405 = vadd.f32 0.0, %v2404
    %2406 = vmatprep.mubr.f32.mxu0 0.0
    %2407 = vmatmul.mubr.f32.gmra.mrb[0].mxu0 %v2298
    %v2408 = vpop.f32.mrb[0].mxu0
    %v2409 = vadd.f32 0.0, %v2408
    %v2410 = vpop.f32.mrb[0].mxu0
    %v2411 = vadd.f32 0.0, %v2410
    %2412 = vmatprep.mubr.f32.mxu0 0.0
    %2413 = vmatmul.mubr.f32.gmra.mrb[0].mxu0 %v2301
    %v2414 = vpop.f32.mrb[0].mxu0
    %v2415 = vadd.f32 0.0, %v2414
    %v2416 = vpop.f32.mrb[0].mxu0
    %v2417 = vadd.f32 0.0, %v2416
    %2418 = vmatprep.mubr.f32.mxu0 0.0
    %2419 = vmatmul.mubr.f32.gmra.mrb[0].mxu0 %v2304
    %v2420 = vpop.f32.mrb[0].mxu0
    %v2421 = vadd.f32 0.0, %v2420
    %v2422 = vpop.f32.mrb[0].mxu0
    %v2423 = vadd.f32 0.0, %v2422
    %2424 = vdwg.mxu0
    %2425 = vmatprep.subr.mxu0 %v2252
    %2426 = vmatpush1.msra.mxu0 %v2251
    %2427 = vmatprep.subr.mxu0 %v2256
    %2428 = vmatpush1.msra.mxu0 %v2255
    %2429 = vmatprep.subr.mxu0 %v2260
    %2430 = vmatpush1.msra.mxu0 %v2259
    %2431 = vmatprep.subr.mxu0 %v2264
    %2432 = vmatpush1.msra.mxu0 %v2263
    %2433 = vmatprep.subr.mxu0 %v2268
    %2434 = vmatpush1.msra.mxu0 %v2267
    %2435 = vmatprep.subr.mxu0 0.0
    %2436 = vmatpush1.msra.mxu0 0.0
    %2437 = vmatprep.subr.mxu0 0.0
    %2438 = vmatpush1.msra.mxu0 0.0
    %2439 = vmatprep.subr.mxu0 0.0
    %2440 = vmatpush1.msra.mxu0 0.0
    %2441 = vmatprep.subr.mxu0 0.0
    %2442 = vmatpush1.msra.mxu0 0.0
    %2443 = vmatprep.subr.mxu0 0.0
    %2444 = vmatpush1.msra.mxu0 0.0
    %2445 = vmatprep.subr.mxu0 0.0
    %2446 = vmatpush1.msra.mxu0 0.0
    %2447 = vmatprep.subr.mxu0 0.0
    %2448 = vmatpush1.msra.mxu0 0.0
    %2449 = vmatprep.subr.mxu0 0.0
    %2450 = vmatpush1.msra.mxu0 0.0
    %2451 = vmatprep.subr.mxu0 0.0
    %2452 = vmatpush1.msra.mxu0 0.0
    %2453 = vmatprep.subr.mxu0 0.0
    %2454 = vmatpush1.msra.mxu0 0.0
    %2455 = vmatprep.subr.mxu0 0.0
    %2456 = vmatpush1.msra.mxu0 0.0
    %2457 = vmatprep.subr.mxu0 0.0
    %2458 = vmatpush1.msra.mxu0 0.0
    %2459 = vmatprep.subr.mxu0 0.0
    %2460 = vmatpush1.msra.mxu0 0.0
    %2461 = vmatprep.subr.mxu0 0.0
    %2462 = vmatpush1.msra.mxu0 0.0
    %2463 = vmatprep.subr.mxu0 0.0
    %2464 = vmatpush1.msra.mxu0 0.0
    %2465 = vmatprep.subr.mxu0 0.0
    %2466 = vmatpush1.msra.mxu0 0.0
    %2467 = vmatprep.subr.mxu0 0.0
    %2468 = vmatpush1.msra.mxu0 0.0
    %2469 = vmatprep.subr.mxu0 0.0
    %2470 = vmatpush1.msra.mxu0 0.0
    %2471 = vmatprep.subr.mxu0 0.0
    %2472 = vmatpush1.msra.mxu0 0.0
    %2473 = vmatprep.subr.mxu0 0.0
    %2474 = vmatpush1.msra.mxu0 0.0
    %2475 = vmatprep.subr.mxu0 0.0
    %2476 = vmatpush1.msra.mxu0 0.0
    %2477 = vmatprep.subr.mxu0 0.0
    %2478 = vmatpush1.msra.mxu0 0.0
    %2479 = vmatprep.subr.mxu0 0.0
    %2480 = vmatpush1.msra.mxu0 0.0
    %2481 = vmatprep.subr.mxu0 0.0
    %2482 = vmatpush1.msra.mxu0 0.0
    %2483 = vmatprep.subr.mxu0 0.0
    %2484 = vmatpush1.msra.mxu0 0.0
    %2485 = vmatprep.subr.mxu0 0.0
    %2486 = vmatpush1.msra.mxu0 0.0
    %2487 = vmatprep.subr.mxu0 0.0
    %2488 = vmatpush1.msra.mxu0 0.0
    %2489 = vmatprep.mubr.f32.mxu0 0.0
    %2490 = vmatmul.mubr.f32.gmra.mrb[0].mxu0 %v2280
    %v2491 = vpop.f32.mrb[0].mxu0
    %v2492 = vadd.f32 0.0, %v2491
    %v2493 = vpop.f32.mrb[0].mxu0
    %v2494 = vadd.f32 0.0, %v2493
    %2495 = vmatprep.mubr.f32.mxu0 0.0
    %2496 = vmatmul.mubr.f32.gmra.mrb[0].mxu0 %v2283
    %v2497 = vpop.f32.mrb[0].mxu0
    %v2498 = vadd.f32 0.0, %v2497
    %v2499 = vpop.f32.mrb[0].mxu0
    %v2500 = vadd.f32 0.0, %v2499
    %2501 = vmatprep.mubr.f32.mxu0 0.0
    %2502 = vmatmul.mubr.f32.gmra.mrb[0].mxu0 %v2286
    %v2503 = vpop.f32.mrb[0].mxu0
    %v2504 = vadd.f32 0.0, %v2503
    %v2505 = vpop.f32.mrb[0].mxu0
    %v2506 = vadd.f32 0.0, %v2505
    %2507 = vmatprep.mubr.f32.mxu0 0.0
    %2508 = vmatmul.mubr.f32.gmra.mrb[0].mxu0 %v2289
    %v2509 = vpop.f32.mrb[0].mxu0
    %v2510 = vadd.f32 0.0, %v2509
    %v2511 = vpop.f32.mrb[0].mxu0
    %v2512 = vadd.f32 0.0, %v2511
    %2513 = vmatprep.mubr.f32.mxu0 0.0
    %2514 = vmatmul.mubr.f32.gmra.mrb[0].mxu0 %v2292
    %v2515 = vpop.f32.mrb[0].mxu0
    %v2516 = vadd.f32 0.0, %v2515
    %v2517 = vpop.f32.mrb[0].mxu0
    %v2518 = vadd.f32 0.0, %v2517
    %2519 = vmatprep.mubr.f32.mxu0 0.0
    %2520 = vmatmul.mubr.f32.gmra.mrb[0].mxu0 %v2295
    %v2521 = vpop.f32.mrb[0].mxu0
    %v2522 = vadd.f32 0.0, %v2521
    %v2523 = vpop.f32.mrb[0].mxu0
    %v2524 = vadd.f32 0.0, %v2523
    %2525 = vmatprep.mubr.f32.mxu0 0.0
    %2526 = vmatmul.mubr.f32.gmra.mrb[0].mxu0 %v2298
    %v2527 = vpop.f32.mrb[0].mxu0
    %v2528 = vadd.f32 0.0, %v2527
    %v2529 = vpop.f32.mrb[0].mxu0
    %v2530 = vadd.f32 0.0, %v2529
    %2531 = vmatprep.mubr.f32.mxu0 0.0
    %2532 = vmatmul.mubr.f32.gmra.mrb[0].mxu0 %v2301
    %v2533 = vpop.f32.mrb[0].mxu0
    %v2534 = vadd.f32 0.0, %v2533
    %v2535 = vpop.f32.mrb[0].mxu0
    %v2536 = vadd.f32 0.0, %v2535
    %2537 = vmatprep.mubr.f32.mxu0 0.0
    %2538 = vmatmul.mubr.f32.gmra.mrb[0].mxu0 %v2304
    %v2539 = vpop.f32.mrb[0].mxu0
    %v2540 = vadd.f32 0.0, %v2539
    %v2541 = vpop.f32.mrb[0].mxu0
    %v2542 = vadd.f32 0.0, %v2541
    %2543 = vdwg.mxu0
    %s2544 = scalar_lea.vmem %s4, 24
    %v2545 = vld [vmem:[%s2544] sm:$0xff]
    %2547 = vset.pattern.permute.xlu0 0
    %2548 = vperm.xlu0 %2547, %v2545
    %v2549 = vpop.permute.xlu0 %2548
    %v2551 = vadd.f32 %v2397, %v2549
    %v2552 = vadd.f32 %v2399, %v2549
    %v2553 = vadd.f32 %v2516, %v2549
    %v2554 = vadd.f32 %v2518, %v2549
    %2555 = vrot.lane.b32.xlu0 %v2373, 17
    %v2556 = vpop.permute.xlu0 %2555
    %2557 = vrot.lane.b32.xlu0 %v2375, 17
    %v2558 = vpop.permute.xlu0 %2557
    %2559 = vrot.lane.b32.xlu0 %v2492, 17
    %v2560 = vpop.permute.xlu0 %2559
    %2561 = vrot.lane.b32.xlu0 %v2494, 17
    %v2562 = vpop.permute.xlu0 %2561
    %v2563 = vsel %vm550, %v2560, %v2562
    %v2564 = vsel %vm550, %v2558, %v2560
    %v2565 = vsel %vm550, %v2556, %v2558
    %v2566 = vsel %vm550, %v2562, %v2556
    %v2567 = vld [vmem:[%s5] sm:$0xff]
    %v2568 = vld [vmem:[%s5 + $0x8] sm:$0xff]
    %v2569 = vld [vmem:[%s5 + $0x10] sm:$0xff]
    %v2570 = vld [vmem:[%s5 + $0x18] sm:$0xff]
    %v2571 = vmul.f32 %v2566, %v2567
    %v2572 = vmul.f32 %v2565, %v2568
    %v2573 = vmul.f32 %v2564, %v2569
    %v2574 = vmul.f32 %v2563, %v2570
    %v2575 = vadd.f32 %v2551, %v2571
    %v2576 = vadd.f32 %v2552, %v2572
    %v2577 = vadd.f32 %v2553, %v2573
    %v2578 = vadd.f32 %v2554, %v2574
    %2579 = vrot.lane.b32.xlu0 %v2379, 16
    %v2580 = vpop.permute.xlu0 %2579
    %2581 = vrot.lane.b32.xlu0 %v2381, 16
    %v2582 = vpop.permute.xlu0 %2581
    %2583 = vrot.lane.b32.xlu0 %v2498, 16
    %v2584 = vpop.permute.xlu0 %2583
    %2585 = vrot.lane.b32.xlu0 %v2500, 16
    %v2586 = vpop.permute.xlu0 %2585
    %v2587 = vsel %vm575, %v2584, %v2586
    %v2588 = vsel %vm575, %v2582, %v2584
    %v2589 = vsel %vm575, %v2580, %v2582
    %v2590 = vsel %vm575, %v2586, %v2580
    %v2591 = vld [vmem:[%s580] sm:$0xff]
    %v2592 = vld [vmem:[%s580 + $0x8] sm:$0xff]
    %v2593 = vld [vmem:[%s580 + $0x10] sm:$0xff]
    %v2594 = vld [vmem:[%s580 + $0x18] sm:$0xff]
    %v2595 = vmul.f32 %v2590, %v2591
    %v2596 = vmul.f32 %v2589, %v2592
    %v2597 = vmul.f32 %v2588, %v2593
    %v2598 = vmul.f32 %v2587, %v2594
    %v2599 = vadd.f32 %v2575, %v2595
    %v2600 = vadd.f32 %v2576, %v2596
    %v2601 = vadd.f32 %v2577, %v2597
    %v2602 = vadd.f32 %v2578, %v2598
    %2603 = vrot.lane.b32.xlu0 %v2385, 15
    %v2604 = vpop.permute.xlu0 %2603
    %2605 = vrot.lane.b32.xlu0 %v2387, 15
    %v2606 = vpop.permute.xlu0 %2605
    %2607 = vrot.lane.b32.xlu0 %v2504, 15
    %v2608 = vpop.permute.xlu0 %2607
    %2609 = vrot.lane.b32.xlu0 %v2506, 15
    %v2610 = vpop.permute.xlu0 %2609
    %v2611 = vsel %vm601, %v2608, %v2610
    %v2612 = vsel %vm601, %v2606, %v2608
    %v2613 = vsel %vm601, %v2604, %v2606
    %v2614 = vsel %vm601, %v2610, %v2604
    %v2615 = vld [vmem:[%s606] sm:$0xff]
    %v2616 = vld [vmem:[%s606 + $0x8] sm:$0xff]
    %v2617 = vld [vmem:[%s606 + $0x10] sm:$0xff]
    %v2618 = vld [vmem:[%s606 + $0x18] sm:$0xff]
    %v2619 = vmul.f32 %v2614, %v2615
    %v2620 = vmul.f32 %v2613, %v2616
    %v2621 = vmul.f32 %v2612, %v2617
    %v2622 = vmul.f32 %v2611, %v2618
    %v2623 = vadd.f32 %v2599, %v2619
    %v2624 = vadd.f32 %v2600, %v2620
    %v2625 = vadd.f32 %v2601, %v2621
    %v2626 = vadd.f32 %v2602, %v2622
    %2627 = vrot.lane.b32.xlu0 %v2391, 1
    %v2628 = vpop.permute.xlu0 %2627
    %2629 = vrot.lane.b32.xlu0 %v2393, 1
    %v2630 = vpop.permute.xlu0 %2629
    %2631 = vrot.lane.b32.xlu0 %v2510, 1
    %v2632 = vpop.permute.xlu0 %2631
    %2633 = vrot.lane.b32.xlu0 %v2512, 1
    %v2634 = vpop.permute.xlu0 %2633
    %v2635 = vsel %vm627, %v2632, %v2634
    %v2636 = vsel %vm627, %v2630, %v2632
    %v2637 = vsel %vm627, %v2628, %v2630
    %v2638 = vsel %vm627, %v2634, %v2628
    %v2639 = vld [vmem:[%s632] sm:$0xff]
    %v2640 = vld [vmem:[%s632 + $0x8] sm:$0xff]
    %v2641 = vld [vmem:[%s632 + $0x10] sm:$0xff]
    %v2642 = vld [vmem:[%s632 + $0x18] sm:$0xff]
    %v2643 = vmul.f32 %v2638, %v2639
    %v2644 = vmul.f32 %v2637, %v2640
    %v2645 = vmul.f32 %v2636, %v2641
    %v2646 = vmul.f32 %v2635, %v2642
    %v2647 = vadd.f32 %v2623, %v2643
    %v2648 = vadd.f32 %v2624, %v2644
    %v2649 = vadd.f32 %v2625, %v2645
    %v2650 = vadd.f32 %v2626, %v2646
    %2651 = vrot.lane.b32.xlu0 %v2403, 127
    %v2652 = vpop.permute.xlu0 %2651
    %2653 = vrot.lane.b32.xlu0 %v2405, 127
    %v2654 = vpop.permute.xlu0 %2653
    %2655 = vrot.lane.b32.xlu0 %v2522, 127
    %v2656 = vpop.permute.xlu0 %2655
    %2657 = vrot.lane.b32.xlu0 %v2524, 127
    %v2658 = vpop.permute.xlu0 %2657
    %v2659 = vsel %vm653, %v2656, %v2658
    %v2660 = vsel %vm653, %v2654, %v2656
    %v2661 = vsel %vm653, %v2652, %v2654
    %v2662 = vsel %vm653, %v2658, %v2652
    %v2663 = vld [vmem:[%s658] sm:$0xff]
    %v2664 = vld [vmem:[%s658 + $0x8] sm:$0xff]
    %v2665 = vld [vmem:[%s658 + $0x10] sm:$0xff]
    %v2666 = vld [vmem:[%s658 + $0x18] sm:$0xff]
    %v2667 = vmul.f32 %v2661, %v2663
    %v2668 = vmul.f32 %v2660, %v2664
    %v2669 = vmul.f32 %v2659, %v2665
    %v2670 = vmul.f32 %v2662, %v2666
    %v2671 = vadd.f32 %v2647, %v2667
    %v2672 = vadd.f32 %v2648, %v2668
    %v2673 = vadd.f32 %v2649, %v2669
    %v2674 = vadd.f32 %v2650, %v2670
    %2675 = vrot.lane.b32.xlu0 %v2409, 113
    %v2676 = vpop.permute.xlu0 %2675
    %2677 = vrot.lane.b32.xlu0 %v2411, 113
    %v2678 = vpop.permute.xlu0 %2677
    %2679 = vrot.lane.b32.xlu0 %v2528, 113
    %v2680 = vpop.permute.xlu0 %2679
    %2681 = vrot.lane.b32.xlu0 %v2530, 113
    %v2682 = vpop.permute.xlu0 %2681
    %v2683 = vsel %vm679, %v2680, %v2682
    %v2684 = vsel %vm679, %v2678, %v2680
    %v2685 = vsel %vm679, %v2676, %v2678
    %v2686 = vsel %vm679, %v2682, %v2676
    %v2687 = vld [vmem:[%s684] sm:$0xff]
    %v2688 = vld [vmem:[%s684 + $0x8] sm:$0xff]
    %v2689 = vld [vmem:[%s684 + $0x10] sm:$0xff]
    %v2690 = vld [vmem:[%s684 + $0x18] sm:$0xff]
    %v2691 = vmul.f32 %v2685, %v2687
    %v2692 = vmul.f32 %v2684, %v2688
    %v2693 = vmul.f32 %v2683, %v2689
    %v2694 = vmul.f32 %v2686, %v2690
    %v2695 = vadd.f32 %v2671, %v2691
    %v2696 = vadd.f32 %v2672, %v2692
    %v2697 = vadd.f32 %v2673, %v2693
    %v2698 = vadd.f32 %v2674, %v2694
    %2699 = vrot.lane.b32.xlu0 %v2415, 112
    %v2700 = vpop.permute.xlu0 %2699
    %2701 = vrot.lane.b32.xlu0 %v2417, 112
    %v2702 = vpop.permute.xlu0 %2701
    %2703 = vrot.lane.b32.xlu0 %v2534, 112
    %v2704 = vpop.permute.xlu0 %2703
    %2705 = vrot.lane.b32.xlu0 %v2536, 112
    %v2706 = vpop.permute.xlu0 %2705
    %v2707 = vsel %vm705, %v2704, %v2706
    %v2708 = vsel %vm705, %v2702, %v2704
    %v2709 = vsel %vm705, %v2700, %v2702
    %v2710 = vsel %vm705, %v2706, %v2700
    %v2711 = vld [vmem:[%s710] sm:$0xff]
    %v2712 = vld [vmem:[%s710 + $0x8] sm:$0xff]
    %v2713 = vld [vmem:[%s710 + $0x10] sm:$0xff]
    %v2714 = vld [vmem:[%s710 + $0x18] sm:$0xff]
    %v2715 = vmul.f32 %v2709, %v2711
    %v2716 = vmul.f32 %v2708, %v2712
    %v2717 = vmul.f32 %v2707, %v2713
    %v2718 = vmul.f32 %v2710, %v2714
    %v2719 = vadd.f32 %v2695, %v2715
    %v2720 = vadd.f32 %v2696, %v2716
    %v2721 = vadd.f32 %v2697, %v2717
    %v2722 = vadd.f32 %v2698, %v2718
    %2723 = vrot.lane.b32.xlu0 %v2421, 111
    %v2724 = vpop.permute.xlu0 %2723
    %2725 = vrot.lane.b32.xlu0 %v2423, 111
    %v2726 = vpop.permute.xlu0 %2725
    %2727 = vrot.lane.b32.xlu0 %v2540, 111
    %v2728 = vpop.permute.xlu0 %2727
    %2729 = vrot.lane.b32.xlu0 %v2542, 111
    %v2730 = vpop.permute.xlu0 %2729
    %v2731 = vsel %vm731, %v2728, %v2730
    %v2732 = vsel %vm731, %v2726, %v2728
    %v2733 = vsel %vm731, %v2724, %v2726
    %v2734 = vsel %vm731, %v2730, %v2724
    %v2735 = vld [vmem:[%s736] sm:$0xff]
    %v2736 = vld [vmem:[%s736 + $0x8] sm:$0xff]
    %v2737 = vld [vmem:[%s736 + $0x10] sm:$0xff]
    %v2738 = vld [vmem:[%s736 + $0x18] sm:$0xff]
    %v2739 = vmul.f32 %v2733, %v2735
    %v2740 = vmul.f32 %v2732, %v2736
    %v2741 = vmul.f32 %v2731, %v2737
    %v2742 = vmul.f32 %v2734, %v2738
    %v2743 = vadd.f32 %v2719, %v2739
    %v2744 = vadd.f32 %v2720, %v2740
    %v2745 = vadd.f32 %v2721, %v2741
    %v2746 = vadd.f32 %v2722, %v2742
    %2747 = vst [vmem:[#allocation2 + $0x80] sm:$0xff] %v2743
    %2748 = vst [vmem:[#allocation2 + $0x88] sm:$0xff] %v2744
    %2749 = vst [vmem:[#allocation2 + $0x90] sm:$0xff] %v2745
    %2750 = vst [vmem:[#allocation2 + $0x98] sm:$0xff] %v2746
    %v2751 = vld [vmem:[#allocation2] sm:$0xff]
    %v2752 = vld [vmem:[#allocation2 + $0x8] sm:$0xff]
    %v2753 = vld [vmem:[#allocation2 + $0x10] sm:$0xff]
    %v2754 = vld [vmem:[#allocation2 + $0x18] sm:$0xff]
    %v2755 = vld [vmem:[#allocation2 + $0x20] sm:$0xff]
    %v2756 = vld [vmem:[#allocation2 + $0x28] sm:$0xff]
    %v2757 = vld [vmem:[#allocation2 + $0x30] sm:$0xff]
    %v2758 = vld [vmem:[#allocation2 + $0x38] sm:$0xff]
    %v2759 = vld [vmem:[#allocation2 + $0x40] sm:$0xff]
    %v2760 = vld [vmem:[#allocation2 + $0x48] sm:$0xff]
    %v2761 = vld [vmem:[#allocation2 + $0x50] sm:$0xff]
    %v2762 = vld [vmem:[#allocation2 + $0x58] sm:$0xff]
    %v2763 = vld [vmem:[#allocation2 + $0x60] sm:$0xff]
    %v2764 = vld [vmem:[#allocation2 + $0x68] sm:$0xff]
    %v2765 = vld [vmem:[#allocation2 + $0x70] sm:$0xff]
    %v2766 = vld [vmem:[#allocation2 + $0x78] sm:$0xff]
    %v2767 = vld [vmem:[#allocation2 + $0x80] sm:$0xff]
    %v2768 = vld [vmem:[#allocation2 + $0x88] sm:$0xff]
    %v2769 = vld [vmem:[#allocation2 + $0x90] sm:$0xff]
    %v2770 = vld [vmem:[#allocation2 + $0x98] sm:$0xff]
    %s2771 = scalar_lea.vmem %s1, 160
    %v2772 = vld [vmem:[%s2771] sm:$0xff]
    %v2773 = vld [vmem:[%s2771 + $0x8] sm:$0xff]
    %v2774 = vld [vmem:[%s2771 + $0x10] sm:$0xff]
    %v2775 = vld [vmem:[%s2771 + $0x18] sm:$0xff]
    %v2776 = vld [vmem:[%s2771 + $0x20] sm:$0xff]
    %2778 = vset.pattern.permute.xlu0 0
    %2779 = vperm.xlu0 %2778, %v2772
    %v2780 = vpop.permute.xlu0 %2779
    %2783 = vset.pattern.permute.xlu0 0
    %2784 = vperm.xlu0 %2783, %v2773
    %v2785 = vpop.permute.xlu0 %2784
    %2788 = vset.pattern.permute.xlu0 0
    %2789 = vperm.xlu0 %2788, %v2774
    %v2790 = vpop.permute.xlu0 %2789
    %2793 = vset.pattern.permute.xlu0 0
    %2794 = vperm.xlu0 %2793, %v2775
    %v2795 = vpop.permute.xlu0 %2794
    %2798 = vset.pattern.permute.xlu0 0
    %2799 = vperm.xlu0 %2798, %v2776
    %v2800 = vpop.permute.xlu0 %2799
    %v2802 = vmul.f32 %v2751, %v2780
    %v2803 = vmul.f32 %v2752, %v2780
    %v2804 = vmul.f32 %v2753, %v2780
    %v2805 = vmul.f32 %v2754, %v2780
    %v2806 = vmul.f32 %v2755, %v2785
    %v2807 = vmul.f32 %v2756, %v2785
    %v2808 = vmul.f32 %v2757, %v2785
    %v2809 = vmul.f32 %v2758, %v2785
    %v2810 = vmul.f32 %v2759, %v2790
    %v2811 = vmul.f32 %v2760, %v2790
    %v2812 = vmul.f32 %v2761, %v2790
    %v2813 = vmul.f32 %v2762, %v2790
    %v2814 = vmul.f32 %v2763, %v2795
    %v2815 = vmul.f32 %v2764, %v2795
    %v2816 = vmul.f32 %v2765, %v2795
    %v2817 = vmul.f32 %v2766, %v2795
    %v2818 = vmul.f32 %v2767, %v2800
    %v2819 = vmul.f32 %v2768, %v2800
    %v2820 = vmul.f32 %v2769, %v2800
    %v2821 = vmul.f32 %v2770, %v2800
    %s2822 = scalar_lea.vmem %s2, 160
    %v2823 = vld [vmem:[%s2822] sm:$0xff]
    %v2824 = vld [vmem:[%s2822 + $0x8] sm:$0xff]
    %v2825 = vld [vmem:[%s2822 + $0x10] sm:$0xff]
    %v2826 = vld [vmem:[%s2822 + $0x18] sm:$0xff]
    %v2827 = vld [vmem:[%s2822 + $0x20] sm:$0xff]
    %2829 = vset.pattern.permute.xlu0 0
    %2830 = vperm.xlu0 %2829, %v2823
    %v2831 = vpop.permute.xlu0 %2830
    %2834 = vset.pattern.permute.xlu0 0
    %2835 = vperm.xlu0 %2834, %v2824
    %v2836 = vpop.permute.xlu0 %2835
    %2839 = vset.pattern.permute.xlu0 0
    %2840 = vperm.xlu0 %2839, %v2825
    %v2841 = vpop.permute.xlu0 %2840
    %2844 = vset.pattern.permute.xlu0 0
    %2845 = vperm.xlu0 %2844, %v2826
    %v2846 = vpop.permute.xlu0 %2845
    %2849 = vset.pattern.permute.xlu0 0
    %2850 = vperm.xlu0 %2849, %v2827
    %v2851 = vpop.permute.xlu0 %2850
    %v2853 = vadd.f32 %v2802, %v2831
    %v2854 = vadd.f32 %v2803, %v2831
    %v2855 = vadd.f32 %v2804, %v2831
    %v2856 = vadd.f32 %v2805, %v2831
    %v2857 = vadd.f32 %v2806, %v2836
    %v2858 = vadd.f32 %v2807, %v2836
    %v2859 = vadd.f32 %v2808, %v2836
    %v2860 = vadd.f32 %v2809, %v2836
    %v2861 = vadd.f32 %v2810, %v2841
    %v2862 = vadd.f32 %v2811, %v2841
    %v2863 = vadd.f32 %v2812, %v2841
    %v2864 = vadd.f32 %v2813, %v2841
    %v2865 = vadd.f32 %v2814, %v2846
    %v2866 = vadd.f32 %v2815, %v2846
    %v2867 = vadd.f32 %v2816, %v2846
    %v2868 = vadd.f32 %v2817, %v2846
    %v2869 = vadd.f32 %v2818, %v2851
    %v2870 = vadd.f32 %v2819, %v2851
    %v2871 = vadd.f32 %v2820, %v2851
    %v2872 = vadd.f32 %v2821, %v2851
    %vm2873 = vcmp.gt.f32.partialorder %v2853, 0.0
    %vm2874 = vcmp.gt.f32.partialorder %v2854, 0.0
    %vm2875 = vcmp.gt.f32.partialorder %v2855, 0.0
    %vm2876 = vcmp.gt.f32.partialorder %v2856, 0.0
    %vm2877 = vcmp.gt.f32.partialorder %v2857, 0.0
    %vm2878 = vcmp.gt.f32.partialorder %v2858, 0.0
    %vm2879 = vcmp.gt.f32.partialorder %v2859, 0.0
    %vm2880 = vcmp.gt.f32.partialorder %v2860, 0.0
    %vm2881 = vcmp.gt.f32.partialorder %v2861, 0.0
    %vm2882 = vcmp.gt.f32.partialorder %v2862, 0.0
    %vm2883 = vcmp.gt.f32.partialorder %v2863, 0.0
    %vm2884 = vcmp.gt.f32.partialorder %v2864, 0.0
    %vm2885 = vcmp.gt.f32.partialorder %v2865, 0.0
    %vm2886 = vcmp.gt.f32.partialorder %v2866, 0.0
    %vm2887 = vcmp.gt.f32.partialorder %v2867, 0.0
    %vm2888 = vcmp.gt.f32.partialorder %v2868, 0.0
    %vm2889 = vcmp.gt.f32.partialorder %v2869, 0.0
    %vm2890 = vcmp.gt.f32.partialorder %v2870, 0.0
    %vm2891 = vcmp.gt.f32.partialorder %v2871, 0.0
    %vm2892 = vcmp.gt.f32.partialorder %v2872, 0.0
    %s2893 = sld [smem:[#allocation3 + $0x4]]
    %v2894 = vstv %s2893
    %v2895 = vmul.f32 %v2894, %v2853
    %v2896 = vmul.f32 %v2894, %v2854
    %v2897 = vmul.f32 %v2894, %v2855
    %v2898 = vmul.f32 %v2894, %v2856
    %v2899 = vmul.f32 %v2894, %v2857
    %v2900 = vmul.f32 %v2894, %v2858
    %v2901 = vmul.f32 %v2894, %v2859
    %v2902 = vmul.f32 %v2894, %v2860
    %v2903 = vmul.f32 %v2894, %v2861
    %v2904 = vmul.f32 %v2894, %v2862
    %v2905 = vmul.f32 %v2894, %v2863
    %v2906 = vmul.f32 %v2894, %v2864
    %v2907 = vmul.f32 %v2894, %v2865
    %v2908 = vmul.f32 %v2894, %v2866
    %v2909 = vmul.f32 %v2894, %v2867
    %v2910 = vmul.f32 %v2894, %v2868
    %v2911 = vmul.f32 %v2894, %v2869
    %v2912 = vmul.f32 %v2894, %v2870
    %v2913 = vmul.f32 %v2894, %v2871
    %v2914 = vmul.f32 %v2894, %v2872
    %v2915 = vsel %vm2873, %v2853, %v2895
    %v2916 = vsel %vm2874, %v2854, %v2896
    %v2917 = vsel %vm2875, %v2855, %v2897
    %v2918 = vsel %vm2876, %v2856, %v2898
    %v2919 = vsel %vm2877, %v2857, %v2899
    %v2920 = vsel %vm2878, %v2858, %v2900
    %v2921 = vsel %vm2879, %v2859, %v2901
    %v2922 = vsel %vm2880, %v2860, %v2902
    %v2923 = vsel %vm2881, %v2861, %v2903
    %v2924 = vsel %vm2882, %v2862, %v2904
    %v2925 = vsel %vm2883, %v2863, %v2905
    %v2926 = vsel %vm2884, %v2864, %v2906
    %v2927 = vsel %vm2885, %v2865, %v2907
    %v2928 = vsel %vm2886, %v2866, %v2908
    %v2929 = vsel %vm2887, %v2867, %v2909
    %v2930 = vsel %vm2888, %v2868, %v2910
    %v2931 = vsel %vm2889, %v2869, %v2911
    %v2932 = vsel %vm2890, %v2870, %v2912
    %v2933 = vsel %vm2891, %v2871, %v2913
    %v2934 = vsel %vm2892, %v2872, %v2914
    %s2935 = scalar_lea.vmem %s3, 288
    %v2936 = vld [vmem:[%s2935] sm:$0xff]
    %v2937 = vld [vmem:[%s2935 + $0x8] sm:$0xff]
    %v2938 = vld [vmem:[%s2935 + $0x10] sm:$0xff]
    %v2939 = vld [vmem:[%s2935 + $0x18] sm:$0xff]
    %v2940 = vld [vmem:[%s2935 + $0x20] sm:$0xff]
    %v2941 = vld [vmem:[%s2935 + $0x28] sm:$0xff]
    %v2942 = vld [vmem:[%s2935 + $0x30] sm:$0xff]
    %v2943 = vld [vmem:[%s2935 + $0x38] sm:$0xff]
    %v2944 = vld [vmem:[%s2935 + $0x40] sm:$0xff]
    %v2946 = vsel %vm264, %v2936, 0
    %v2949 = vsel %vm264, %v2937, 0
    %v2952 = vsel %vm264, %v2938, 0
    %v2955 = vsel %vm264, %v2939, 0
    %v2958 = vsel %vm264, %v2940, 0
    %v2961 = vsel %vm264, %v2941, 0
    %v2964 = vsel %vm264, %v2942, 0
    %v2967 = vsel %vm264, %v2943, 0
    %v2970 = vsel %vm264, %v2944, 0
    %2972 = vmatprep.subr.mxu0 %v2916
    %2973 = vmatpush1.msra.mxu0 %v2915
    %2974 = vmatprep.subr.mxu0 %v2920
    %2975 = vmatpush1.msra.mxu0 %v2919
    %2976 = vmatprep.subr.mxu0 %v2924
    %2977 = vmatpush1.msra.mxu0 %v2923
    %2978 = vmatprep.subr.mxu0 %v2928
    %2979 = vmatpush1.msra.mxu0 %v2927
    %2980 = vmatprep.subr.mxu0 %v2932
    %2981 = vmatpush1.msra.mxu0 %v2931
    %2982 = vmatprep.subr.mxu0 0.0
    %2983 = vmatpush1.msra.mxu0 0.0
    %2984 = vmatprep.subr.mxu0 0.0
    %2985 = vmatpush1.msra.mxu0 0.0
    %2986 = vmatprep.subr.mxu0 0.0
    %2987 = vmatpush1.msra.mxu0 0.0
    %2988 = vmatprep.subr.mxu0 0.0
    %2989 = vmatpush1.msra.mxu0 0.0
    %2990 = vmatprep.subr.mxu0 0.0
    %2991 = vmatpush1.msra.mxu0 0.0
    %2992 = vmatprep.subr.mxu0 0.0
    %2993 = vmatpush1.msra.mxu0 0.0
    %2994 = vmatprep.subr.mxu0 0.0
    %2995 = vmatpush1.msra.mxu0 0.0
    %2996 = vmatprep.subr.mxu0 0.0
    %2997 = vmatpush1.msra.mxu0 0.0
    %2998 = vmatprep.subr.mxu0 0.0
    %2999 = vmatpush1.msra.mxu0 0.0
    %3000 = vmatprep.subr.mxu0 0.0
    %3001 = vmatpush1.msra.mxu0 0.0
    %3002 = vmatprep.subr.mxu0 0.0
    %3003 = vmatpush1.msra.mxu0 0.0
    %3004 = vmatprep.subr.mxu0 0.0
    %3005 = vmatpush1.msra.mxu0 0.0
    %3006 = vmatprep.subr.mxu0 0.0
    %3007 = vmatpush1.msra.mxu0 0.0
    %3008 = vmatprep.subr.mxu0 0.0
    %3009 = vmatpush1.msra.mxu0 0.0
    %3010 = vmatprep.subr.mxu0 0.0
    %3011 = vmatpush1.msra.mxu0 0.0
    %3012 = vmatprep.subr.mxu0 0.0
    %3013 = vmatpush1.msra.mxu0 0.0
    %3014 = vmatprep.subr.mxu0 0.0
    %3015 = vmatpush1.msra.mxu0 0.0
    %3016 = vmatprep.subr.mxu0 0.0
    %3017 = vmatpush1.msra.mxu0 0.0
    %3018 = vmatprep.subr.mxu0 0.0
    %3019 = vmatpush1.msra.mxu0 0.0
    %3020 = vmatprep.subr.mxu0 0.0
    %3021 = vmatpush1.msra.mxu0 0.0
    %3022 = vmatprep.subr.mxu0 0.0
    %3023 = vmatpush1.msra.mxu0 0.0
    %3024 = vmatprep.subr.mxu0 0.0
    %3025 = vmatpush1.msra.mxu0 0.0
    %3026 = vmatprep.subr.mxu0 0.0
    %3027 = vmatpush1.msra.mxu0 0.0
    %3028 = vmatprep.subr.mxu0 0.0
    %3029 = vmatpush1.msra.mxu0 0.0
    %3030 = vmatprep.subr.mxu0 0.0
    %3031 = vmatpush1.msra.mxu0 0.0
    %3032 = vmatprep.subr.mxu0 0.0
    %3033 = vmatpush1.msra.mxu0 0.0
    %3034 = vmatprep.subr.mxu0 0.0
    %3035 = vmatpush1.msra.mxu0 0.0
    %3036 = vmatprep.mubr.f32.mxu0 0.0
    %3037 = vmatmul.mubr.f32.gmra.mrb[0].mxu0 %v2946
    %v3038 = vpop.f32.mrb[0].mxu0
    %v3039 = vadd.f32 0.0, %v3038
    %v3040 = vpop.f32.mrb[0].mxu0
    %v3041 = vadd.f32 0.0, %v3040
    %3042 = vmatprep.mubr.f32.mxu0 0.0
    %3043 = vmatmul.mubr.f32.gmra.mrb[0].mxu0 %v2949
    %v3044 = vpop.f32.mrb[0].mxu0
    %v3045 = vadd.f32 0.0, %v3044
    %v3046 = vpop.f32.mrb[0].mxu0
    %v3047 = vadd.f32 0.0, %v3046
    %3048 = vmatprep.mubr.f32.mxu0 0.0
    %3049 = vmatmul.mubr.f32.gmra.mrb[0].mxu0 %v2952
    %v3050 = vpop.f32.mrb[0].mxu0
    %v3051 = vadd.f32 0.0, %v3050
    %v3052 = vpop.f32.mrb[0].mxu0
    %v3053 = vadd.f32 0.0, %v3052
    %3054 = vmatprep.mubr.f32.mxu0 0.0
    %3055 = vmatmul.mubr.f32.gmra.mrb[0].mxu0 %v2955
    %v3056 = vpop.f32.mrb[0].mxu0
    %v3057 = vadd.f32 0.0, %v3056
    %v3058 = vpop.f32.mrb[0].mxu0
    %v3059 = vadd.f32 0.0, %v3058
    %3060 = vmatprep.mubr.f32.mxu0 0.0
    %3061 = vmatmul.mubr.f32.gmra.mrb[0].mxu0 %v2958
    %v3062 = vpop.f32.mrb[0].mxu0
    %v3063 = vadd.f32 0.0, %v3062
    %v3064 = vpop.f32.mrb[0].mxu0
    %v3065 = vadd.f32 0.0, %v3064
    %3066 = vmatprep.mubr.f32.mxu0 0.0
    %3067 = vmatmul.mubr.f32.gmra.mrb[0].mxu0 %v2961
    %v3068 = vpop.f32.mrb[0].mxu0
    %v3069 = vadd.f32 0.0, %v3068
    %v3070 = vpop.f32.mrb[0].mxu0
    %v3071 = vadd.f32 0.0, %v3070
    %3072 = vmatprep.mubr.f32.mxu0 0.0
    %3073 = vmatmul.mubr.f32.gmra.mrb[0].mxu0 %v2964
    %v3074 = vpop.f32.mrb[0].mxu0
    %v3075 = vadd.f32 0.0, %v3074
    %v3076 = vpop.f32.mrb[0].mxu0
    %v3077 = vadd.f32 0.0, %v3076
    %3078 = vmatprep.mubr.f32.mxu0 0.0
    %3079 = vmatmul.mubr.f32.gmra.mrb[0].mxu0 %v2967
    %v3080 = vpop.f32.mrb[0].mxu0
    %v3081 = vadd.f32 0.0, %v3080
    %v3082 = vpop.f32.mrb[0].mxu0
    %v3083 = vadd.f32 0.0, %v3082
    %3084 = vmatprep.mubr.f32.mxu0 0.0
    %3085 = vmatmul.mubr.f32.gmra.mrb[0].mxu0 %v2970
    %v3086 = vpop.f32.mrb[0].mxu0
    %v3087 = vadd.f32 0.0, %v3086
    %v3088 = vpop.f32.mrb[0].mxu0
    %v3089 = vadd.f32 0.0, %v3088
    %3090 = vdwg.mxu0
    %3091 = vmatprep.subr.mxu0 %v2918
    %3092 = vmatpush1.msra.mxu0 %v2917
    %3093 = vmatprep.subr.mxu0 %v2922
    %3094 = vmatpush1.msra.mxu0 %v2921
    %3095 = vmatprep.subr.mxu0 %v2926
    %3096 = vmatpush1.msra.mxu0 %v2925
    %3097 = vmatprep.subr.mxu0 %v2930
    %3098 = vmatpush1.msra.mxu0 %v2929
    %3099 = vmatprep.subr.mxu0 %v2934
    %3100 = vmatpush1.msra.mxu0 %v2933
    %3101 = vmatprep.subr.mxu0 0.0
    %3102 = vmatpush1.msra.mxu0 0.0
    %3103 = vmatprep.subr.mxu0 0.0
    %3104 = vmatpush1.msra.mxu0 0.0
    %3105 = vmatprep.subr.mxu0 0.0
    %3106 = vmatpush1.msra.mxu0 0.0
    %3107 = vmatprep.subr.mxu0 0.0
    %3108 = vmatpush1.msra.mxu0 0.0
    %3109 = vmatprep.subr.mxu0 0.0
    %3110 = vmatpush1.msra.mxu0 0.0
    %3111 = vmatprep.subr.mxu0 0.0
    %3112 = vmatpush1.msra.mxu0 0.0
    %3113 = vmatprep.subr.mxu0 0.0
    %3114 = vmatpush1.msra.mxu0 0.0
    %3115 = vmatprep.subr.mxu0 0.0
    %3116 = vmatpush1.msra.mxu0 0.0
    %3117 = vmatprep.subr.mxu0 0.0
    %3118 = vmatpush1.msra.mxu0 0.0
    %3119 = vmatprep.subr.mxu0 0.0
    %3120 = vmatpush1.msra.mxu0 0.0
    %3121 = vmatprep.subr.mxu0 0.0
    %3122 = vmatpush1.msra.mxu0 0.0
    %3123 = vmatprep.subr.mxu0 0.0
    %3124 = vmatpush1.msra.mxu0 0.0
    %3125 = vmatprep.subr.mxu0 0.0
    %3126 = vmatpush1.msra.mxu0 0.0
    %3127 = vmatprep.subr.mxu0 0.0
    %3128 = vmatpush1.msra.mxu0 0.0
    %3129 = vmatprep.subr.mxu0 0.0
    %3130 = vmatpush1.msra.mxu0 0.0
    %3131 = vmatprep.subr.mxu0 0.0
    %3132 = vmatpush1.msra.mxu0 0.0
    %3133 = vmatprep.subr.mxu0 0.0
    %3134 = vmatpush1.msra.mxu0 0.0
    %3135 = vmatprep.subr.mxu0 0.0
    %3136 = vmatpush1.msra.mxu0 0.0
    %3137 = vmatprep.subr.mxu0 0.0
    %3138 = vmatpush1.msra.mxu0 0.0
    %3139 = vmatprep.subr.mxu0 0.0
    %3140 = vmatpush1.msra.mxu0 0.0
    %3141 = vmatprep.subr.mxu0 0.0
    %3142 = vmatpush1.msra.mxu0 0.0
    %3143 = vmatprep.subr.mxu0 0.0
    %3144 = vmatpush1.msra.mxu0 0.0
    %3145 = vmatprep.subr.mxu0 0.0
    %3146 = vmatpush1.msra.mxu0 0.0
    %3147 = vmatprep.subr.mxu0 0.0
    %3148 = vmatpush1.msra.mxu0 0.0
    %3149 = vmatprep.subr.mxu0 0.0
    %3150 = vmatpush1.msra.mxu0 0.0
    %3151 = vmatprep.subr.mxu0 0.0
    %3152 = vmatpush1.msra.mxu0 0.0
    %3153 = vmatprep.subr.mxu0 0.0
    %3154 = vmatpush1.msra.mxu0 0.0
    %3155 = vmatprep.mubr.f32.mxu0 0.0
    %3156 = vmatmul.mubr.f32.gmra.mrb[0].mxu0 %v2946
    %v3157 = vpop.f32.mrb[0].mxu0
    %v3158 = vadd.f32 0.0, %v3157
    %v3159 = vpop.f32.mrb[0].mxu0
    %v3160 = vadd.f32 0.0, %v3159
    %3161 = vmatprep.mubr.f32.mxu0 0.0
    %3162 = vmatmul.mubr.f32.gmra.mrb[0].mxu0 %v2949
    %v3163 = vpop.f32.mrb[0].mxu0
    %v3164 = vadd.f32 0.0, %v3163
    %v3165 = vpop.f32.mrb[0].mxu0
    %v3166 = vadd.f32 0.0, %v3165
    %3167 = vmatprep.mubr.f32.mxu0 0.0
    %3168 = vmatmul.mubr.f32.gmra.mrb[0].mxu0 %v2952
    %v3169 = vpop.f32.mrb[0].mxu0
    %v3170 = vadd.f32 0.0, %v3169
    %v3171 = vpop.f32.mrb[0].mxu0
    %v3172 = vadd.f32 0.0, %v3171
    %3173 = vmatprep.mubr.f32.mxu0 0.0
    %3174 = vmatmul.mubr.f32.gmra.mrb[0].mxu0 %v2955
    %v3175 = vpop.f32.mrb[0].mxu0
    %v3176 = vadd.f32 0.0, %v3175
    %v3177 = vpop.f32.mrb[0].mxu0
    %v3178 = vadd.f32 0.0, %v3177
    %3179 = vmatprep.mubr.f32.mxu0 0.0
    %3180 = vmatmul.mubr.f32.gmra.mrb[0].mxu0 %v2958
    %v3181 = vpop.f32.mrb[0].mxu0
    %v3182 = vadd.f32 0.0, %v3181
    %v3183 = vpop.f32.mrb[0].mxu0
    %v3184 = vadd.f32 0.0, %v3183
    %3185 = vmatprep.mubr.f32.mxu0 0.0
    %3186 = vmatmul.mubr.f32.gmra.mrb[0].mxu0 %v2961
    %v3187 = vpop.f32.mrb[0].mxu0
    %v3188 = vadd.f32 0.0, %v3187
    %v3189 = vpop.f32.mrb[0].mxu0
    %v3190 = vadd.f32 0.0, %v3189
    %3191 = vmatprep.mubr.f32.mxu0 0.0
    %3192 = vmatmul.mubr.f32.gmra.mrb[0].mxu0 %v2964
    %v3193 = vpop.f32.mrb[0].mxu0
    %v3194 = vadd.f32 0.0, %v3193
    %v3195 = vpop.f32.mrb[0].mxu0
    %v3196 = vadd.f32 0.0, %v3195
    %3197 = vmatprep.mubr.f32.mxu0 0.0
    %3198 = vmatmul.mubr.f32.gmra.mrb[0].mxu0 %v2967
    %v3199 = vpop.f32.mrb[0].mxu0
    %v3200 = vadd.f32 0.0, %v3199
    %v3201 = vpop.f32.mrb[0].mxu0
    %v3202 = vadd.f32 0.0, %v3201
    %3203 = vmatprep.mubr.f32.mxu0 0.0
    %3204 = vmatmul.mubr.f32.gmra.mrb[0].mxu0 %v2970
    %v3205 = vpop.f32.mrb[0].mxu0
    %v3206 = vadd.f32 0.0, %v3205
    %v3207 = vpop.f32.mrb[0].mxu0
    %v3208 = vadd.f32 0.0, %v3207
    %3209 = vdwg.mxu0
    %s3210 = scalar_lea.vmem %s4, 32
    %v3211 = vld [vmem:[%s3210] sm:$0xff]
    %3213 = vset.pattern.permute.xlu0 0
    %3214 = vperm.xlu0 %3213, %v3211
    %v3215 = vpop.permute.xlu0 %3214
    %v3217 = vadd.f32 %v3063, %v3215
    %v3218 = vadd.f32 %v3065, %v3215
    %v3219 = vadd.f32 %v3182, %v3215
    %v3220 = vadd.f32 %v3184, %v3215
    %3221 = vrot.lane.b32.xlu0 %v3039, 17
    %v3222 = vpop.permute.xlu0 %3221
    %3223 = vrot.lane.b32.xlu0 %v3041, 17
    %v3224 = vpop.permute.xlu0 %3223
    %3225 = vrot.lane.b32.xlu0 %v3158, 17
    %v3226 = vpop.permute.xlu0 %3225
    %3227 = vrot.lane.b32.xlu0 %v3160, 17
    %v3228 = vpop.permute.xlu0 %3227
    %v3229 = vsel %vm550, %v3226, %v3228
    %v3230 = vsel %vm550, %v3224, %v3226
    %v3231 = vsel %vm550, %v3222, %v3224
    %v3232 = vsel %vm550, %v3228, %v3222
    %v3233 = vld [vmem:[%s5] sm:$0xff]
    %v3234 = vld [vmem:[%s5 + $0x8] sm:$0xff]
    %v3235 = vld [vmem:[%s5 + $0x10] sm:$0xff]
    %v3236 = vld [vmem:[%s5 + $0x18] sm:$0xff]
    %v3237 = vmul.f32 %v3232, %v3233
    %v3238 = vmul.f32 %v3231, %v3234
    %v3239 = vmul.f32 %v3230, %v3235
    %v3240 = vmul.f32 %v3229, %v3236
    %v3241 = vadd.f32 %v3217, %v3237
    %v3242 = vadd.f32 %v3218, %v3238
    %v3243 = vadd.f32 %v3219, %v3239
    %v3244 = vadd.f32 %v3220, %v3240
    %3245 = vrot.lane.b32.xlu0 %v3045, 16
    %v3246 = vpop.permute.xlu0 %3245
    %3247 = vrot.lane.b32.xlu0 %v3047, 16
    %v3248 = vpop.permute.xlu0 %3247
    %3249 = vrot.lane.b32.xlu0 %v3164, 16
    %v3250 = vpop.permute.xlu0 %3249
    %3251 = vrot.lane.b32.xlu0 %v3166, 16
    %v3252 = vpop.permute.xlu0 %3251
    %v3253 = vsel %vm575, %v3250, %v3252
    %v3254 = vsel %vm575, %v3248, %v3250
    %v3255 = vsel %vm575, %v3246, %v3248
    %v3256 = vsel %vm575, %v3252, %v3246
    %v3257 = vld [vmem:[%s580] sm:$0xff]
    %v3258 = vld [vmem:[%s580 + $0x8] sm:$0xff]
    %v3259 = vld [vmem:[%s580 + $0x10] sm:$0xff]
    %v3260 = vld [vmem:[%s580 + $0x18] sm:$0xff]
    %v3261 = vmul.f32 %v3256, %v3257
    %v3262 = vmul.f32 %v3255, %v3258
    %v3263 = vmul.f32 %v3254, %v3259
    %v3264 = vmul.f32 %v3253, %v3260
    %v3265 = vadd.f32 %v3241, %v3261
    %v3266 = vadd.f32 %v3242, %v3262
    %v3267 = vadd.f32 %v3243, %v3263
    %v3268 = vadd.f32 %v3244, %v3264
    %3269 = vrot.lane.b32.xlu0 %v3051, 15
    %v3270 = vpop.permute.xlu0 %3269
    %3271 = vrot.lane.b32.xlu0 %v3053, 15
    %v3272 = vpop.permute.xlu0 %3271
    %3273 = vrot.lane.b32.xlu0 %v3170, 15
    %v3274 = vpop.permute.xlu0 %3273
    %3275 = vrot.lane.b32.xlu0 %v3172, 15
    %v3276 = vpop.permute.xlu0 %3275
    %v3277 = vsel %vm601, %v3274, %v3276
    %v3278 = vsel %vm601, %v3272, %v3274
    %v3279 = vsel %vm601, %v3270, %v3272
    %v3280 = vsel %vm601, %v3276, %v3270
    %v3281 = vld [vmem:[%s606] sm:$0xff]
    %v3282 = vld [vmem:[%s606 + $0x8] sm:$0xff]
    %v3283 = vld [vmem:[%s606 + $0x10] sm:$0xff]
    %v3284 = vld [vmem:[%s606 + $0x18] sm:$0xff]
    %v3285 = vmul.f32 %v3280, %v3281
    %v3286 = vmul.f32 %v3279, %v3282
    %v3287 = vmul.f32 %v3278, %v3283
    %v3288 = vmul.f32 %v3277, %v3284
    %v3289 = vadd.f32 %v3265, %v3285
    %v3290 = vadd.f32 %v3266, %v3286
    %v3291 = vadd.f32 %v3267, %v3287
    %v3292 = vadd.f32 %v3268, %v3288
    %3293 = vrot.lane.b32.xlu0 %v3057, 1
    %v3294 = vpop.permute.xlu0 %3293
    %3295 = vrot.lane.b32.xlu0 %v3059, 1
    %v3296 = vpop.permute.xlu0 %3295
    %3297 = vrot.lane.b32.xlu0 %v3176, 1
    %v3298 = vpop.permute.xlu0 %3297
    %3299 = vrot.lane.b32.xlu0 %v3178, 1
    %v3300 = vpop.permute.xlu0 %3299
    %v3301 = vsel %vm627, %v3298, %v3300
    %v3302 = vsel %vm627, %v3296, %v3298
    %v3303 = vsel %vm627, %v3294, %v3296
    %v3304 = vsel %vm627, %v3300, %v3294
    %v3305 = vld [vmem:[%s632] sm:$0xff]
    %v3306 = vld [vmem:[%s632 + $0x8] sm:$0xff]
    %v3307 = vld [vmem:[%s632 + $0x10] sm:$0xff]
    %v3308 = vld [vmem:[%s632 + $0x18] sm:$0xff]
    %v3309 = vmul.f32 %v3304, %v3305
    %v3310 = vmul.f32 %v3303, %v3306
    %v3311 = vmul.f32 %v3302, %v3307
    %v3312 = vmul.f32 %v3301, %v3308
    %v3313 = vadd.f32 %v3289, %v3309
    %v3314 = vadd.f32 %v3290, %v3310
    %v3315 = vadd.f32 %v3291, %v3311
    %v3316 = vadd.f32 %v3292, %v3312
    %3317 = vrot.lane.b32.xlu0 %v3069, 127
    %v3318 = vpop.permute.xlu0 %3317
    %3319 = vrot.lane.b32.xlu0 %v3071, 127
    %v3320 = vpop.permute.xlu0 %3319
    %3321 = vrot.lane.b32.xlu0 %v3188, 127
    %v3322 = vpop.permute.xlu0 %3321
    %3323 = vrot.lane.b32.xlu0 %v3190, 127
    %v3324 = vpop.permute.xlu0 %3323
    %v3325 = vsel %vm653, %v3322, %v3324
    %v3326 = vsel %vm653, %v3320, %v3322
    %v3327 = vsel %vm653, %v3318, %v3320
    %v3328 = vsel %vm653, %v3324, %v3318
    %v3329 = vld [vmem:[%s658] sm:$0xff]
    %v3330 = vld [vmem:[%s658 + $0x8] sm:$0xff]
    %v3331 = vld [vmem:[%s658 + $0x10] sm:$0xff]
    %v3332 = vld [vmem:[%s658 + $0x18] sm:$0xff]
    %v3333 = vmul.f32 %v3327, %v3329
    %v3334 = vmul.f32 %v3326, %v3330
    %v3335 = vmul.f32 %v3325, %v3331
    %v3336 = vmul.f32 %v3328, %v3332
    %v3337 = vadd.f32 %v3313, %v3333
    %v3338 = vadd.f32 %v3314, %v3334
    %v3339 = vadd.f32 %v3315, %v3335
    %v3340 = vadd.f32 %v3316, %v3336
    %3341 = vrot.lane.b32.xlu0 %v3075, 113
    %v3342 = vpop.permute.xlu0 %3341
    %3343 = vrot.lane.b32.xlu0 %v3077, 113
    %v3344 = vpop.permute.xlu0 %3343
    %3345 = vrot.lane.b32.xlu0 %v3194, 113
    %v3346 = vpop.permute.xlu0 %3345
    %3347 = vrot.lane.b32.xlu0 %v3196, 113
    %v3348 = vpop.permute.xlu0 %3347
    %v3349 = vsel %vm679, %v3346, %v3348
    %v3350 = vsel %vm679, %v3344, %v3346
    %v3351 = vsel %vm679, %v3342, %v3344
    %v3352 = vsel %vm679, %v3348, %v3342
    %v3353 = vld [vmem:[%s684] sm:$0xff]
    %v3354 = vld [vmem:[%s684 + $0x8] sm:$0xff]
    %v3355 = vld [vmem:[%s684 + $0x10] sm:$0xff]
    %v3356 = vld [vmem:[%s684 + $0x18] sm:$0xff]
    %v3357 = vmul.f32 %v3351, %v3353
    %v3358 = vmul.f32 %v3350, %v3354
    %v3359 = vmul.f32 %v3349, %v3355
    %v3360 = vmul.f32 %v3352, %v3356
    %v3361 = vadd.f32 %v3337, %v3357
    %v3362 = vadd.f32 %v3338, %v3358
    %v3363 = vadd.f32 %v3339, %v3359
    %v3364 = vadd.f32 %v3340, %v3360
    %3365 = vrot.lane.b32.xlu0 %v3081, 112
    %v3366 = vpop.permute.xlu0 %3365
    %3367 = vrot.lane.b32.xlu0 %v3083, 112
    %v3368 = vpop.permute.xlu0 %3367
    %3369 = vrot.lane.b32.xlu0 %v3200, 112
    %v3370 = vpop.permute.xlu0 %3369
    %3371 = vrot.lane.b32.xlu0 %v3202, 112
    %v3372 = vpop.permute.xlu0 %3371
    %v3373 = vsel %vm705, %v3370, %v3372
    %v3374 = vsel %vm705, %v3368, %v3370
    %v3375 = vsel %vm705, %v3366, %v3368
    %v3376 = vsel %vm705, %v3372, %v3366
    %v3377 = vld [vmem:[%s710] sm:$0xff]
    %v3378 = vld [vmem:[%s710 + $0x8] sm:$0xff]
    %v3379 = vld [vmem:[%s710 + $0x10] sm:$0xff]
    %v3380 = vld [vmem:[%s710 + $0x18] sm:$0xff]
    %v3381 = vmul.f32 %v3375, %v3377
    %v3382 = vmul.f32 %v3374, %v3378
    %v3383 = vmul.f32 %v3373, %v3379
    %v3384 = vmul.f32 %v3376, %v3380
    %v3385 = vadd.f32 %v3361, %v3381
    %v3386 = vadd.f32 %v3362, %v3382
    %v3387 = vadd.f32 %v3363, %v3383
    %v3388 = vadd.f32 %v3364, %v3384
    %3389 = vrot.lane.b32.xlu0 %v3087, 111
    %v3390 = vpop.permute.xlu0 %3389
    %3391 = vrot.lane.b32.xlu0 %v3089, 111
    %v3392 = vpop.permute.xlu0 %3391
    %3393 = vrot.lane.b32.xlu0 %v3206, 111
    %v3394 = vpop.permute.xlu0 %3393
    %3395 = vrot.lane.b32.xlu0 %v3208, 111
    %v3396 = vpop.permute.xlu0 %3395
    %v3397 = vsel %vm731, %v3394, %v3396
    %v3398 = vsel %vm731, %v3392, %v3394
    %v3399 = vsel %vm731, %v3390, %v3392
    %v3400 = vsel %vm731, %v3396, %v3390
    %v3401 = vld [vmem:[%s736] sm:$0xff]
    %v3402 = vld [vmem:[%s736 + $0x8] sm:$0xff]
    %v3403 = vld [vmem:[%s736 + $0x10] sm:$0xff]
    %v3404 = vld [vmem:[%s736 + $0x18] sm:$0xff]
    %v3405 = vmul.f32 %v3399, %v3401
    %v3406 = vmul.f32 %v3398, %v3402
    %v3407 = vmul.f32 %v3397, %v3403
    %v3408 = vmul.f32 %v3400, %v3404
    %v3409 = vadd.f32 %v3385, %v3405
    %v3410 = vadd.f32 %v3386, %v3406
    %v3411 = vadd.f32 %v3387, %v3407
    %v3412 = vadd.f32 %v3388, %v3408
    %vm3413 = vcmp.gt.f32.partialorder %v3409, 0.0
    %vm3414 = vcmp.gt.f32.partialorder %v3410, 0.0
    %vm3415 = vcmp.gt.f32.partialorder %v3411, 0.0
    %vm3416 = vcmp.gt.f32.partialorder %v3412, 0.0
    %s3417 = sld [smem:[#allocation3 + $0x5]]
    %v3418 = vstv %s3417
    %v3419 = vmul.f32 %v3418, %v3409
    %v3420 = vmul.f32 %v3418, %v3410
    %v3421 = vmul.f32 %v3418, %v3411
    %v3422 = vmul.f32 %v3418, %v3412
    %v3423 = vsel %vm3413, %v3409, %v3419
    %v3424 = vsel %vm3414, %v3410, %v3420
    %v3425 = vsel %vm3415, %v3411, %v3421
    %v3426 = vsel %vm3416, %v3412, %v3422
    %v3429 = vcombine.low %v3423, %v3424
    %3431 = vst [vmem:[#allocation6] sm:$0xff] %v3429
    %v3434 = vcombine.low %v3425, %v3426
    %s3436 = scalar_lea.vmem [#allocation6], 8
    %3437 = vst [vmem:[%s3436] sm:$0xff] %v3434
    // Predicated region
    $region34: #{tpu_custom_call.1} parent=1 // pred_check
      _
    $region35: #{tpu_custom_call.1} parent=1 // pred_check_branch
      %3439 = sbr.rel (0) target = $region37
    $region36: #{tpu_custom_call.1} parent=1 // pred_region
      %s3441 = ssub.s32 256, 256
      %3442 = vsyncadd [#allocation4], %s3441
      %s3443 = sshll.u32 [#allocation6], 4
      %s3444 = int_to_ptr.vmem [resolvable:$true] %s3443
      %3449 = dma.vmem_to_hbm [thread:$0]  %s3444, 256, %s7, [#allocation4], 128, 128, 8
    $region37: #{tpu_custom_call.1} parent=1 // pred_fallthru
      _
    // Predicated region
    $region38: #{tpu_custom_call.1} parent=1 // pred_check
      _
    $region39: #{tpu_custom_call.1} parent=1 // pred_check_branch
      %3451 = sbr.rel (0) target = $region41
    $region40: #{tpu_custom_call.1} parent=1 // pred_region
      %3452 = dma.done [#allocation4], 256
    $region41: #{tpu_custom_call.1} parent=1 // pred_fallthru
      _
    %3453 = vsyncpa [#allocation4], 1
    %3454 = vsyncpa [#allocation5], 1

</llo_original>
